<compile_context>
chip_gen: v7x
topology: tpu7x:2x2x1
jax: 0.10.0
libtpu: 0.0.40
codegen_flags: <defaults>
</compile_context>

<pallas_src>
import jax
import jax.numpy as jnp
from jax import lax
from jax.experimental import pallas as pl
from jax.experimental.pallas import tpu as pltpu

C = 32  # conv channel count fixed by the module


def _conv_dims(T, D, layer_num=2):
    dims = [(T, D)]
    for _ in range(layer_num):
        t, d = dims[-1]
        dims.append(((t - 3) // 2 + 1, d - 2))
    return dims


def _cdiv(a, b):
    return -(-a // b)


def _round_up(x, m):
    return _cdiv(x, m) * m


def _prepare_params(params, D, d_model, G, NG, D1, D2, D1p, D2p, cdtype):
    """Host-side weight layout plumbing (done once per call, plain XLA)."""
    w1, b1, w2, b2, wa, ba = params
    f32 = jnp.float32

    # conv1 as a zero-banded matmul: rows ordered (kt, d_in), cols (d1, c_out).
    W1 = jnp.zeros((3, D, D1p, C), f32)
    d1_idx = jnp.arange(D1)
    for kt in range(3):
        for kd in range(3):
            W1 = W1.at[kt, d1_idx + kd, d1_idx, :].set(
                jnp.broadcast_to(w1[:, 0, kt, kd][None, :], (D1, C)))
    W1 = W1.reshape(3 * D, D1p * C).astype(cdtype)
    b1t = jnp.concatenate(
        [jnp.tile(b1, D1), jnp.zeros(((D1p - D1) * C,), f32)]).reshape(1, D1p * C)

    # conv2 as NG block-banded group weights, split by time tap (split-K).
    # Layout before transpose: [g, kt, p(=input bin), q(=output bin), ci, co].
    W2 = jnp.zeros((NG, 3, G + 2, G, C, C), f32)
    for g in range(NG):
        r = min(G, D2 - g * G)                 # ragged last group -> zero cols
        q_idx = jnp.arange(r)
        for kt in range(3):
            for kd in range(3):
                W2 = W2.at[g, kt, q_idx + kd, q_idx, :, :].set(
                    jnp.broadcast_to(w2[:, :, kt, kd].T[None], (r, C, C)))
    W2 = jnp.transpose(W2, (0, 1, 2, 4, 3, 5)).reshape(
        NG, 3 * (G + 2) * C, G * C).astype(cdtype)
    b2t = jnp.tile(b2, G).reshape(1, G * C)

    # affine: rows ordered (d2, c) to match the h2 lane layout; PyTorch flattens
    # (c, d2) as c*D2 + d2.  Zero rows for the D2p-D2 dummy padding bins.
    Wa = jnp.transpose(wa.reshape(d_model, C, D2),
                       (2, 1, 0)).reshape(D2 * C, d_model)
    Wa = jnp.concatenate(
        [Wa, jnp.zeros(((D2p - D2) * C, d_model), Wa.dtype)], axis=0).astype(cdtype)
    bat = ba.reshape(1, d_model)
    return W1, b1t, W2, b2t, Wa, bat


def _make_kernel(Tt2, d_model, G, NG, cdtype):
    KW = (G + 2) * C    # h1 lanes feeding one output group, per time tap
    GW = G * C          # output lanes per group (256 for G=8)

    def kernel(len_ref, xte_ref, xto_ref, w1_ref, b1_ref, w2_ref, b2_ref,
               wa_ref, ba_ref, out_ref):
        b = pl.program_id(0)
        j = pl.program_id(1)
        t2_start = j * Tt2

        @pl.when(t2_start < len_ref[b])
        def _compute():
            r0 = pl.multiple_of(j * Tt2, 8)
            # ---- conv1 (1->32ch, 3x3, stride (2,1)) as one banded MXU matmul
            # per output-time parity.  The time-tap im2col (lanes = (kt, d))
            # was done on the host, so these are plain contiguous reads.
            w1 = w1_ref[...]
            b1 = b1_ref[...]
            xe = xte_ref[pl.ds(r0, Tt2 + 1), :]            # even t1 rows
            xo = xto_ref[pl.ds(r0, Tt2), :]                # odd  t1 rows
            h1e = jnp.maximum(
                jnp.dot(xe, w1, preferred_element_type=jnp.float32) + b1,
                0.0).astype(cdtype)                        # (Tt2+1, D1p*C)
            h1o = jnp.maximum(
                jnp.dot(xo, w1, preferred_element_type=jnp.float32) + b1,
                0.0).astype(cdtype)                        # (Tt2,   D1p*C)
            # conv2 time taps: kt=0 -> even rows m, kt=1 -> odd rows m,
            # kt=2 -> even rows m+1.  All contiguous slices, no strided reads.
            h1_t = (h1e[:Tt2, :], h1o, h1e[1:, :])

            b2 = b2_ref[...]
            bav = ba_ref[...]
            acc = jnp.zeros((Tt2, d_model), jnp.float32)
            for g in range(NG):
                lo = g * GW
                # ---- conv2 (32->32ch, 3x3, stride (2,1)) for G adjacent
                # feature bins at once: N = G*32 output lanes per matmul,
                # split-K over the 3 time taps with f32 accumulation.
                y = jnp.dot(h1_t[0][:, lo:lo + KW], w2_ref[g, 0:KW, :],
                            preferred_element_type=jnp.float32)
                y = y + jnp.dot(h1_t[1][:, lo:lo + KW], w2_ref[g, KW:2 * KW, :],
                                preferred_element_type=jnp.float32)
                y = y + jnp.dot(h1_t[2][:, lo:lo + KW], w2_ref[g, 2 * KW:3 * KW, :],
                                preferred_element_type=jnp.float32)
                h2g = jnp.maximum(y + b2, 0.0).astype(cdtype)   # (Tt2, G*C)
                # ---- affine fused per group: out += h2g @ Wa[g-th row block].
                acc = acc + jnp.dot(h2g, wa_ref[lo:lo + GW, :],
                                    preferred_element_type=jnp.float32)
            out_ref[...] = (acc + bav).astype(out_ref.dtype)

        @pl.when(t2_start >= len_ref[b])
        def _skip():
            # Tile lies entirely beyond this utterance's valid frames: skip all
            # compute and emit zeros (downstream consumers mask by out_len).
            out_ref[...] = jnp.zeros_like(out_ref)

    return kernel


def conv2d_subsample_forward(feats, feat_lengths, params, d_model, layer_num=2,
                             *, block_t2=None, group_bins=8,
                             compute_dtype=jnp.float32):
    """feats: (B, T, D_in) float32, feat_lengths: (B,) int32."""
    assert layer_num == 2, "pallas kernel specialized for layer_num == 2"
    B, T, D = feats.shape
    (_, _), (T1, D1), (T2, D2) = _conv_dims(T, D, 2)
    assert T2 >= 1 and D2 >= 1, "input too small for two 3x3 stride-(2,1) convs"

    # ---- time tiling (output frames per grid step).
    if block_t2 is None or block_t2 >= T2:
        Tt2, NT = T2, 1
    else:
        Tt2 = _round_up(block_t2, 8)     # sublane-aligned output tiles
        NT = _cdiv(T2, Tt2)
        if NT == 1:
            Tt2 = T2
    T2p = NT * Tt2

    # ---- conv2 output-bin grouping (widen MXU N to G*32 lanes).
    G = max(1, min(group_bins, D2))
    NG = _cdiv(D2, G)
    D2p = NG * G            # padded output feature bins (zero weights past D2)
    D1p = D2p + 2           # padded conv1 bins feeding the (ragged) last group

    # ---- host-side layout plumbing: zero-pad time, im2col the conv1 time taps
    # (lanes = (kt, d)), split by output-time parity so the kernel never does a
    # strided sublane read.
    T1tot = 2 * T2p + 1
    Tpad = max(T, 4 * T2p + 3)
    x = feats.astype(jnp.float32)
    x = jnp.pad(x, ((0, 0), (0, Tpad - T), (0, 0)))
    xe_rows = x[:, 0::2, :]
    xo_rows = x[:, 1::2, :]
    x_taps = jnp.concatenate(
        [xe_rows[:, :T1tot, :], xo_rows[:, :T1tot, :], xe_rows[:, 1:T1tot + 1, :]],
        axis=-1)                                         # (B, T1tot, 3*D)
    xt_e = x_taps[:, 0::2, :].astype(compute_dtype)      # (B, T2p+1, 3*D)
    xt_o = x_taps[:, 1::2, :].astype(compute_dtype)      # (B, T2p,   3*D)

    W1, b1t, W2, b2t, Wa, bat = _prepare_params(
        params, D, d_model, G, NG, D1, D2, D1p, D2p, compute_dtype)

    # ---- valid output lengths (same truncation as .long() in the module);
    # also scalar-prefetched into SMEM to skip fully-padded time tiles.
    out_len = feat_lengths
    for _ in range(layer_num):
        out_len = ((out_len - 1).astype(jnp.float32) / 2.0).astype(jnp.int32)

    kernel = _make_kernel(Tt2, d_model, G, NG, compute_dtype)
    KW = (G + 2) * C

    out = pl.pallas_call(
        kernel,
        out_shape=jax.ShapeDtypeStruct((B, T2p, d_model), jnp.float32),
        grid_spec=pltpu.PrefetchScalarGridSpec(
            num_scalar_prefetch=1,
            grid=(B, NT),
            in_specs=[
                pl.BlockSpec((None, T2p + 1, 3 * D), lambda b, j, L: (b, 0, 0)),
                pl.BlockSpec((None, T2p, 3 * D), lambda b, j, L: (b, 0, 0)),
                pl.BlockSpec((3 * D, D1p * C), lambda b, j, L: (0, 0)),
                pl.BlockSpec((1, D1p * C), lambda b, j, L: (0, 0)),
                pl.BlockSpec((NG, 3 * KW, G * C), lambda b, j, L: (0, 0, 0)),
                pl.BlockSpec((1, G * C), lambda b, j, L: (0, 0)),
                pl.BlockSpec((D2p * C, d_model), lambda b, j, L: (0, 0)),
                pl.BlockSpec((1, d_model), lambda b, j, L: (0, 0)),
            ],
            out_specs=pl.BlockSpec((None, Tt2, d_model),
                                   lambda b, j, L: (b, j, 0)),
        ),
        compiler_params=pltpu.CompilerParams(
            dimension_semantics=("parallel", "parallel"),
            vmem_limit_bytes=48 * 1024 * 1024),
    )(out_len, xt_e, xt_o, W1, b1t, W2, b2t, Wa, bat)

    return out[:, :T2, :], out_len


def reference_forward(feats, feat_lengths, params, d_model, layer_num=2):
    """Pure-JAX reference mirroring the PyTorch module (NCHW convs)."""
    w1, b1, w2, b2, wa, ba = params
    h = feats[:, None, :, :]                                         # (B,1,T,D)
    h = lax.conv_general_dilated(h, w1, (2, 1), 'VALID',
                                 dimension_numbers=('NCHW', 'OIHW', 'NCHW'))
    h = jnp.maximum(h + b1[None, :, None, None], 0.0)
    h = lax.conv_general_dilated(h, w2, (2, 1), 'VALID',
                                 dimension_numbers=('NCHW', 'OIHW', 'NCHW'))
    h = jnp.maximum(h + b2[None, :, None, None], 0.0)
    B, Ch, T2, D2 = h.shape
    h = jnp.transpose(h, (0, 2, 1, 3)).reshape(B, T2, Ch * D2)
    out = h @ wa.T + ba
    out_len = feat_lengths
    for _ in range(layer_num):
        out_len = ((out_len - 1).astype(jnp.float32) / 2.0).astype(jnp.int32)
    return out, out_len


if __name__ == "__main__":
    key = jax.random.PRNGKey(0)

    def uinit(k, shape, fan_in):
        bound = 1.0 / jnp.sqrt(jnp.float32(fan_in))
        return jax.random.uniform(k, shape, jnp.float32, -bound, bound)

    def make_params(k, d_input, d_model, layer_num=2):
        F = C * (d_input - 2 * layer_num)
        k1, k2, k3, k4, k5, k6 = jax.random.split(k, 6)
        w1 = uinit(k1, (C, 1, 3, 3), 1 * 9)      # Conv2d(1, 32, 3)
        b1 = uinit(k2, (C,), 1 * 9)
        w2 = uinit(k3, (C, C, 3, 3), C * 9)      # Conv2d(32, 32, 3)
        b2 = uinit(k4, (C,), C * 9)
        wa = uinit(k5, (d_model, F), F)          # Linear(F, d_model), (out,in)
        ba = uinit(k6, (d_model,), F)
        return (w1, b1, w2, b2, wa, ba)

    # ---- test 1: small shapes, f32 compute, single time tile -> strict parity.
    B, T, d_input, d_model = 2, 16, 16, 32
    kp, kx, key = jax.random.split(key, 3)
    params = make_params(kp, d_input, d_model)
    feats = jax.random.normal(kx, (B, T, d_input), jnp.float32)
    feat_lengths = jnp.array([16, 11], jnp.int32)

    out, out_len = conv2d_subsample_forward(feats, feat_lengths, params, d_model)
    out = jax.block_until_ready(out)
    ref_out, ref_len = reference_forward(feats, feat_lengths, params, d_model)
    assert out.shape == ref_out.shape, (out.shape, ref_out.shape)
    assert jnp.allclose(out, ref_out, atol=1e-3, rtol=1e-3), \
        float(jnp.max(jnp.abs(out - ref_out)))
    assert jnp.array_equal(out_len, ref_len), (out_len, ref_len)

    # ---- test 2: module-default d_input=80, bf16 compute, time-tiled grid with
    # length-based skipping of fully-padded tiles on the short utterance.
    B2, Tm, d_input2, d_model2 = 2, 140, 80, 256
    kp2, kx2, key = jax.random.split(key, 3)
    params2 = make_params(kp2, d_input2, d_model2)
    feats2 = jax.random.normal(kx2, (B2, Tm, d_input2), jnp.float32)
    feat_lengths2 = jnp.array([140, 40], jnp.int32)
    TT2 = 16  # output frames per time tile

    out2, out_len2 = conv2d_subsample_forward(
        feats2, feat_lengths2, params2, d_model2,
        block_t2=TT2, compute_dtype=jnp.bfloat16)
    out2 = jax.block_until_ready(out2)
    ref_out2, ref_len2 = reference_forward(feats2, feat_lengths2, params2,
                                           d_model2)
    assert out2.shape == ref_out2.shape, (out2.shape, ref_out2.shape)
    assert jnp.array_equal(out_len2, ref_len2), (out_len2, ref_len2)
    n_frames = out2.shape[1]
    for bb in range(B2):
        valid = int(ref_len2[bb])
        # Frames in tiles that contain at least one valid frame are computed and
        # must match the reference (bf16 tolerance); fully-padded tiles are
        # skipped and zero-filled.
        computed = min(n_frames, _cdiv(valid, TT2) * TT2)
        diff = float(jnp.max(jnp.abs(out2[bb, :computed] -
                                     ref_out2[bb, :computed])))
        assert jnp.allclose(out2[bb, :computed], ref_out2[bb, :computed],
                            atol=5e-2, rtol=5e-2), diff
        assert bool(jnp.all(out2[bb, computed:] == 0.0))

    print("KERNEL_OK")
</pallas_src>

<mosaic_0001>
module attributes {stable_mosaic.version = 11 : i64} {
  func.func @kernel(%arg0: i32, %arg1: i32, %arg2: memref<2xi32, #tpu.memory_space<smem>>, %arg3: memref<1x4x48xf32, #tpu.memory_space<vmem>>, %arg4: memref<1x3x48xf32, #tpu.memory_space<vmem>>, %arg5: memref<48x576xf32, #tpu.memory_space<vmem>>, %arg6: memref<1x576xf32, #tpu.memory_space<vmem>>, %arg7: memref<2x960x256xf32, #tpu.memory_space<vmem>>, %arg8: memref<1x256xf32, #tpu.memory_space<vmem>>, %arg9: memref<512x32xf32, #tpu.memory_space<vmem>>, %arg10: memref<1x32xf32, #tpu.memory_space<vmem>>, %arg11: memref<1x3x32xf32, #tpu.memory_space<vmem>>) attributes {dimension_semantics = [#tpu.dimension_semantics<parallel>, #tpu.dimension_semantics<parallel>], iteration_bounds = array<i64: 2, 1>, scalar_prefetch = 1 : i64, scratch_operands = 0 : i64, tpu.core_type = #tpu.core_type<tc>, window_params = [{transform_indices = @transform_0, window_bounds = array<i64: 1, 4, 48>}, {transform_indices = @transform_1, window_bounds = array<i64: 1, 3, 48>}, {pipeline_mode = #tpu.pipeline_mode<synchronous>, transform_indices = @transform_2, window_bounds = array<i64: 48, 576>}, {pipeline_mode = #tpu.pipeline_mode<synchronous>, transform_indices = @transform_3, window_bounds = array<i64: 1, 576>}, {pipeline_mode = #tpu.pipeline_mode<synchronous>, transform_indices = @transform_4, window_bounds = array<i64: 2, 960, 256>}, {pipeline_mode = #tpu.pipeline_mode<synchronous>, transform_indices = @transform_5, window_bounds = array<i64: 1, 256>}, {pipeline_mode = #tpu.pipeline_mode<synchronous>, transform_indices = @transform_6, window_bounds = array<i64: 512, 32>}, {pipeline_mode = #tpu.pipeline_mode<synchronous>, transform_indices = @transform_7, window_bounds = array<i64: 1, 32>}, {transform_indices = @transform_8, window_bounds = array<i64: 1, 3, 32>}]} {
    %c3_i32 = arith.constant 3 : i32
    %0 = arith.muli %arg1, %c3_i32 : i32
    %1 = arith.index_cast %arg0 : i32 to index
    %2 = memref.load %arg2[%1] : memref<2xi32, #tpu.memory_space<smem>>
    %3 = arith.cmpi slt, %0, %2 : i32
    %4 = arith.extui %3 : i1 to i32
    %c0_i32 = arith.constant 0 : i32
    %5 = arith.cmpi ne, %4, %c0_i32 : i32
    scf.if %5 {
      %c3_i32_1 = arith.constant 3 : i32
      %11 = arith.muli %arg1, %c3_i32_1 : i32
      %12 = tpu.assume_multiple %11, 8 : i32
      %c0 = arith.constant 0 : index
      %c0_2 = arith.constant 0 : index
      %13 = vector.load %arg5[%c0, %c0_2] : memref<48x576xf32, #tpu.memory_space<vmem>>, vector<48x576xf32>
      %c0_3 = arith.constant 0 : index
      %c0_4 = arith.constant 0 : index
      %14 = vector.load %arg6[%c0_3, %c0_4] : memref<1x576xf32, #tpu.memory_space<vmem>>, vector<1x576xf32>
      %c0_5 = arith.constant 0 : index
      %15 = arith.index_cast %12 : i32 to index
      %c0_6 = arith.constant 0 : index
      %16 = vector.load %arg3[%c0_5, %15, %c0_6] : memref<1x4x48xf32, #tpu.memory_space<vmem>>, vector<1x4x48xf32>
      %17 = vector.shape_cast %16 : vector<1x4x48xf32> to vector<4x48xf32>
      %c0_7 = arith.constant 0 : index
      %18 = arith.index_cast %12 : i32 to index
      %c0_8 = arith.constant 0 : index
      %19 = vector.load %arg4[%c0_7, %18, %c0_8] : memref<1x3x48xf32, #tpu.memory_space<vmem>>, vector<1x3x48xf32>
      %20 = vector.shape_cast %19 : vector<1x3x48xf32> to vector<3x48xf32>
      %cst = arith.constant dense<0.000000e+00> : vector<4x576xf32>
      %21 = tpu.matmul %17, %13, %cst {dimension_numbers = #tpu.dot_dimension_numbers<[1], [0], [0], [1], [0, 0, 1, 1], [], []>} : vector<4x48xf32>, vector<48x576xf32>, vector<4x576xf32> -> vector<4x576xf32>
      %22 = vector.broadcast %14 : vector<1x576xf32> to vector<4x576xf32>
      %23 = arith.addf %21, %22 : vector<4x576xf32>
      %cst_9 = arith.constant 0.000000e+00 : f32
      %24 = vector.broadcast %cst_9 : f32 to vector<4x576xf32>
      %25 = arith.maximumf %23, %24 : vector<4x576xf32>
      %cst_10 = arith.constant dense<0.000000e+00> : vector<3x576xf32>
      %26 = tpu.matmul %20, %13, %cst_10 {dimension_numbers = #tpu.dot_dimension_numbers<[1], [0], [0], [1], [0, 0, 1, 1], [], []>} : vector<3x48xf32>, vector<48x576xf32>, vector<3x576xf32> -> vector<3x576xf32>
      %27 = vector.broadcast %14 : vector<1x576xf32> to vector<3x576xf32>
      %28 = arith.addf %26, %27 : vector<3x576xf32>
      %cst_11 = arith.constant 0.000000e+00 : f32
      %29 = vector.broadcast %cst_11 : f32 to vector<3x576xf32>
      %30 = arith.maximumf %28, %29 : vector<3x576xf32>
      %31 = vector.extract_strided_slice %25 {offsets = [0, 0], sizes = [3, 576], strides = [1, 1]} : vector<4x576xf32> to vector<3x576xf32>
      %32 = vector.extract_strided_slice %25 {offsets = [1, 0], sizes = [3, 576], strides = [1, 1]} : vector<4x576xf32> to vector<3x576xf32>
      %c0_12 = arith.constant 0 : index
      %c0_13 = arith.constant 0 : index
      %33 = vector.load %arg8[%c0_12, %c0_13] : memref<1x256xf32, #tpu.memory_space<vmem>>, vector<1x256xf32>
      %c0_14 = arith.constant 0 : index
      %c0_15 = arith.constant 0 : index
      %34 = vector.load %arg10[%c0_14, %c0_15] : memref<1x32xf32, #tpu.memory_space<vmem>>, vector<1x32xf32>
      %cst_16 = arith.constant 0.000000e+00 : f32
      %35 = vector.broadcast %cst_16 : f32 to vector<3x32xf32>
      %36 = vector.extract_strided_slice %31 {offsets = [0, 0], sizes = [3, 320], strides = [1, 1]} : vector<3x576xf32> to vector<3x320xf32>
      %c0_17 = arith.constant 0 : index
      %c0_18 = arith.constant 0 : index
      %c0_19 = arith.constant 0 : index
      %37 = vector.load %arg7[%c0_17, %c0_18, %c0_19] : memref<2x960x256xf32, #tpu.memory_space<vmem>>, vector<1x320x256xf32>
      %38 = vector.shape_cast %37 : vector<1x320x256xf32> to vector<320x256xf32>
      %cst_20 = arith.constant dense<0.000000e+00> : vector<3x256xf32>
      %39 = tpu.matmul %36, %38, %cst_20 {dimension_numbers = #tpu.dot_dimension_numbers<[1], [0], [0], [1], [0, 0, 1, 1], [], []>} : vector<3x320xf32>, vector<320x256xf32>, vector<3x256xf32> -> vector<3x256xf32>
      %40 = vector.extract_strided_slice %30 {offsets = [0, 0], sizes = [3, 320], strides = [1, 1]} : vector<3x576xf32> to vector<3x320xf32>
      %c0_21 = arith.constant 0 : index
      %c320 = arith.constant 320 : index
      %c0_22 = arith.constant 0 : index
      %41 = vector.load %arg7[%c0_21, %c320, %c0_22] : memref<2x960x256xf32, #tpu.memory_space<vmem>>, vector<1x320x256xf32>
      %42 = vector.shape_cast %41 : vector<1x320x256xf32> to vector<320x256xf32>
      %cst_23 = arith.constant dense<0.000000e+00> : vector<3x256xf32>
      %43 = tpu.matmul %40, %42, %cst_23 {dimension_numbers = #tpu.dot_dimension_numbers<[1], [0], [0], [1], [0, 0, 1, 1], [], []>} : vector<3x320xf32>, vector<320x256xf32>, vector<3x256xf32> -> vector<3x256xf32>
      %44 = arith.addf %39, %43 : vector<3x256xf32>
      %45 = vector.extract_strided_slice %32 {offsets = [0, 0], sizes = [3, 320], strides = [1, 1]} : vector<3x576xf32> to vector<3x320xf32>
      %c0_24 = arith.constant 0 : index
      %c640 = arith.constant 640 : index
      %c0_25 = arith.constant 0 : index
      %46 = vector.load %arg7[%c0_24, %c640, %c0_25] : memref<2x960x256xf32, #tpu.memory_space<vmem>>, vector<1x320x256xf32>
      %47 = vector.shape_cast %46 : vector<1x320x256xf32> to vector<320x256xf32>
      %cst_26 = arith.constant dense<0.000000e+00> : vector<3x256xf32>
      %48 = tpu.matmul %45, %47, %cst_26 {dimension_numbers = #tpu.dot_dimension_numbers<[1], [0], [0], [1], [0, 0, 1, 1], [], []>} : vector<3x320xf32>, vector<320x256xf32>, vector<3x256xf32> -> vector<3x256xf32>
      %49 = arith.addf %44, %48 : vector<3x256xf32>
      %50 = vector.broadcast %33 : vector<1x256xf32> to vector<3x256xf32>
      %51 = arith.addf %49, %50 : vector<3x256xf32>
      %cst_27 = arith.constant 0.000000e+00 : f32
      %52 = vector.broadcast %cst_27 : f32 to vector<3x256xf32>
      %53 = arith.maximumf %51, %52 : vector<3x256xf32>
      %c0_28 = arith.constant 0 : index
      %c0_29 = arith.constant 0 : index
      %54 = vector.load %arg9[%c0_28, %c0_29] : memref<512x32xf32, #tpu.memory_space<vmem>>, vector<256x32xf32>
      %cst_30 = arith.constant dense<0.000000e+00> : vector<3x32xf32>
      %55 = tpu.matmul %53, %54, %cst_30 {dimension_numbers = #tpu.dot_dimension_numbers<[1], [0], [0], [1], [0, 0, 1, 1], [], []>} : vector<3x256xf32>, vector<256x32xf32>, vector<3x32xf32> -> vector<3x32xf32>
      %56 = arith.addf %35, %55 : vector<3x32xf32>
      %57 = vector.extract_strided_slice %31 {offsets = [0, 256], sizes = [3, 320], strides = [1, 1]} : vector<3x576xf32> to vector<3x320xf32>
      %c1 = arith.constant 1 : index
      %c0_31 = arith.constant 0 : index
      %c0_32 = arith.constant 0 : index
      %58 = vector.load %arg7[%c1, %c0_31, %c0_32] : memref<2x960x256xf32, #tpu.memory_space<vmem>>, vector<1x320x256xf32>
      %59 = vector.shape_cast %58 : vector<1x320x256xf32> to vector<320x256xf32>
      %cst_33 = arith.constant dense<0.000000e+00> : vector<3x256xf32>
      %60 = tpu.matmul %57, %59, %cst_33 {dimension_numbers = #tpu.dot_dimension_numbers<[1], [0], [0], [1], [0, 0, 1, 1], [], []>} : vector<3x320xf32>, vector<320x256xf32>, vector<3x256xf32> -> vector<3x256xf32>
      %61 = vector.extract_strided_slice %30 {offsets = [0, 256], sizes = [3, 320], strides = [1, 1]} : vector<3x576xf32> to vector<3x320xf32>
      %c1_34 = arith.constant 1 : index
      %c320_35 = arith.constant 320 : index
      %c0_36 = arith.constant 0 : index
      %62 = vector.load %arg7[%c1_34, %c320_35, %c0_36] : memref<2x960x256xf32, #tpu.memory_space<vmem>>, vector<1x320x256xf32>
      %63 = vector.shape_cast %62 : vector<1x320x256xf32> to vector<320x256xf32>
      %cst_37 = arith.constant dense<0.000000e+00> : vector<3x256xf32>
      %64 = tpu.matmul %61, %63, %cst_37 {dimension_numbers = #tpu.dot_dimension_numbers<[1], [0], [0], [1], [0, 0, 1, 1], [], []>} : vector<3x320xf32>, vector<320x256xf32>, vector<3x256xf32> -> vector<3x256xf32>
      %65 = arith.addf %60, %64 : vector<3x256xf32>
      %66 = vector.extract_strided_slice %32 {offsets = [0, 256], sizes = [3, 320], strides = [1, 1]} : vector<3x576xf32> to vector<3x320xf32>
      %c1_38 = arith.constant 1 : index
      %c640_39 = arith.constant 640 : index
      %c0_40 = arith.constant 0 : index
      %67 = vector.load %arg7[%c1_38, %c640_39, %c0_40] : memref<2x960x256xf32, #tpu.memory_space<vmem>>, vector<1x320x256xf32>
      %68 = vector.shape_cast %67 : vector<1x320x256xf32> to vector<320x256xf32>
      %cst_41 = arith.constant dense<0.000000e+00> : vector<3x256xf32>
      %69 = tpu.matmul %66, %68, %cst_41 {dimension_numbers = #tpu.dot_dimension_numbers<[1], [0], [0], [1], [0, 0, 1, 1], [], []>} : vector<3x320xf32>, vector<320x256xf32>, vector<3x256xf32> -> vector<3x256xf32>
      %70 = arith.addf %65, %69 : vector<3x256xf32>
      %71 = vector.broadcast %33 : vector<1x256xf32> to vector<3x256xf32>
      %72 = arith.addf %70, %71 : vector<3x256xf32>
      %cst_42 = arith.constant 0.000000e+00 : f32
      %73 = vector.broadcast %cst_42 : f32 to vector<3x256xf32>
      %74 = arith.maximumf %72, %73 : vector<3x256xf32>
      %c256 = arith.constant 256 : index
      %c0_43 = arith.constant 0 : index
      %75 = vector.load %arg9[%c256, %c0_43] : memref<512x32xf32, #tpu.memory_space<vmem>>, vector<256x32xf32>
      %cst_44 = arith.constant dense<0.000000e+00> : vector<3x32xf32>
      %76 = tpu.matmul %74, %75, %cst_44 {dimension_numbers = #tpu.dot_dimension_numbers<[1], [0], [0], [1], [0, 0, 1, 1], [], []>} : vector<3x256xf32>, vector<256x32xf32>, vector<3x32xf32> -> vector<3x32xf32>
      %77 = arith.addf %56, %76 : vector<3x32xf32>
      %78 = vector.broadcast %34 : vector<1x32xf32> to vector<3x32xf32>
      %79 = arith.addf %77, %78 : vector<3x32xf32>
      %c0_45 = arith.constant 0 : index
      %c0_46 = arith.constant 0 : index
      %c0_47 = arith.constant 0 : index
      %80 = vector.load %arg11[%c0_45, %c0_46, %c0_47] : memref<1x3x32xf32, #tpu.memory_space<vmem>>, vector<1x3x32xf32>
      %81 = vector.shape_cast %80 : vector<1x3x32xf32> to vector<3x32xf32>
      %82 = vector.shape_cast %79 : vector<3x32xf32> to vector<1x3x32xf32>
      tpu.vector_store %arg11[%c0_45, %c0_46, %c0_47], %82 {strides = array<i32>} : memref<1x3x32xf32, #tpu.memory_space<vmem>>, vector<1x3x32xf32>,
    } else {
    }
    %6 = arith.index_cast %arg0 : i32 to index
    %7 = memref.load %arg2[%6] : memref<2xi32, #tpu.memory_space<smem>>
    %8 = arith.cmpi sge, %0, %7 : i32
    %9 = arith.extui %8 : i1 to i32
    %c0_i32_0 = arith.constant 0 : i32
    %10 = arith.cmpi ne, %9, %c0_i32_0 : i32
    scf.if %10 {
      %cst = arith.constant 0.000000e+00 : f32
      %11 = vector.broadcast %cst : f32 to vector<3x32xf32>
      %c0 = arith.constant 0 : index
      %c0_1 = arith.constant 0 : index
      %c0_2 = arith.constant 0 : index
      %12 = vector.load %arg11[%c0, %c0_1, %c0_2] : memref<1x3x32xf32, #tpu.memory_space<vmem>>, vector<1x3x32xf32>
      %13 = vector.shape_cast %12 : vector<1x3x32xf32> to vector<3x32xf32>
      %14 = vector.shape_cast %11 : vector<3x32xf32> to vector<1x3x32xf32>
      tpu.vector_store %arg11[%c0, %c0_1, %c0_2], %14 {strides = array<i32>} : memref<1x3x32xf32, #tpu.memory_space<vmem>>, vector<1x3x32xf32>,
    } else {
    }
    return
  }
  func.func @transform_0(%arg0: i32, %arg1: i32, %arg2: memref<2xi32, #tpu.memory_space<smem>>) -> (i32, i32, i32) {
    %c0_i32 = arith.constant 0 : i32
    %c0_i32_0 = arith.constant 0 : i32
    %c0_i32_1 = arith.constant 0 : i32
    return %arg0, %c0_i32, %c0_i32_0 : i32, i32, i32
  }
  func.func @transform_1(%arg0: i32, %arg1: i32, %arg2: memref<2xi32, #tpu.memory_space<smem>>) -> (i32, i32, i32) {
    %c0_i32 = arith.constant 0 : i32
    %c0_i32_0 = arith.constant 0 : i32
    %c0_i32_1 = arith.constant 0 : i32
    return %arg0, %c0_i32, %c0_i32_0 : i32, i32, i32
  }
  func.func @transform_2(%arg0: i32, %arg1: i32, %arg2: memref<2xi32, #tpu.memory_space<smem>>) -> (i32, i32) {
    %c0_i32 = arith.constant 0 : i32
    %c0_i32_0 = arith.constant 0 : i32
    %c0_i32_1 = arith.constant 0 : i32
    return %c0_i32, %c0_i32_0 : i32, i32
  }
  func.func @transform_3(%arg0: i32, %arg1: i32, %arg2: memref<2xi32, #tpu.memory_space<smem>>) -> (i32, i32) {
    %c0_i32 = arith.constant 0 : i32
    %c0_i32_0 = arith.constant 0 : i32
    %c0_i32_1 = arith.constant 0 : i32
    return %c0_i32, %c0_i32_0 : i32, i32
  }
  func.func @transform_4(%arg0: i32, %arg1: i32, %arg2: memref<2xi32, #tpu.memory_space<smem>>) -> (i32, i32, i32) {
    %c0_i32 = arith.constant 0 : i32
    %c0_i32_0 = arith.constant 0 : i32
    %c0_i32_1 = arith.constant 0 : i32
    %c0_i32_2 = arith.constant 0 : i32
    return %c0_i32, %c0_i32_0, %c0_i32_1 : i32, i32, i32
  }
  func.func @transform_5(%arg0: i32, %arg1: i32, %arg2: memref<2xi32, #tpu.memory_space<smem>>) -> (i32, i32) {
    %c0_i32 = arith.constant 0 : i32
    %c0_i32_0 = arith.constant 0 : i32
    %c0_i32_1 = arith.constant 0 : i32
    return %c0_i32, %c0_i32_0 : i32, i32
  }
  func.func @transform_6(%arg0: i32, %arg1: i32, %arg2: memref<2xi32, #tpu.memory_space<smem>>) -> (i32, i32) {
    %c0_i32 = arith.constant 0 : i32
    %c0_i32_0 = arith.constant 0 : i32
    %c0_i32_1 = arith.constant 0 : i32
    return %c0_i32, %c0_i32_0 : i32, i32
  }
  func.func @transform_7(%arg0: i32, %arg1: i32, %arg2: memref<2xi32, #tpu.memory_space<smem>>) -> (i32, i32) {
    %c0_i32 = arith.constant 0 : i32
    %c0_i32_0 = arith.constant 0 : i32
    %c0_i32_1 = arith.constant 0 : i32
    return %c0_i32, %c0_i32_0 : i32, i32
  }
  func.func @transform_8(%arg0: i32, %arg1: i32, %arg2: memref<2xi32, #tpu.memory_space<smem>>) -> (i32, i32, i32) {
    %c0_i32 = arith.constant 0 : i32
    %c0_i32_0 = arith.constant 0 : i32
    return %arg0, %arg1, %c0_i32 : i32, i32, i32
  }
}

</mosaic_0001>

<llo_original>
// kernel: tpu_custom_call.1
$region0: #{tpu_custom_call.1}
  #allocation0 [shape = 'u32[]', space=smem, size = 0x4, offset = 0x4, fixed_abs, tag = 'smem constant byte address 0x4 - core index']
  #allocation1 [shape = 'u32[144,128]{1,0:T(1,128)}', space=vmem, size = 0x12000, scoped, tag = 'internal scratch']
  #allocation2 [shape = 's32[1]{0}', space=sflag, size = 0x4, scoped, tag = 'scoped memory for tpu_custom_call.1']
  #allocation3 [shape = 'u8[512]{0}', space=smem, size = 0x200, scoped, tag = 'prefetched SMEM operand 0']
  %s0 = inlined_call_operand.hbm [shape: s32[2], index: 0, kind: input, shape index: {}]
  %s1 = inlined_call_operand.hbm [shape: f32[2,4,48], index: 1, kind: input, shape index: {}]
  %s2 = inlined_call_operand.vmem [shape: f32[2,3,48], index: 2, kind: input, shape index: {}]
  %s3 = inlined_call_operand.hbm [shape: f32[48,576], index: 3, kind: input, shape index: {}]
  %s4 = inlined_call_operand.hbm [shape: f32[1,576], index: 4, kind: input, shape index: {}]
  %s5 = inlined_call_operand.hbm [shape: f32[2,960,256], index: 5, kind: input, shape index: {}]
  %s6 = inlined_call_operand.hbm [shape: f32[1,256], index: 6, kind: input, shape index: {}]
  %s7 = inlined_call_operand.vmem [shape: f32[512,32], index: 7, kind: input, shape index: {}]
  %s8 = inlined_call_operand.hbm [shape: f32[1,32], index: 8, kind: input, shape index: {}]
  %s9 = inlined_call_operand.vmem [shape: f32[2,3,32], index: 9, kind: output, shape index: {}]
  %s10 = sld [smem:[#allocation0]]
  $region97: #{tpu_custom_call.1} parent=0
    _
  %s12 = ssub.s32 1, %s10
  %s13 = scalar_select 0, %s12, %s10
  %15 = dma.hbm_to_smem %s0, 16, [#allocation3], [#allocation2]
  %16 = dma.done [#allocation2], 16
  %17 = sfence
  $region1: #{tpu_custom_call.1} parent=0
    #allocation4 [shape = 'u8[4096]{0}', space=vmem, size = 0x1000, scoped, tag = 'input window, operand 1']
    #allocation5 [shape = 's32[2]{0}', space=sflag, size = 0x8, scoped, tag = 'scoped memory for tpu_custom_call.1']
    #allocation6 [shape = 'u8[122880]{0}', space=vmem, size = 0x1e000, scoped, tag = 'input window, operand 3, single buffered']
    #allocation7 [shape = 's32[1]{0}', space=sflag, size = 0x4, scoped, tag = 'scoped memory for tpu_custom_call.1']
    #allocation8 [shape = 'u8[2560]{0}', space=vmem, size = 0xc00, scoped, tag = 'input window, operand 4, single buffered']
    #allocation9 [shape = 'u8[1966080]{0}', space=vmem, size = 0x1e0000, scoped, tag = 'input window, operand 5, single buffered']
    #allocation10 [shape = 's32[1]{0}', space=sflag, size = 0x4, scoped, tag = 'scoped memory for tpu_custom_call.1']
    #allocation11 [shape = 'u8[1024]{0}', space=vmem, size = 0x400, scoped, tag = 'input window, operand 6, single buffered']
    #allocation12 [shape = 'u8[512]{0}', space=vmem, size = 0x400, scoped, tag = 'input window, operand 8, single buffered']
    #allocation13 [shape = 's32[1]{0}', space=sflag, size = 0x4, scoped, tag = 'scoped memory for tpu_custom_call.1']
    %18 = vsyncpa [#allocation5], 0
    %s19 = scalar_lea.sflag [#allocation5], 1
    %20 = vsyncpa %s19, 0
    %21 = vsyncpa [#allocation7], 0
    %22 = vsyncpa [#allocation10], 0
    %23 = vsyncpa [#allocation13], 0
    loop: start=0, step=1, limit=4
    $region2: #{tpu_custom_call.1} parent=1 // loop_pre_header
      _
    $region3: #{tpu_custom_call.1} parent=1 // loop_header
      %s25 = sphi 0, %s29
      %p26 = scmp.ge.s32.totalorder %s25, 4
      %s32 = sphi 0, %s44
      %s33 = sphi 0, %s40
      %s34 = sphi 0, %s32
      %s35 = sphi 0, %s33
      %s36 = sphi 0, %s34
      %s37 = sphi 0, %s35
      %s47 = sphi 0, %s49
      %s50 = sphi 0, %s47
      %s51 = sphi 0, %s50
      %s67 = sphi 0, %s51
      %s73 = sphi 0, %s75
      %s76 = sphi 0, %s73
      %s77 = sphi 0, %s76
      %s93 = sphi 0, %s77
      %s97 = sphi 0, %s97
      %s99 = sphi 0, %s97
      %s100 = sphi 0, %s99
      %s114 = sphi 0, %s100
      %s118 = sphi 0, %s118
      %s120 = sphi 0, %s118
      %s121 = sphi 0, %s120
      %s135 = sphi 0, %s121
      %s139 = sphi 0, %s139
      %s141 = sphi 0, %s139
      %s142 = sphi 0, %s141
      %s156 = sphi 0, %s142
      %s160 = sphi 0, %s160
      %s162 = sphi 0, %s160
      %s163 = sphi 0, %s162
      %s177 = sphi 0, %s163
      %s181 = sphi 0, %s181
      %s183 = sphi 0, %s181
      %s184 = sphi 0, %s183
      %s198 = sphi 0, %s184
      %s202 = sphi 0, %s202
      %s204 = sphi 0, %s202
      %s205 = sphi 0, %s204
      %s219 = sphi 0, %s205
      %s227 = sphi 0, %s229
      %s230 = sphi 0, %s227
      %s231 = sphi 0, %s230
      %s247 = sphi 0, %s231
    $region4: #{tpu_custom_call.1} parent=1 // loop_header_branch
      %28 = sbr.rel (%p26) target = $region8
    $region5: #{tpu_custom_call.1} parent=1 // loop_body
      %s30 = ssub.s32 %s25, 1
      %s31 = ssub.s32 %s25, 2
      %s38 = sadd.s32 1, %s33
      %p39 = scmp.ge.s32.totalorder %s38, 1
      %s40 = scalar_select %p39, 0, %s38
      %s41 = sadd.s32 1, %s32
      %s42 = scalar_select %p39, %s41, %s32
      %p43 = scmp.ge.s32.totalorder %s42, 2
      %s44 = scalar_select %p43, 0, %s42
      %s45 = ssub.s32 %s32, %s44
      %p46 = scmp.eq.s32.totalorder %s45, 0
      %s48 = sadd.s32 %s47, 1
      %s49 = scalar_select %p46, %s47, %s48
      %p52 = pneg %p46
      %p53 = scmp.eq.s32.totalorder %s25, 1
      %p54 = por %p52, %p53
      %p55 = scmp.ne.s32.totalorder %s47, %s50
      %p56 = scmp.eq.s32.totalorder %s25, 0
      %p57 = por %p55, %p56
      %p58 = scmp.ne.s32.totalorder %s47, %s50
      %p59 = scmp.eq.s32.totalorder %s30, 1
      %p60 = por %p58, %p59
      %p61 = scmp.ne.s32.totalorder %s50, %s51
      %p62 = scmp.eq.s32.totalorder %s30, 0
      %p63 = por %p61, %p62
      %p64 = scmp.ne.s32.totalorder %s50, %s51
      %p65 = scmp.eq.s32.totalorder %s31, 1
      %p66 = por %p64, %p65
      %p68 = scmp.ne.s32.totalorder %s51, %s67
      %p69 = scmp.eq.s32.totalorder %s31, 0
      %p70 = por %p68, %p69
      %s71 = ssub.s32 %s32, %s44
      %p72 = scmp.eq.s32.totalorder %s71, 0
      %s74 = sadd.s32 %s73, 1
      %s75 = scalar_select %p72, %s73, %s74
      %p78 = pneg %p72
      %p79 = scmp.eq.s32.totalorder %s25, 1
      %p80 = por %p78, %p79
      %p81 = scmp.ne.s32.totalorder %s73, %s76
      %p82 = scmp.eq.s32.totalorder %s25, 0
      %p83 = por %p81, %p82
      %p84 = scmp.ne.s32.totalorder %s73, %s76
      %p85 = scmp.eq.s32.totalorder %s30, 1
      %p86 = por %p84, %p85
      %p87 = scmp.ne.s32.totalorder %s76, %s77
      %p88 = scmp.eq.s32.totalorder %s30, 0
      %p89 = por %p87, %p88
      %p90 = scmp.ne.s32.totalorder %s76, %s77
      %p91 = scmp.eq.s32.totalorder %s31, 1
      %p92 = por %p90, %p91
      %p94 = scmp.ne.s32.totalorder %s77, %s93
      %p95 = scmp.eq.s32.totalorder %s31, 0
      %p96 = por %p94, %p95
      %s98 = sadd.s32 %s97, 1
      %p101 = scmp.eq.s32.totalorder %s25, 1
      %p102 = scmp.ne.s32.totalorder %s97, %s99
      %p103 = scmp.eq.s32.totalorder %s25, 0
      %p104 = por %p102, %p103
      %p105 = scmp.ne.s32.totalorder %s97, %s99
      %p106 = scmp.eq.s32.totalorder %s30, 1
      %p107 = por %p105, %p106
      %p108 = scmp.ne.s32.totalorder %s99, %s100
      %p109 = scmp.eq.s32.totalorder %s30, 0
      %p110 = por %p108, %p109
      %p111 = scmp.ne.s32.totalorder %s99, %s100
      %p112 = scmp.eq.s32.totalorder %s31, 1
      %p113 = por %p111, %p112
      %p115 = scmp.ne.s32.totalorder %s100, %s114
      %p116 = scmp.eq.s32.totalorder %s31, 0
      %p117 = por %p115, %p116
      %s119 = sadd.s32 %s118, 1
      %p122 = scmp.eq.s32.totalorder %s25, 1
      %p123 = scmp.ne.s32.totalorder %s118, %s120
      %p124 = scmp.eq.s32.totalorder %s25, 0
      %p125 = por %p123, %p124
      %p126 = scmp.ne.s32.totalorder %s118, %s120
      %p127 = scmp.eq.s32.totalorder %s30, 1
      %p128 = por %p126, %p127
      %p129 = scmp.ne.s32.totalorder %s120, %s121
      %p130 = scmp.eq.s32.totalorder %s30, 0
      %p131 = por %p129, %p130
      %p132 = scmp.ne.s32.totalorder %s120, %s121
      %p133 = scmp.eq.s32.totalorder %s31, 1
      %p134 = por %p132, %p133
      %p136 = scmp.ne.s32.totalorder %s121, %s135
      %p137 = scmp.eq.s32.totalorder %s31, 0
      %p138 = por %p136, %p137
      %s140 = sadd.s32 %s139, 1
      %p143 = scmp.eq.s32.totalorder %s25, 1
      %p144 = scmp.ne.s32.totalorder %s139, %s141
      %p145 = scmp.eq.s32.totalorder %s25, 0
      %p146 = por %p144, %p145
      %p147 = scmp.ne.s32.totalorder %s139, %s141
      %p148 = scmp.eq.s32.totalorder %s30, 1
      %p149 = por %p147, %p148
      %p150 = scmp.ne.s32.totalorder %s141, %s142
      %p151 = scmp.eq.s32.totalorder %s30, 0
      %p152 = por %p150, %p151
      %p153 = scmp.ne.s32.totalorder %s141, %s142
      %p154 = scmp.eq.s32.totalorder %s31, 1
      %p155 = por %p153, %p154
      %p157 = scmp.ne.s32.totalorder %s142, %s156
      %p158 = scmp.eq.s32.totalorder %s31, 0
      %p159 = por %p157, %p158
      %s161 = sadd.s32 %s160, 1
      %p164 = scmp.eq.s32.totalorder %s25, 1
      %p165 = scmp.ne.s32.totalorder %s160, %s162
      %p166 = scmp.eq.s32.totalorder %s25, 0
      %p167 = por %p165, %p166
      %p168 = scmp.ne.s32.totalorder %s160, %s162
      %p169 = scmp.eq.s32.totalorder %s30, 1
      %p170 = por %p168, %p169
      %p171 = scmp.ne.s32.totalorder %s162, %s163
      %p172 = scmp.eq.s32.totalorder %s30, 0
      %p173 = por %p171, %p172
      %p174 = scmp.ne.s32.totalorder %s162, %s163
      %p175 = scmp.eq.s32.totalorder %s31, 1
      %p176 = por %p174, %p175
      %p178 = scmp.ne.s32.totalorder %s163, %s177
      %p179 = scmp.eq.s32.totalorder %s31, 0
      %p180 = por %p178, %p179
      %s182 = sadd.s32 %s181, 1
      %p185 = scmp.eq.s32.totalorder %s25, 1
      %p186 = scmp.ne.s32.totalorder %s181, %s183
      %p187 = scmp.eq.s32.totalorder %s25, 0
      %p188 = por %p186, %p187
      %p189 = scmp.ne.s32.totalorder %s181, %s183
      %p190 = scmp.eq.s32.totalorder %s30, 1
      %p191 = por %p189, %p190
      %p192 = scmp.ne.s32.totalorder %s183, %s184
      %p193 = scmp.eq.s32.totalorder %s30, 0
      %p194 = por %p192, %p193
      %p195 = scmp.ne.s32.totalorder %s183, %s184
      %p196 = scmp.eq.s32.totalorder %s31, 1
      %p197 = por %p195, %p196
      %p199 = scmp.ne.s32.totalorder %s184, %s198
      %p200 = scmp.eq.s32.totalorder %s31, 0
      %p201 = por %p199, %p200
      %s203 = sadd.s32 %s202, 1
      %p206 = scmp.eq.s32.totalorder %s25, 1
      %p207 = scmp.ne.s32.totalorder %s202, %s204
      %p208 = scmp.eq.s32.totalorder %s25, 0
      %p209 = por %p207, %p208
      %p210 = scmp.ne.s32.totalorder %s202, %s204
      %p211 = scmp.eq.s32.totalorder %s30, 1
      %p212 = por %p210, %p211
      %p213 = scmp.ne.s32.totalorder %s204, %s205
      %p214 = scmp.eq.s32.totalorder %s30, 0
      %p215 = por %p213, %p214
      %p216 = scmp.ne.s32.totalorder %s204, %s205
      %p217 = scmp.eq.s32.totalorder %s31, 1
      %p218 = por %p216, %p217
      %p220 = scmp.ne.s32.totalorder %s205, %s219
      %p221 = scmp.eq.s32.totalorder %s31, 0
      %p222 = por %p220, %p221
      %s223 = ssub.s32 %s32, %s44
      %s224 = ssub.s32 %s33, %s40
      %s225 = sor.u32 %s223, %s224
      %p226 = scmp.eq.s32.totalorder %s225, 0
      %s228 = sadd.s32 %s227, 1
      %s229 = scalar_select %p226, %s227, %s228
      %p232 = pneg %p226
      %p233 = scmp.eq.s32.totalorder %s25, 1
      %p234 = por %p232, %p233
      %p235 = scmp.ne.s32.totalorder %s227, %s230
      %p236 = scmp.eq.s32.totalorder %s25, 0
      %p237 = por %p235, %p236
      %p238 = scmp.ne.s32.totalorder %s227, %s230
      %p239 = scmp.eq.s32.totalorder %s30, 1
      %p240 = por %p238, %p239
      %p241 = scmp.ne.s32.totalorder %s230, %s231
      %p242 = scmp.eq.s32.totalorder %s30, 0
      %p243 = por %p241, %p242
      %p244 = scmp.ne.s32.totalorder %s230, %s231
      %p245 = scmp.eq.s32.totalorder %s31, 1
      %p246 = por %p244, %p245
      %p248 = scmp.ne.s32.totalorder %s231, %s247
      %p249 = scmp.eq.s32.totalorder %s31, 0
      %p250 = por %p248, %p249
      %p251 = scmp.le.s32.totalorder 1, %s25
      %p252 = scmp.lt.s32.totalorder %s25, 3
      %p253 = pnand %p251, %p252
      %p254 = pneg %p253
      // Predicated region
      $region9: #{tpu_custom_call.1} parent=5 // pred_check
        _
      $region10: #{tpu_custom_call.1} parent=5 // pred_check_branch
        %256 = sbr.rel (%p253) target = $region12
      $region11: #{tpu_custom_call.1} parent=5 // pred_region
        %s257 = ssub.s32 %s25, 1
        // Predicated region
        $region13: #{tpu_custom_call.1} parent=11 // pred_check
          %p258 = pneg %p110
        $region14: #{tpu_custom_call.1} parent=11 // pred_check_branch
          %260 = sbr.rel (%p258) target = $region16
        $region15: #{tpu_custom_call.1} parent=11 // pred_region
          %s262 = ssub.s32 3840, 3840
          %263 = vsyncadd [#allocation7], %s262
          %s264 = sshll.u32 [#allocation6], 4
          %s265 = int_to_ptr.vmem [resolvable:$true] %s264
          %270 = dma.hbm_to_vmem [thread:$0]  %s3, 3840, %s265, [#allocation7], 640, 640, 40
        $region16: #{tpu_custom_call.1} parent=11 // pred_fallthru
          _
        // Predicated region
        $region17: #{tpu_custom_call.1} parent=11 // pred_check
          %p271 = pneg %p131
        $region18: #{tpu_custom_call.1} parent=11 // pred_check_branch
          %273 = sbr.rel (%p271) target = $region20
        $region19: #{tpu_custom_call.1} parent=11 // pred_region
          %s275 = ssub.s32 80, 80
          %276 = vsyncadd [#allocation7], %s275
          %s278 = sshll.u32 [#allocation8], 4
          %s279 = int_to_ptr.vmem [resolvable:$true] %s278
          %281 = dma.hbm_to_vmem [thread:$0]  %s4, 80, %s279, [#allocation7]
        $region20: #{tpu_custom_call.1} parent=11 // pred_fallthru
          _
        // Predicated region
        $region21: #{tpu_custom_call.1} parent=11 // pred_check
          %p282 = pneg %p152
        $region22: #{tpu_custom_call.1} parent=11 // pred_check_branch
          %284 = sbr.rel (%p282) target = $region24
        $region23: #{tpu_custom_call.1} parent=11 // pred_region
          %s286 = ssub.s32 61440, 61440
          %287 = vsyncadd [#allocation10], %s286
          %s288 = sshll.u32 [#allocation9], 4
          %s289 = int_to_ptr.vmem [resolvable:$true] %s288
          %294 = dma.hbm_to_vmem [thread:$0]  %s5, 61440, %s289, [#allocation10], 256, 256, 16
        $region24: #{tpu_custom_call.1} parent=11 // pred_fallthru
          _
        // Predicated region
        $region25: #{tpu_custom_call.1} parent=11 // pred_check
          %p295 = pneg %p173
        $region26: #{tpu_custom_call.1} parent=11 // pred_check_branch
          %297 = sbr.rel (%p295) target = $region28
        $region27: #{tpu_custom_call.1} parent=11 // pred_region
          %s299 = ssub.s32 32, 32
          %300 = vsyncadd [#allocation10], %s299
          %s302 = sshll.u32 [#allocation11], 4
          %s303 = int_to_ptr.vmem [resolvable:$true] %s302
          %305 = dma.hbm_to_vmem [thread:$0]  %s6, 32, %s303, [#allocation10]
        $region28: #{tpu_custom_call.1} parent=11 // pred_fallthru
          _
        // Predicated region
        $region29: #{tpu_custom_call.1} parent=11 // pred_check
          %p306 = pneg %p194
        $region30: #{tpu_custom_call.1} parent=11 // pred_check_branch
          %308 = sbr.rel (%p306) target = $region32
        $region31: #{tpu_custom_call.1} parent=11 // pred_region
          _
        $region32: #{tpu_custom_call.1} parent=11 // pred_fallthru
          _
        // Predicated region
        $region33: #{tpu_custom_call.1} parent=11 // pred_check
          %p309 = pneg %p215
        $region34: #{tpu_custom_call.1} parent=11 // pred_check_branch
          %311 = sbr.rel (%p309) target = $region36
        $region35: #{tpu_custom_call.1} parent=11 // pred_region
          %s313 = ssub.s32 16, 16
          %314 = vsyncadd [#allocation13], %s313
          %s316 = sshll.u32 [#allocation12], 4
          %s317 = int_to_ptr.vmem [resolvable:$true] %s316
          %319 = dma.hbm_to_vmem [thread:$0]  %s8, 16, %s317, [#allocation13]
        $region36: #{tpu_custom_call.1} parent=11 // pred_fallthru
          _
      $region12: #{tpu_custom_call.1} parent=5 // pred_fallthru
        _
      %p320 = scmp.lt.s32.totalorder %s25, 2
      // Predicated region
      $region37: #{tpu_custom_call.1} parent=5 // pred_check
        %p321 = pneg %p320
      $region38: #{tpu_custom_call.1} parent=5 // pred_check_branch
        %323 = sbr.rel (%p321) target = $region40
      $region39: #{tpu_custom_call.1} parent=5 // pred_region
        // Predicated region
        $region41: #{tpu_custom_call.1} parent=39 // pred_check
          %p324 = pneg %p57
        $region42: #{tpu_custom_call.1} parent=39 // pred_check_branch
          %326 = sbr.rel (%p324) target = $region44
        $region43: #{tpu_custom_call.1} parent=39 // pred_region
          %s327 = sand.u32 %s47, 1
          %s328 = scalar_lea.sflag [#allocation5], %s327
          %s329 = sand.u32 %s47, 1
          %s330 = smul.addr %s329, 4
          %s331 = scalar_lea.vmem [#allocation4], %s330
          %s333 = ssub.s32 64, 64
          %334 = vsyncadd %s328, %s333
          %s335 = smul.addr %s32, 64
          %s336 = scalar_lea.hbm %s1, %s335
          %s338 = sshll.u32 %s331, 4
          %s339 = int_to_ptr.vmem [resolvable:$true] %s338
          %341 = dma.hbm_to_vmem [thread:$0]  %s336, 64, %s339, %s328
        $region44: #{tpu_custom_call.1} parent=39 // pred_fallthru
          _
        // Predicated region
        $region45: #{tpu_custom_call.1} parent=39 // pred_check
          %p342 = pneg %p83
        $region46: #{tpu_custom_call.1} parent=39 // pred_check_branch
          %344 = sbr.rel (%p342) target = $region48
        $region47: #{tpu_custom_call.1} parent=39 // pred_region
          %p345 = scmp.lt.s32.totalorder %s32, 1
          %s346 = scalar_select %p345, %s32, 1
          %s347 = smul.addr %s346, 4
          %s348 = scalar_lea.vmem %s2, %s347
        $region48: #{tpu_custom_call.1} parent=39 // pred_fallthru
          _
      $region40: #{tpu_custom_call.1} parent=5 // pred_fallthru
        _
      %p349 = scmp.le.s32.totalorder 1, %s25
      %p350 = scmp.lt.s32.totalorder %s25, 3
      %p351 = pnand %p349, %p350
      %p352 = pneg %p351
      // Predicated region
      $region49: #{tpu_custom_call.1} parent=5 // pred_check
        _
      $region50: #{tpu_custom_call.1} parent=5 // pred_check_branch
        %354 = sbr.rel (%p351) target = $region52
      $region51: #{tpu_custom_call.1} parent=5 // pred_region
        %s355 = ssub.s32 %s25, 1
        %s356 = sand.u32 %s50, 1
        %s357 = scalar_lea.sflag [#allocation5], %s356
        %s358 = sand.u32 %s50, 1
        %s359 = smul.addr %s358, 4
        %s360 = scalar_lea.vmem [#allocation4], %s359
        // Predicated region
        $region53: #{tpu_custom_call.1} parent=51 // pred_check
          %p361 = pneg %p63
        $region54: #{tpu_custom_call.1} parent=51 // pred_check_branch
          %363 = sbr.rel (%p361) target = $region56
        $region55: #{tpu_custom_call.1} parent=51 // pred_region
          %364 = dma.done %s357, 64
        $region56: #{tpu_custom_call.1} parent=51 // pred_fallthru
          _
        // Predicated region
        $region57: #{tpu_custom_call.1} parent=51 // pred_check
          %p365 = pneg %p110
        $region58: #{tpu_custom_call.1} parent=51 // pred_check_branch
          %367 = sbr.rel (%p365) target = $region60
        $region59: #{tpu_custom_call.1} parent=51 // pred_region
          %368 = dma.done [#allocation7], 3840
        $region60: #{tpu_custom_call.1} parent=51 // pred_fallthru
          _
        // Predicated region
        $region61: #{tpu_custom_call.1} parent=51 // pred_check
          %p369 = pneg %p131
        $region62: #{tpu_custom_call.1} parent=51 // pred_check_branch
          %371 = sbr.rel (%p369) target = $region64
        $region63: #{tpu_custom_call.1} parent=51 // pred_region
          %372 = dma.done [#allocation7], 80
        $region64: #{tpu_custom_call.1} parent=51 // pred_fallthru
          _
        // Predicated region
        $region65: #{tpu_custom_call.1} parent=51 // pred_check
          %p373 = pneg %p152
        $region66: #{tpu_custom_call.1} parent=51 // pred_check_branch
          %375 = sbr.rel (%p373) target = $region68
        $region67: #{tpu_custom_call.1} parent=51 // pred_region
          %376 = dma.done [#allocation10], 61440
        $region68: #{tpu_custom_call.1} parent=51 // pred_fallthru
          _
        // Predicated region
        $region69: #{tpu_custom_call.1} parent=51 // pred_check
          %p377 = pneg %p173
        $region70: #{tpu_custom_call.1} parent=51 // pred_check_branch
          %379 = sbr.rel (%p377) target = $region72
        $region71: #{tpu_custom_call.1} parent=51 // pred_region
          %380 = dma.done [#allocation10], 32
        $region72: #{tpu_custom_call.1} parent=51 // pred_fallthru
          _
        // Predicated region
        $region73: #{tpu_custom_call.1} parent=51 // pred_check
          %p381 = pneg %p215
        $region74: #{tpu_custom_call.1} parent=51 // pred_check_branch
          %383 = sbr.rel (%p381) target = $region76
        $region75: #{tpu_custom_call.1} parent=51 // pred_region
          %384 = dma.done [#allocation13], 16
        $region76: #{tpu_custom_call.1} parent=51 // pred_fallthru
          _
        %s385 = sand.u32 %s50, 1
        %s386 = scalar_lea.sflag [#allocation5], %s385
        %s387 = sand.u32 %s50, 1
        %s388 = smul.addr %s387, 4
        %s389 = scalar_lea.vmem [#allocation4], %s388
        %p390 = pneg %p63
        %p391 = pneg %p60
        %p392 = scmp.lt.s32.totalorder %s34, 1
        %s393 = scalar_select %p392, %s34, 1
        %s394 = smul.addr %s393, 4
        %s395 = scalar_lea.vmem %s2, %s394
        %p396 = pneg %p89
        %p397 = pneg %p86
        %p398 = pneg %p110
        %p399 = pneg %p107
        %p400 = pneg %p131
        %p401 = pneg %p128
        %p402 = pneg %p152
        %p403 = pneg %p149
        %p404 = pneg %p173
        %p405 = pneg %p170
        %p406 = pneg %p194
        %p407 = pneg %p191
        %p408 = pneg %p215
        %p409 = pneg %p212
        %p410 = pneg %p243
        %p411 = pneg %p240
        %p412 = scmp.lt.s32.totalorder %s34, 1
        %s413 = scalar_select %p412, %s34, 1
        %p414 = scmp.lt.s32.totalorder %s35, 0
        %s415 = scalar_select %p414, %s35, 0
        %s416 = sadd.s32 %s415, %s413
        %s417 = smul.addr %s416, 4
        %s418 = scalar_lea.vmem %s9, %s417
        %p419 = scmp.lt.s32.totalorder %s34, 1
        %s420 = scalar_select %p419, %s34, 1
        %s421 = smul.addr %s420, 4
        %s422 = scalar_lea.vmem %s2, %s421
        %p423 = scmp.lt.s32.totalorder %s34, 1
        %s424 = scalar_select %p423, %s34, 1
        %p425 = scmp.lt.s32.totalorder %s35, 0
        %s426 = scalar_select %p425, %s35, 0
        %s427 = sadd.s32 %s426, %s424
        %s428 = smul.addr %s427, 4
        %s429 = scalar_lea.vmem %s9, %s428
        %s430 = smul.u32 %s35, 3
        %s431 = sld [smem:[#allocation3 + %s34]]
        %p432 = scmp.lt.s32.totalorder %s430, %s431
        // Predicated region
        $region77: #{tpu_custom_call.1} parent=51 // pred_check
          %p433 = pneg %p432
        $region78: #{tpu_custom_call.1} parent=51 // pred_check_branch
          %435 = sbr.rel (%p433) target = $region80
        $region79: #{tpu_custom_call.1} parent=51 // pred_region
          %v436 = vld [vmem:[#allocation6] sm:$0xff]
          %v437 = vld [vmem:[#allocation6 + $0x8] sm:$0xff]
          %v438 = vld [vmem:[#allocation6 + $0x10] sm:$0xff]
          %v439 = vld [vmem:[#allocation6 + $0x18] sm:$0xff]
          %v440 = vld [vmem:[#allocation6 + $0x20] sm:$0xff]
          %v441 = vld [vmem:[#allocation6 + $0x28] sm:$0xff]
          %v442 = vld [vmem:[#allocation6 + $0x30] sm:$0xff]
          %v443 = vld [vmem:[#allocation6 + $0x38] sm:$0xff]
          %v444 = vld [vmem:[#allocation6 + $0x40] sm:$0xff]
          %v445 = vld [vmem:[#allocation6 + $0x48] sm:$0xff]
          %v446 = vld [vmem:[#allocation6 + $0x50] sm:$0xff]
          %v447 = vld [vmem:[#allocation6 + $0x58] sm:$0xff]
          %v448 = vld [vmem:[#allocation6 + $0x60] sm:$0xff]
          %v449 = vld [vmem:[#allocation6 + $0x68] sm:$0xff]
          %v450 = vld [vmem:[#allocation6 + $0x70] sm:$0xff]
          %v451 = vld [vmem:[#allocation6 + $0x78] sm:$0xff]
          %v452 = vld [vmem:[#allocation6 + $0x80] sm:$0xff]
          %v453 = vld [vmem:[#allocation6 + $0x88] sm:$0xff]
          %v454 = vld [vmem:[#allocation6 + $0x90] sm:$0xff]
          %v455 = vld [vmem:[#allocation6 + $0x98] sm:$0xff]
          %v456 = vld [vmem:[#allocation6 + $0xa0] sm:$0xff]
          %v457 = vld [vmem:[#allocation6 + $0xa8] sm:$0xff]
          %v458 = vld [vmem:[#allocation6 + $0xb0] sm:$0xff]
          %v459 = vld [vmem:[#allocation6 + $0xb8] sm:$0xff]
          %v460 = vld [vmem:[#allocation6 + $0xc0] sm:$0xff]
          %v461 = vld [vmem:[#allocation6 + $0xc8] sm:$0xff]
          %v462 = vld [vmem:[#allocation6 + $0xd0] sm:$0xff]
          %v463 = vld [vmem:[#allocation6 + $0xd8] sm:$0xff]
          %v464 = vld [vmem:[#allocation6 + $0xe0] sm:$0xff]
          %v465 = vld [vmem:[#allocation6 + $0xe8] sm:$0xff]
          %v466 = vld [vmem:[#allocation8] sm:$0x1f]
          %s467 = scalar_lea.vmem %s360, %s430 [#allocation4]
          %v468 = vld [vmem:[%s467] sm:$0xf]
          %s469 = scalar_lea.vmem %s422, %s430
          %v470 = vld [vmem:[%s469] sm:$0x7]
          %v472 = vlaneseq
          %v473 = vshrl.u32 %v472, 7
          %v474 = vsub.s32 0, %v473
          %v475 = vrot.slane %v466, %v474
          %v476 = vlaneseq
          %v477 = vshrl.u32 %v476, 7
          %v478 = vsub.s32 1, %v477
          %v479 = vrot.slane %v466, %v478
          %v480 = vlaneseq
          %v481 = vshrl.u32 %v480, 7
          %v482 = vsub.s32 2, %v481
          %v483 = vrot.slane %v466, %v482
          %v484 = vlaneseq
          %v485 = vshrl.u32 %v484, 7
          %v486 = vsub.s32 3, %v485
          %v487 = vrot.slane %v466, %v486
          %v488 = vlaneseq
          %v489 = vshrl.u32 %v488, 7
          %v490 = vsub.s32 4, %v489
          %v491 = vrot.slane %v466, %v490
          %vm497 = vcmask 392192
          %v499 = vsel %vm497, %v468, 0
          %501 = vmatprep.subr.mxu0 %v437
          %502 = vmatpush1.msra.mxu0 %v436
          %503 = vmatprep.subr.mxu0 %v442
          %504 = vmatpush1.msra.mxu0 %v441
          %505 = vmatprep.subr.mxu0 %v447
          %506 = vmatpush1.msra.mxu0 %v446
          %507 = vmatprep.subr.mxu0 %v452
          %508 = vmatpush1.msra.mxu0 %v451
          %509 = vmatprep.subr.mxu0 %v457
          %510 = vmatpush1.msra.mxu0 %v456
          %511 = vmatprep.subr.mxu0 %v462
          %512 = vmatpush1.msra.mxu0 %v461
          %513 = vmatprep.subr.mxu0 0.0
          %514 = vmatpush1.msra.mxu0 0.0
          %515 = vmatprep.subr.mxu0 0.0
          %516 = vmatpush1.msra.mxu0 0.0
          %517 = vmatprep.subr.mxu0 0.0
          %518 = vmatpush1.msra.mxu0 0.0
          %519 = vmatprep.subr.mxu0 0.0
          %520 = vmatpush1.msra.mxu0 0.0
          %521 = vmatprep.subr.mxu0 0.0
          %522 = vmatpush1.msra.mxu0 0.0
          %523 = vmatprep.subr.mxu0 0.0
          %524 = vmatpush1.msra.mxu0 0.0
          %525 = vmatprep.subr.mxu0 0.0
          %526 = vmatpush1.msra.mxu0 0.0
          %527 = vmatprep.subr.mxu0 0.0
          %528 = vmatpush1.msra.mxu0 0.0
          %529 = vmatprep.subr.mxu0 0.0
          %530 = vmatpush1.msra.mxu0 0.0
          %531 = vmatprep.subr.mxu0 0.0
          %532 = vmatpush1.msra.mxu0 0.0
          %533 = vmatprep.subr.mxu0 0.0
          %534 = vmatpush1.msra.mxu0 0.0
          %535 = vmatprep.subr.mxu0 0.0
          %536 = vmatpush1.msra.mxu0 0.0
          %537 = vmatprep.subr.mxu0 0.0
          %538 = vmatpush1.msra.mxu0 0.0
          %539 = vmatprep.subr.mxu0 0.0
          %540 = vmatpush1.msra.mxu0 0.0
          %541 = vmatprep.subr.mxu0 0.0
          %542 = vmatpush1.msra.mxu0 0.0
          %543 = vmatprep.subr.mxu0 0.0
          %544 = vmatpush1.msra.mxu0 0.0
          %545 = vmatprep.subr.mxu0 0.0
          %546 = vmatpush1.msra.mxu0 0.0
          %547 = vmatprep.subr.mxu0 0.0
          %548 = vmatpush1.msra.mxu0 0.0
          %549 = vmatprep.subr.mxu0 0.0
          %550 = vmatpush1.msra.mxu0 0.0
          %551 = vmatprep.subr.mxu0 0.0
          %552 = vmatpush1.msra.mxu0 0.0
          %553 = vmatprep.subr.mxu0 0.0
          %554 = vmatpush1.msra.mxu0 0.0
          %555 = vmatprep.subr.mxu0 0.0
          %556 = vmatpush1.msra.mxu0 0.0
          %557 = vmatprep.subr.mxu0 0.0
          %558 = vmatpush1.msra.mxu0 0.0
          %559 = vmatprep.subr.mxu0 0.0
          %560 = vmatpush1.msra.mxu0 0.0
          %561 = vmatprep.subr.mxu0 0.0
          %562 = vmatpush1.msra.mxu0 0.0
          %563 = vmatprep.subr.mxu0 0.0
          %564 = vmatpush1.msra.mxu0 0.0
          %565 = vmatprep.mubr.f32.mxu0 0.0
          %566 = vmatmul.mubr.f32.gmra.mrb[0].mxu0 %v499
          %v567 = vpop.f32.mrb[0].mxu0
          %v568 = vadd.f32 %v475, %v567
          %v569 = vpop.f32.mrb[0].mxu0
          %v570 = vadd.f32 %v479, %v569
          %571 = vdwg.mxu0
          %572 = vmatprep.subr.mxu0 %v439
          %573 = vmatpush1.msra.mxu0 %v438
          %574 = vmatprep.subr.mxu0 %v444
          %575 = vmatpush1.msra.mxu0 %v443
          %576 = vmatprep.subr.mxu0 %v449
          %577 = vmatpush1.msra.mxu0 %v448
          %578 = vmatprep.subr.mxu0 %v454
          %579 = vmatpush1.msra.mxu0 %v453
          %580 = vmatprep.subr.mxu0 %v459
          %581 = vmatpush1.msra.mxu0 %v458
          %582 = vmatprep.subr.mxu0 %v464
          %583 = vmatpush1.msra.mxu0 %v463
          %584 = vmatprep.subr.mxu0 0.0
          %585 = vmatpush1.msra.mxu0 0.0
          %586 = vmatprep.subr.mxu0 0.0
          %587 = vmatpush1.msra.mxu0 0.0
          %588 = vmatprep.subr.mxu0 0.0
          %589 = vmatpush1.msra.mxu0 0.0
          %590 = vmatprep.subr.mxu0 0.0
          %591 = vmatpush1.msra.mxu0 0.0
          %592 = vmatprep.subr.mxu0 0.0
          %593 = vmatpush1.msra.mxu0 0.0
          %594 = vmatprep.subr.mxu0 0.0
          %595 = vmatpush1.msra.mxu0 0.0
          %596 = vmatprep.subr.mxu0 0.0
          %597 = vmatpush1.msra.mxu0 0.0
          %598 = vmatprep.subr.mxu0 0.0
          %599 = vmatpush1.msra.mxu0 0.0
          %600 = vmatprep.subr.mxu0 0.0
          %601 = vmatpush1.msra.mxu0 0.0
          %602 = vmatprep.subr.mxu0 0.0
          %603 = vmatpush1.msra.mxu0 0.0
          %604 = vmatprep.subr.mxu0 0.0
          %605 = vmatpush1.msra.mxu0 0.0
          %606 = vmatprep.subr.mxu0 0.0
          %607 = vmatpush1.msra.mxu0 0.0
          %608 = vmatprep.subr.mxu0 0.0
          %609 = vmatpush1.msra.mxu0 0.0
          %610 = vmatprep.subr.mxu0 0.0
          %611 = vmatpush1.msra.mxu0 0.0
          %612 = vmatprep.subr.mxu0 0.0
          %613 = vmatpush1.msra.mxu0 0.0
          %614 = vmatprep.subr.mxu0 0.0
          %615 = vmatpush1.msra.mxu0 0.0
          %616 = vmatprep.subr.mxu0 0.0
          %617 = vmatpush1.msra.mxu0 0.0
          %618 = vmatprep.subr.mxu0 0.0
          %619 = vmatpush1.msra.mxu0 0.0
          %620 = vmatprep.subr.mxu0 0.0
          %621 = vmatpush1.msra.mxu0 0.0
          %622 = vmatprep.subr.mxu0 0.0
          %623 = vmatpush1.msra.mxu0 0.0
          %624 = vmatprep.subr.mxu0 0.0
          %625 = vmatpush1.msra.mxu0 0.0
          %626 = vmatprep.subr.mxu0 0.0
          %627 = vmatpush1.msra.mxu0 0.0
          %628 = vmatprep.subr.mxu0 0.0
          %629 = vmatpush1.msra.mxu0 0.0
          %630 = vmatprep.subr.mxu0 0.0
          %631 = vmatpush1.msra.mxu0 0.0
          %632 = vmatprep.subr.mxu0 0.0
          %633 = vmatpush1.msra.mxu0 0.0
          %634 = vmatprep.subr.mxu0 0.0
          %635 = vmatpush1.msra.mxu0 0.0
          %636 = vmatprep.mubr.f32.mxu0 0.0
          %637 = vmatmul.mubr.f32.gmra.mrb[0].mxu0 %v499
          %v638 = vpop.f32.mrb[0].mxu0
          %v639 = vadd.f32 %v483, %v638
          %v640 = vpop.f32.mrb[0].mxu0
          %v641 = vadd.f32 %v487, %v640
          %642 = vdwg.mxu0
          %643 = vmatprep.subr.mxu0 0.0
          %644 = vmatpush1.msra.mxu0 %v440
          %645 = vmatprep.subr.mxu0 0.0
          %646 = vmatpush1.msra.mxu0 %v445
          %647 = vmatprep.subr.mxu0 0.0
          %648 = vmatpush1.msra.mxu0 %v450
          %649 = vmatprep.subr.mxu0 0.0
          %650 = vmatpush1.msra.mxu0 %v455
          %651 = vmatprep.subr.mxu0 0.0
          %652 = vmatpush1.msra.mxu0 %v460
          %653 = vmatprep.subr.mxu0 0.0
          %654 = vmatpush1.msra.mxu0 %v465
          %655 = vmatprep.subr.mxu0 0.0
          %656 = vmatpush1.msra.mxu0 0.0
          %657 = vmatprep.subr.mxu0 0.0
          %658 = vmatpush1.msra.mxu0 0.0
          %659 = vmatprep.subr.mxu0 0.0
          %660 = vmatpush1.msra.mxu0 0.0
          %661 = vmatprep.subr.mxu0 0.0
          %662 = vmatpush1.msra.mxu0 0.0
          %663 = vmatprep.subr.mxu0 0.0
          %664 = vmatpush1.msra.mxu0 0.0
          %665 = vmatprep.subr.mxu0 0.0
          %666 = vmatpush1.msra.mxu0 0.0
          %667 = vmatprep.subr.mxu0 0.0
          %668 = vmatpush1.msra.mxu0 0.0
          %669 = vmatprep.subr.mxu0 0.0
          %670 = vmatpush1.msra.mxu0 0.0
          %671 = vmatprep.subr.mxu0 0.0
          %672 = vmatpush1.msra.mxu0 0.0
          %673 = vmatprep.subr.mxu0 0.0
          %674 = vmatpush1.msra.mxu0 0.0
          %675 = vmatprep.subr.mxu0 0.0
          %676 = vmatpush1.msra.mxu0 0.0
          %677 = vmatprep.subr.mxu0 0.0
          %678 = vmatpush1.msra.mxu0 0.0
          %679 = vmatprep.subr.mxu0 0.0
          %680 = vmatpush1.msra.mxu0 0.0
          %681 = vmatprep.subr.mxu0 0.0
          %682 = vmatpush1.msra.mxu0 0.0
          %683 = vmatprep.subr.mxu0 0.0
          %684 = vmatpush1.msra.mxu0 0.0
          %685 = vmatprep.subr.mxu0 0.0
          %686 = vmatpush1.msra.mxu0 0.0
          %687 = vmatprep.subr.mxu0 0.0
          %688 = vmatpush1.msra.mxu0 0.0
          %689 = vmatprep.subr.mxu0 0.0
          %690 = vmatpush1.msra.mxu0 0.0
          %691 = vmatprep.subr.mxu0 0.0
          %692 = vmatpush1.msra.mxu0 0.0
          %693 = vmatprep.subr.mxu0 0.0
          %694 = vmatpush1.msra.mxu0 0.0
          %695 = vmatprep.subr.mxu0 0.0
          %696 = vmatpush1.msra.mxu0 0.0
          %697 = vmatprep.subr.mxu0 0.0
          %698 = vmatpush1.msra.mxu0 0.0
          %699 = vmatprep.subr.mxu0 0.0
          %700 = vmatpush1.msra.mxu0 0.0
          %701 = vmatprep.subr.mxu0 0.0
          %702 = vmatpush1.msra.mxu0 0.0
          %703 = vmatprep.subr.mxu0 0.0
          %704 = vmatpush1.msra.mxu0 0.0
          %705 = vmatprep.subr.mxu0 0.0
          %706 = vmatpush1.msra.mxu0 0.0
          %707 = vmatprep.mubr.f32.mxu0 0.0
          %708 = vmatmul.mubr.f32.gmra.mrb[0].mxu0 %v499
          %v709 = vpop.f32.mrb[0].mxu0
          %v710 = vadd.f32 %v491, %v709
          %v711 = vpop.f32.mrb[0].mxu0
          %712 = vdwg.mxu0
          %v713 = vmax.f32 %v568, 0.0
          %v714 = vmax.f32 %v570, 0.0
          %v715 = vmax.f32 %v639, 0.0
          %v716 = vmax.f32 %v641, 0.0
          %v717 = vmax.f32 %v710, 0.0
          %v719 = vsel %vm497, %v470, 0
          %721 = vmatprep.subr.mxu0 %v437
          %722 = vmatpush1.msra.mxu0 %v436
          %723 = vmatprep.subr.mxu0 %v442
          %724 = vmatpush1.msra.mxu0 %v441
          %725 = vmatprep.subr.mxu0 %v447
          %726 = vmatpush1.msra.mxu0 %v446
          %727 = vmatprep.subr.mxu0 %v452
          %728 = vmatpush1.msra.mxu0 %v451
          %729 = vmatprep.subr.mxu0 %v457
          %730 = vmatpush1.msra.mxu0 %v456
          %731 = vmatprep.subr.mxu0 %v462
          %732 = vmatpush1.msra.mxu0 %v461
          %733 = vmatprep.subr.mxu0 0.0
          %734 = vmatpush1.msra.mxu0 0.0
          %735 = vmatprep.subr.mxu0 0.0
          %736 = vmatpush1.msra.mxu0 0.0
          %737 = vmatprep.subr.mxu0 0.0
          %738 = vmatpush1.msra.mxu0 0.0
          %739 = vmatprep.subr.mxu0 0.0
          %740 = vmatpush1.msra.mxu0 0.0
          %741 = vmatprep.subr.mxu0 0.0
          %742 = vmatpush1.msra.mxu0 0.0
          %743 = vmatprep.subr.mxu0 0.0
          %744 = vmatpush1.msra.mxu0 0.0
          %745 = vmatprep.subr.mxu0 0.0
          %746 = vmatpush1.msra.mxu0 0.0
          %747 = vmatprep.subr.mxu0 0.0
          %748 = vmatpush1.msra.mxu0 0.0
          %749 = vmatprep.subr.mxu0 0.0
          %750 = vmatpush1.msra.mxu0 0.0
          %751 = vmatprep.subr.mxu0 0.0
          %752 = vmatpush1.msra.mxu0 0.0
          %753 = vmatprep.subr.mxu0 0.0
          %754 = vmatpush1.msra.mxu0 0.0
          %755 = vmatprep.subr.mxu0 0.0
          %756 = vmatpush1.msra.mxu0 0.0
          %757 = vmatprep.subr.mxu0 0.0
          %758 = vmatpush1.msra.mxu0 0.0
          %759 = vmatprep.subr.mxu0 0.0
          %760 = vmatpush1.msra.mxu0 0.0
          %761 = vmatprep.subr.mxu0 0.0
          %762 = vmatpush1.msra.mxu0 0.0
          %763 = vmatprep.subr.mxu0 0.0
          %764 = vmatpush1.msra.mxu0 0.0
          %765 = vmatprep.subr.mxu0 0.0
          %766 = vmatpush1.msra.mxu0 0.0
          %767 = vmatprep.subr.mxu0 0.0
          %768 = vmatpush1.msra.mxu0 0.0
          %769 = vmatprep.subr.mxu0 0.0
          %770 = vmatpush1.msra.mxu0 0.0
          %771 = vmatprep.subr.mxu0 0.0
          %772 = vmatpush1.msra.mxu0 0.0
          %773 = vmatprep.subr.mxu0 0.0
          %774 = vmatpush1.msra.mxu0 0.0
          %775 = vmatprep.subr.mxu0 0.0
          %776 = vmatpush1.msra.mxu0 0.0
          %777 = vmatprep.subr.mxu0 0.0
          %778 = vmatpush1.msra.mxu0 0.0
          %779 = vmatprep.subr.mxu0 0.0
          %780 = vmatpush1.msra.mxu0 0.0
          %781 = vmatprep.subr.mxu0 0.0
          %782 = vmatpush1.msra.mxu0 0.0
          %783 = vmatprep.subr.mxu0 0.0
          %784 = vmatpush1.msra.mxu0 0.0
          %785 = vmatprep.mubr.f32.mxu0 0.0
          %786 = vmatmul.mubr.f32.gmra.mrb[0].mxu0 %v719
          %v787 = vpop.f32.mrb[0].mxu0
          %v788 = vadd.f32 %v475, %v787
          %v789 = vpop.f32.mrb[0].mxu0
          %v790 = vadd.f32 %v479, %v789
          %791 = vdwg.mxu0
          %792 = vmatprep.subr.mxu0 %v439
          %793 = vmatpush1.msra.mxu0 %v438
          %794 = vmatprep.subr.mxu0 %v444
          %795 = vmatpush1.msra.mxu0 %v443
          %796 = vmatprep.subr.mxu0 %v449
          %797 = vmatpush1.msra.mxu0 %v448
          %798 = vmatprep.subr.mxu0 %v454
          %799 = vmatpush1.msra.mxu0 %v453
          %800 = vmatprep.subr.mxu0 %v459
          %801 = vmatpush1.msra.mxu0 %v458
          %802 = vmatprep.subr.mxu0 %v464
          %803 = vmatpush1.msra.mxu0 %v463
          %804 = vmatprep.subr.mxu0 0.0
          %805 = vmatpush1.msra.mxu0 0.0
          %806 = vmatprep.subr.mxu0 0.0
          %807 = vmatpush1.msra.mxu0 0.0
          %808 = vmatprep.subr.mxu0 0.0
          %809 = vmatpush1.msra.mxu0 0.0
          %810 = vmatprep.subr.mxu0 0.0
          %811 = vmatpush1.msra.mxu0 0.0
          %812 = vmatprep.subr.mxu0 0.0
          %813 = vmatpush1.msra.mxu0 0.0
          %814 = vmatprep.subr.mxu0 0.0
          %815 = vmatpush1.msra.mxu0 0.0
          %816 = vmatprep.subr.mxu0 0.0
          %817 = vmatpush1.msra.mxu0 0.0
          %818 = vmatprep.subr.mxu0 0.0
          %819 = vmatpush1.msra.mxu0 0.0
          %820 = vmatprep.subr.mxu0 0.0
          %821 = vmatpush1.msra.mxu0 0.0
          %822 = vmatprep.subr.mxu0 0.0
          %823 = vmatpush1.msra.mxu0 0.0
          %824 = vmatprep.subr.mxu0 0.0
          %825 = vmatpush1.msra.mxu0 0.0
          %826 = vmatprep.subr.mxu0 0.0
          %827 = vmatpush1.msra.mxu0 0.0
          %828 = vmatprep.subr.mxu0 0.0
          %829 = vmatpush1.msra.mxu0 0.0
          %830 = vmatprep.subr.mxu0 0.0
          %831 = vmatpush1.msra.mxu0 0.0
          %832 = vmatprep.subr.mxu0 0.0
          %833 = vmatpush1.msra.mxu0 0.0
          %834 = vmatprep.subr.mxu0 0.0
          %835 = vmatpush1.msra.mxu0 0.0
          %836 = vmatprep.subr.mxu0 0.0
          %837 = vmatpush1.msra.mxu0 0.0
          %838 = vmatprep.subr.mxu0 0.0
          %839 = vmatpush1.msra.mxu0 0.0
          %840 = vmatprep.subr.mxu0 0.0
          %841 = vmatpush1.msra.mxu0 0.0
          %842 = vmatprep.subr.mxu0 0.0
          %843 = vmatpush1.msra.mxu0 0.0
          %844 = vmatprep.subr.mxu0 0.0
          %845 = vmatpush1.msra.mxu0 0.0
          %846 = vmatprep.subr.mxu0 0.0
          %847 = vmatpush1.msra.mxu0 0.0
          %848 = vmatprep.subr.mxu0 0.0
          %849 = vmatpush1.msra.mxu0 0.0
          %850 = vmatprep.subr.mxu0 0.0
          %851 = vmatpush1.msra.mxu0 0.0
          %852 = vmatprep.subr.mxu0 0.0
          %853 = vmatpush1.msra.mxu0 0.0
          %854 = vmatprep.subr.mxu0 0.0
          %855 = vmatpush1.msra.mxu0 0.0
          %856 = vmatprep.mubr.f32.mxu0 0.0
          %857 = vmatmul.mubr.f32.gmra.mrb[0].mxu0 %v719
          %v858 = vpop.f32.mrb[0].mxu0
          %v859 = vadd.f32 %v483, %v858
          %v860 = vpop.f32.mrb[0].mxu0
          %v861 = vadd.f32 %v487, %v860
          %862 = vdwg.mxu0
          %863 = vmatprep.subr.mxu0 0.0
          %864 = vmatpush1.msra.mxu0 %v440
          %865 = vmatprep.subr.mxu0 0.0
          %866 = vmatpush1.msra.mxu0 %v445
          %867 = vmatprep.subr.mxu0 0.0
          %868 = vmatpush1.msra.mxu0 %v450
          %869 = vmatprep.subr.mxu0 0.0
          %870 = vmatpush1.msra.mxu0 %v455
          %871 = vmatprep.subr.mxu0 0.0
          %872 = vmatpush1.msra.mxu0 %v460
          %873 = vmatprep.subr.mxu0 0.0
          %874 = vmatpush1.msra.mxu0 %v465
          %875 = vmatprep.subr.mxu0 0.0
          %876 = vmatpush1.msra.mxu0 0.0
          %877 = vmatprep.subr.mxu0 0.0
          %878 = vmatpush1.msra.mxu0 0.0
          %879 = vmatprep.subr.mxu0 0.0
          %880 = vmatpush1.msra.mxu0 0.0
          %881 = vmatprep.subr.mxu0 0.0
          %882 = vmatpush1.msra.mxu0 0.0
          %883 = vmatprep.subr.mxu0 0.0
          %884 = vmatpush1.msra.mxu0 0.0
          %885 = vmatprep.subr.mxu0 0.0
          %886 = vmatpush1.msra.mxu0 0.0
          %887 = vmatprep.subr.mxu0 0.0
          %888 = vmatpush1.msra.mxu0 0.0
          %889 = vmatprep.subr.mxu0 0.0
          %890 = vmatpush1.msra.mxu0 0.0
          %891 = vmatprep.subr.mxu0 0.0
          %892 = vmatpush1.msra.mxu0 0.0
          %893 = vmatprep.subr.mxu0 0.0
          %894 = vmatpush1.msra.mxu0 0.0
          %895 = vmatprep.subr.mxu0 0.0
          %896 = vmatpush1.msra.mxu0 0.0
          %897 = vmatprep.subr.mxu0 0.0
          %898 = vmatpush1.msra.mxu0 0.0
          %899 = vmatprep.subr.mxu0 0.0
          %900 = vmatpush1.msra.mxu0 0.0
          %901 = vmatprep.subr.mxu0 0.0
          %902 = vmatpush1.msra.mxu0 0.0
          %903 = vmatprep.subr.mxu0 0.0
          %904 = vmatpush1.msra.mxu0 0.0
          %905 = vmatprep.subr.mxu0 0.0
          %906 = vmatpush1.msra.mxu0 0.0
          %907 = vmatprep.subr.mxu0 0.0
          %908 = vmatpush1.msra.mxu0 0.0
          %909 = vmatprep.subr.mxu0 0.0
          %910 = vmatpush1.msra.mxu0 0.0
          %911 = vmatprep.subr.mxu0 0.0
          %912 = vmatpush1.msra.mxu0 0.0
          %913 = vmatprep.subr.mxu0 0.0
          %914 = vmatpush1.msra.mxu0 0.0
          %915 = vmatprep.subr.mxu0 0.0
          %916 = vmatpush1.msra.mxu0 0.0
          %917 = vmatprep.subr.mxu0 0.0
          %918 = vmatpush1.msra.mxu0 0.0
          %919 = vmatprep.subr.mxu0 0.0
          %920 = vmatpush1.msra.mxu0 0.0
          %921 = vmatprep.subr.mxu0 0.0
          %922 = vmatpush1.msra.mxu0 0.0
          %923 = vmatprep.subr.mxu0 0.0
          %924 = vmatpush1.msra.mxu0 0.0
          %925 = vmatprep.subr.mxu0 0.0
          %926 = vmatpush1.msra.mxu0 0.0
          %927 = vmatprep.mubr.f32.mxu0 0.0
          %928 = vmatmul.mubr.f32.gmra.mrb[0].mxu0 %v719
          %v929 = vpop.f32.mrb[0].mxu0
          %v930 = vadd.f32 %v491, %v929
          %v931 = vpop.f32.mrb[0].mxu0
          %932 = vdwg.mxu0
          %v933 = vmax.f32 %v788, 0.0
          %v934 = vmax.f32 %v790, 0.0
          %v935 = vmax.f32 %v859, 0.0
          %v936 = vmax.f32 %v861, 0.0
          %v937 = vmax.f32 %v930, 0.0
          %v938 = vld [vmem:[#allocation11] sm:$0x3]
          %v939 = vld [vmem:[#allocation12] sm:$0x1]
          %v940 = vld [vmem:[#allocation9] sm:$0xff]
          %v941 = vld [vmem:[#allocation9 + $0x8] sm:$0xff]
          %v942 = vld [vmem:[#allocation9 + $0x10] sm:$0xff]
          %v943 = vld [vmem:[#allocation9 + $0x18] sm:$0xff]
          %v944 = vld [vmem:[#allocation9 + $0x20] sm:$0xff]
          %v945 = vld [vmem:[#allocation9 + $0x28] sm:$0xff]
          %v946 = vld [vmem:[#allocation9 + $0x30] sm:$0xff]
          %v947 = vld [vmem:[#allocation9 + $0x38] sm:$0xff]
          %v948 = vld [vmem:[#allocation9 + $0x40] sm:$0xff]
          %v949 = vld [vmem:[#allocation9 + $0x48] sm:$0xff]
          %v950 = vld [vmem:[#allocation9 + $0x50] sm:$0xff]
          %v951 = vld [vmem:[#allocation9 + $0x58] sm:$0xff]
          %v952 = vld [vmem:[#allocation9 + $0x60] sm:$0xff]
          %v953 = vld [vmem:[#allocation9 + $0x68] sm:$0xff]
          %v954 = vld [vmem:[#allocation9 + $0x70] sm:$0xff]
          %v955 = vld [vmem:[#allocation9 + $0x78] sm:$0xff]
          %v956 = vld [vmem:[#allocation9 + $0x80] sm:$0xff]
          %v957 = vld [vmem:[#allocation9 + $0x88] sm:$0xff]
          %v958 = vld [vmem:[#allocation9 + $0x90] sm:$0xff]
          %v959 = vld [vmem:[#allocation9 + $0x98] sm:$0xff]
          %v960 = vld [vmem:[#allocation9 + $0xa0] sm:$0xff]
          %v961 = vld [vmem:[#allocation9 + $0xa8] sm:$0xff]
          %v962 = vld [vmem:[#allocation9 + $0xb0] sm:$0xff]
          %v963 = vld [vmem:[#allocation9 + $0xb8] sm:$0xff]
          %v964 = vld [vmem:[#allocation9 + $0xc0] sm:$0xff]
          %v965 = vld [vmem:[#allocation9 + $0xc8] sm:$0xff]
          %v966 = vld [vmem:[#allocation9 + $0xd0] sm:$0xff]
          %v967 = vld [vmem:[#allocation9 + $0xd8] sm:$0xff]
          %v968 = vld [vmem:[#allocation9 + $0xe0] sm:$0xff]
          %v969 = vld [vmem:[#allocation9 + $0xe8] sm:$0xff]
          %v970 = vld [vmem:[#allocation9 + $0xf0] sm:$0xff]
          %v971 = vld [vmem:[#allocation9 + $0xf8] sm:$0xff]
          %v972 = vld [vmem:[#allocation9 + $0x100] sm:$0xff]
          %v973 = vld [vmem:[#allocation9 + $0x108] sm:$0xff]
          %v974 = vld [vmem:[#allocation9 + $0x110] sm:$0xff]
          %v975 = vld [vmem:[#allocation9 + $0x118] sm:$0xff]
          %v976 = vld [vmem:[#allocation9 + $0x120] sm:$0xff]
          %v977 = vld [vmem:[#allocation9 + $0x128] sm:$0xff]
          %v978 = vld [vmem:[#allocation9 + $0x130] sm:$0xff]
          %v979 = vld [vmem:[#allocation9 + $0x138] sm:$0xff]
          %v980 = vld [vmem:[#allocation9 + $0x140] sm:$0xff]
          %v981 = vld [vmem:[#allocation9 + $0x148] sm:$0xff]
          %v982 = vld [vmem:[#allocation9 + $0x150] sm:$0xff]
          %v983 = vld [vmem:[#allocation9 + $0x158] sm:$0xff]
          %v984 = vld [vmem:[#allocation9 + $0x160] sm:$0xff]
          %v985 = vld [vmem:[#allocation9 + $0x168] sm:$0xff]
          %v986 = vld [vmem:[#allocation9 + $0x170] sm:$0xff]
          %v987 = vld [vmem:[#allocation9 + $0x178] sm:$0xff]
          %v988 = vld [vmem:[#allocation9 + $0x180] sm:$0xff]
          %v989 = vld [vmem:[#allocation9 + $0x188] sm:$0xff]
          %v990 = vld [vmem:[#allocation9 + $0x190] sm:$0xff]
          %v991 = vld [vmem:[#allocation9 + $0x198] sm:$0xff]
          %v992 = vld [vmem:[#allocation9 + $0x1a0] sm:$0xff]
          %v993 = vld [vmem:[#allocation9 + $0x1a8] sm:$0xff]
          %v994 = vld [vmem:[#allocation9 + $0x1b0] sm:$0xff]
          %v995 = vld [vmem:[#allocation9 + $0x1b8] sm:$0xff]
          %v996 = vld [vmem:[#allocation9 + $0x1c0] sm:$0xff]
          %v997 = vld [vmem:[#allocation9 + $0x1c8] sm:$0xff]
          %v998 = vld [vmem:[#allocation9 + $0x1d0] sm:$0xff]
          %v999 = vld [vmem:[#allocation9 + $0x1d8] sm:$0xff]
          %v1000 = vld [vmem:[#allocation9 + $0x1e0] sm:$0xff]
          %v1001 = vld [vmem:[#allocation9 + $0x1e8] sm:$0xff]
          %v1002 = vld [vmem:[#allocation9 + $0x1f0] sm:$0xff]
          %v1003 = vld [vmem:[#allocation9 + $0x1f8] sm:$0xff]
          %v1004 = vld [vmem:[#allocation9 + $0x200] sm:$0xff]
          %v1005 = vld [vmem:[#allocation9 + $0x208] sm:$0xff]
          %v1006 = vld [vmem:[#allocation9 + $0x210] sm:$0xff]
          %v1007 = vld [vmem:[#allocation9 + $0x218] sm:$0xff]
          %v1008 = vld [vmem:[#allocation9 + $0x220] sm:$0xff]
          %v1009 = vld [vmem:[#allocation9 + $0x228] sm:$0xff]
          %v1010 = vld [vmem:[#allocation9 + $0x230] sm:$0xff]
          %v1011 = vld [vmem:[#allocation9 + $0x238] sm:$0xff]
          %v1012 = vld [vmem:[#allocation9 + $0x240] sm:$0xff]
          %v1013 = vld [vmem:[#allocation9 + $0x248] sm:$0xff]
          %v1014 = vld [vmem:[#allocation9 + $0x250] sm:$0xff]
          %v1015 = vld [vmem:[#allocation9 + $0x258] sm:$0xff]
          %v1016 = vld [vmem:[#allocation9 + $0x260] sm:$0xff]
          %v1017 = vld [vmem:[#allocation9 + $0x268] sm:$0xff]
          %v1018 = vld [vmem:[#allocation9 + $0x270] sm:$0xff]
          %v1019 = vld [vmem:[#allocation9 + $0x278] sm:$0xff]
          %v1020 = vld [vmem:[#allocation9 + $0x280] sm:$0xff]
          %v1021 = vld [vmem:[#allocation9 + $0x288] sm:$0xff]
          %v1022 = vld [vmem:[#allocation9 + $0x290] sm:$0xff]
          %v1023 = vld [vmem:[#allocation9 + $0x298] sm:$0xff]
          %v1024 = vld [vmem:[#allocation9 + $0x2a0] sm:$0xff]
          %v1025 = vld [vmem:[#allocation9 + $0x2a8] sm:$0xff]
          %v1026 = vld [vmem:[#allocation9 + $0x2b0] sm:$0xff]
          %v1027 = vld [vmem:[#allocation9 + $0x2b8] sm:$0xff]
          %v1028 = vld [vmem:[#allocation9 + $0x2c0] sm:$0xff]
          %v1029 = vld [vmem:[#allocation9 + $0x2c8] sm:$0xff]
          %v1030 = vld [vmem:[#allocation9 + $0x2d0] sm:$0xff]
          %v1031 = vld [vmem:[#allocation9 + $0x2d8] sm:$0xff]
          %v1032 = vld [vmem:[#allocation9 + $0x2e0] sm:$0xff]
          %v1033 = vld [vmem:[#allocation9 + $0x2e8] sm:$0xff]
          %v1034 = vld [vmem:[#allocation9 + $0x2f0] sm:$0xff]
          %v1035 = vld [vmem:[#allocation9 + $0x2f8] sm:$0xff]
          %v1036 = vld [vmem:[#allocation9 + $0x300] sm:$0xff]
          %v1037 = vld [vmem:[#allocation9 + $0x308] sm:$0xff]
          %v1038 = vld [vmem:[#allocation9 + $0x310] sm:$0xff]
          %v1039 = vld [vmem:[#allocation9 + $0x318] sm:$0xff]
          %v1040 = vld [vmem:[#allocation9 + $0x320] sm:$0xff]
          %v1041 = vld [vmem:[#allocation9 + $0x328] sm:$0xff]
          %v1042 = vld [vmem:[#allocation9 + $0x330] sm:$0xff]
          %v1043 = vld [vmem:[#allocation9 + $0x338] sm:$0xff]
          %v1044 = vld [vmem:[#allocation9 + $0x340] sm:$0xff]
          %v1045 = vld [vmem:[#allocation9 + $0x348] sm:$0xff]
          %v1046 = vld [vmem:[#allocation9 + $0x350] sm:$0xff]
          %v1047 = vld [vmem:[#allocation9 + $0x358] sm:$0xff]
          %v1048 = vld [vmem:[#allocation9 + $0x360] sm:$0xff]
          %v1049 = vld [vmem:[#allocation9 + $0x368] sm:$0xff]
          %v1050 = vld [vmem:[#allocation9 + $0x370] sm:$0xff]
          %v1051 = vld [vmem:[#allocation9 + $0x378] sm:$0xff]
          %v1052 = vld [vmem:[#allocation9 + $0x380] sm:$0xff]
          %v1053 = vld [vmem:[#allocation9 + $0x388] sm:$0xff]
          %v1054 = vld [vmem:[#allocation9 + $0x390] sm:$0xff]
          %v1055 = vld [vmem:[#allocation9 + $0x398] sm:$0xff]
          %v1056 = vld [vmem:[#allocation9 + $0x3a0] sm:$0xff]
          %v1057 = vld [vmem:[#allocation9 + $0x3a8] sm:$0xff]
          %v1058 = vld [vmem:[#allocation9 + $0x3b0] sm:$0xff]
          %v1059 = vld [vmem:[#allocation9 + $0x3b8] sm:$0xff]
          %v1060 = vld [vmem:[#allocation9 + $0x3c0] sm:$0xff]
          %v1061 = vld [vmem:[#allocation9 + $0x3c8] sm:$0xff]
          %v1062 = vld [vmem:[#allocation9 + $0x3d0] sm:$0xff]
          %v1063 = vld [vmem:[#allocation9 + $0x3d8] sm:$0xff]
          %v1064 = vld [vmem:[#allocation9 + $0x3e0] sm:$0xff]
          %v1065 = vld [vmem:[#allocation9 + $0x3e8] sm:$0xff]
          %v1066 = vld [vmem:[#allocation9 + $0x3f0] sm:$0xff]
          %v1067 = vld [vmem:[#allocation9 + $0x3f8] sm:$0xff]
          %v1068 = vld [vmem:[#allocation9 + $0x400] sm:$0xff]
          %v1069 = vld [vmem:[#allocation9 + $0x408] sm:$0xff]
          %v1070 = vld [vmem:[#allocation9 + $0x410] sm:$0xff]
          %v1071 = vld [vmem:[#allocation9 + $0x418] sm:$0xff]
          %v1072 = vld [vmem:[#allocation9 + $0x420] sm:$0xff]
          %v1073 = vld [vmem:[#allocation9 + $0x428] sm:$0xff]
          %v1074 = vld [vmem:[#allocation9 + $0x430] sm:$0xff]
          %v1075 = vld [vmem:[#allocation9 + $0x438] sm:$0xff]
          %v1076 = vld [vmem:[#allocation9 + $0x440] sm:$0xff]
          %v1077 = vld [vmem:[#allocation9 + $0x448] sm:$0xff]
          %v1078 = vld [vmem:[#allocation9 + $0x450] sm:$0xff]
          %v1079 = vld [vmem:[#allocation9 + $0x458] sm:$0xff]
          %v1080 = vld [vmem:[#allocation9 + $0x460] sm:$0xff]
          %v1081 = vld [vmem:[#allocation9 + $0x468] sm:$0xff]
          %v1082 = vld [vmem:[#allocation9 + $0x470] sm:$0xff]
          %v1083 = vld [vmem:[#allocation9 + $0x478] sm:$0xff]
          %v1084 = vld [vmem:[#allocation9 + $0x480] sm:$0xff]
          %v1085 = vld [vmem:[#allocation9 + $0x488] sm:$0xff]
          %v1086 = vld [vmem:[#allocation9 + $0x490] sm:$0xff]
          %v1087 = vld [vmem:[#allocation9 + $0x498] sm:$0xff]
          %v1088 = vld [vmem:[#allocation9 + $0x4a0] sm:$0xff]
          %v1089 = vld [vmem:[#allocation9 + $0x4a8] sm:$0xff]
          %v1090 = vld [vmem:[#allocation9 + $0x4b0] sm:$0xff]
          %v1091 = vld [vmem:[#allocation9 + $0x4b8] sm:$0xff]
          %v1092 = vld [vmem:[#allocation9 + $0x4c0] sm:$0xff]
          %v1093 = vld [vmem:[#allocation9 + $0x4c8] sm:$0xff]
          %v1094 = vld [vmem:[#allocation9 + $0x4d0] sm:$0xff]
          %v1095 = vld [vmem:[#allocation9 + $0x4d8] sm:$0xff]
          %v1096 = vld [vmem:[#allocation9 + $0x4e0] sm:$0xff]
          %v1097 = vld [vmem:[#allocation9 + $0x4e8] sm:$0xff]
          %v1098 = vld [vmem:[#allocation9 + $0x4f0] sm:$0xff]
          %v1099 = vld [vmem:[#allocation9 + $0x4f8] sm:$0xff]
          %vm1100 = vcmask 523264
          %v1102 = vsel %vm1100, %v935, 0
          %1104 = vmatprep.subr.mxu0 %v1021
          %1105 = vmatpush1.msra.mxu0 %v1020
          %1106 = vmatprep.subr.mxu0 %v1023
          %1107 = vmatpush1.msra.mxu0 %v1022
          %1108 = vmatprep.subr.mxu0 %v1025
          %1109 = vmatpush1.msra.mxu0 %v1024
          %1110 = vmatprep.subr.mxu0 %v1027
          %1111 = vmatpush1.msra.mxu0 %v1026
          %1112 = vmatprep.subr.mxu0 %v1029
          %1113 = vmatpush1.msra.mxu0 %v1028
          %1114 = vmatprep.subr.mxu0 %v1031
          %1115 = vmatpush1.msra.mxu0 %v1030
          %1116 = vmatprep.subr.mxu0 %v1033
          %1117 = vmatpush1.msra.mxu0 %v1032
          %1118 = vmatprep.subr.mxu0 %v1035
          %1119 = vmatpush1.msra.mxu0 %v1034
          %1120 = vmatprep.subr.mxu0 %v1037
          %1121 = vmatpush1.msra.mxu0 %v1036
          %1122 = vmatprep.subr.mxu0 %v1039
          %1123 = vmatpush1.msra.mxu0 %v1038
          %1124 = vmatprep.subr.mxu0 %v1041
          %1125 = vmatpush1.msra.mxu0 %v1040
          %1126 = vmatprep.subr.mxu0 %v1043
          %1127 = vmatpush1.msra.mxu0 %v1042
          %1128 = vmatprep.subr.mxu0 %v1045
          %1129 = vmatpush1.msra.mxu0 %v1044
          %1130 = vmatprep.subr.mxu0 %v1047
          %1131 = vmatpush1.msra.mxu0 %v1046
          %1132 = vmatprep.subr.mxu0 %v1049
          %1133 = vmatpush1.msra.mxu0 %v1048
          %1134 = vmatprep.subr.mxu0 %v1051
          %1135 = vmatpush1.msra.mxu0 %v1050
          %1136 = vmatprep.subr.mxu0 %v1053
          %1137 = vmatpush1.msra.mxu0 %v1052
          %1138 = vmatprep.subr.mxu0 %v1055
          %1139 = vmatpush1.msra.mxu0 %v1054
          %1140 = vmatprep.subr.mxu0 %v1057
          %1141 = vmatpush1.msra.mxu0 %v1056
          %1142 = vmatprep.subr.mxu0 %v1059
          %1143 = vmatpush1.msra.mxu0 %v1058
          %1144 = vmatprep.subr.mxu0 %v1061
          %1145 = vmatpush1.msra.mxu0 %v1060
          %1146 = vmatprep.subr.mxu0 %v1063
          %1147 = vmatpush1.msra.mxu0 %v1062
          %1148 = vmatprep.subr.mxu0 %v1065
          %1149 = vmatpush1.msra.mxu0 %v1064
          %1150 = vmatprep.subr.mxu0 %v1067
          %1151 = vmatpush1.msra.mxu0 %v1066
          %1152 = vmatprep.subr.mxu0 %v1069
          %1153 = vmatpush1.msra.mxu0 %v1068
          %1154 = vmatprep.subr.mxu0 %v1071
          %1155 = vmatpush1.msra.mxu0 %v1070
          %1156 = vmatprep.subr.mxu0 %v1073
          %1157 = vmatpush1.msra.mxu0 %v1072
          %1158 = vmatprep.subr.mxu0 %v1075
          %1159 = vmatpush1.msra.mxu0 %v1074
          %1160 = vmatprep.subr.mxu0 %v1077
          %1161 = vmatpush1.msra.mxu0 %v1076
          %1162 = vmatprep.subr.mxu0 %v1079
          %1163 = vmatpush1.msra.mxu0 %v1078
          %1164 = vmatprep.subr.mxu0 %v1081
          %1165 = vmatpush1.msra.mxu0 %v1080
          %1166 = vmatprep.subr.mxu0 %v1083
          %1167 = vmatpush1.msra.mxu0 %v1082
          %1168 = vmatprep.mubr.f32.mxu0 %v934
          %1169 = vmatmul.mubr.f32.gmra.mrb[0].mxu0 %v933
          %v1170 = vpop.f32.mrb[0].mxu0
          %v1171 = vadd.f32 0.0, %v1170
          %v1172 = vpop.f32.mrb[0].mxu0
          %v1173 = vadd.f32 0.0, %v1172
          %1174 = vdwg.mxu0
          %1175 = vmatprep.subr.mxu0 %v1085
          %1176 = vmatpush1.msra.mxu0 %v1084
          %1177 = vmatprep.subr.mxu0 %v1087
          %1178 = vmatpush1.msra.mxu0 %v1086
          %1179 = vmatprep.subr.mxu0 %v1089
          %1180 = vmatpush1.msra.mxu0 %v1088
          %1181 = vmatprep.subr.mxu0 %v1091
          %1182 = vmatpush1.msra.mxu0 %v1090
          %1183 = vmatprep.subr.mxu0 %v1093
          %1184 = vmatpush1.msra.mxu0 %v1092
          %1185 = vmatprep.subr.mxu0 %v1095
          %1186 = vmatpush1.msra.mxu0 %v1094
          %1187 = vmatprep.subr.mxu0 %v1097
          %1188 = vmatpush1.msra.mxu0 %v1096
          %1189 = vmatprep.subr.mxu0 %v1099
          %1190 = vmatpush1.msra.mxu0 %v1098
          %1191 = vmatprep.subr.mxu0 0.0
          %1192 = vmatpush1.msra.mxu0 0.0
          %1193 = vmatprep.subr.mxu0 0.0
          %1194 = vmatpush1.msra.mxu0 0.0
          %1195 = vmatprep.subr.mxu0 0.0
          %1196 = vmatpush1.msra.mxu0 0.0
          %1197 = vmatprep.subr.mxu0 0.0
          %1198 = vmatpush1.msra.mxu0 0.0
          %1199 = vmatprep.subr.mxu0 0.0
          %1200 = vmatpush1.msra.mxu0 0.0
          %1201 = vmatprep.subr.mxu0 0.0
          %1202 = vmatpush1.msra.mxu0 0.0
          %1203 = vmatprep.subr.mxu0 0.0
          %1204 = vmatpush1.msra.mxu0 0.0
          %1205 = vmatprep.subr.mxu0 0.0
          %1206 = vmatpush1.msra.mxu0 0.0
          %1207 = vmatprep.subr.mxu0 0.0
          %1208 = vmatpush1.msra.mxu0 0.0
          %1209 = vmatprep.subr.mxu0 0.0
          %1210 = vmatpush1.msra.mxu0 0.0
          %1211 = vmatprep.subr.mxu0 0.0
          %1212 = vmatpush1.msra.mxu0 0.0
          %1213 = vmatprep.subr.mxu0 0.0
          %1214 = vmatpush1.msra.mxu0 0.0
          %1215 = vmatprep.subr.mxu0 0.0
          %1216 = vmatpush1.msra.mxu0 0.0
          %1217 = vmatprep.subr.mxu0 0.0
          %1218 = vmatpush1.msra.mxu0 0.0
          %1219 = vmatprep.subr.mxu0 0.0
          %1220 = vmatpush1.msra.mxu0 0.0
          %1221 = vmatprep.subr.mxu0 0.0
          %1222 = vmatpush1.msra.mxu0 0.0
          %1223 = vmatprep.subr.mxu0 0.0
          %1224 = vmatpush1.msra.mxu0 0.0
          %1225 = vmatprep.subr.mxu0 0.0
          %1226 = vmatpush1.msra.mxu0 0.0
          %1227 = vmatprep.subr.mxu0 0.0
          %1228 = vmatpush1.msra.mxu0 0.0
          %1229 = vmatprep.subr.mxu0 0.0
          %1230 = vmatpush1.msra.mxu0 0.0
          %1231 = vmatprep.subr.mxu0 0.0
          %1232 = vmatpush1.msra.mxu0 0.0
          %1233 = vmatprep.subr.mxu0 0.0
          %1234 = vmatpush1.msra.mxu0 0.0
          %1235 = vmatprep.subr.mxu0 0.0
          %1236 = vmatpush1.msra.mxu0 0.0
          %1237 = vmatprep.subr.mxu0 0.0
          %1238 = vmatpush1.msra.mxu0 0.0
          %1239 = vmatprep.mubr.f32.mxu0 0.0
          %1240 = vmatmul.mubr.f32.gmra.mrb[0].mxu0 %v1102
          %v1241 = vpop.f32.mrb[0].mxu0
          %v1242 = vadd.f32 %v1171, %v1241
          %v1243 = vpop.f32.mrb[0].mxu0
          %v1244 = vadd.f32 %v1173, %v1243
          %1245 = vdwg.mxu0
          %v1247 = vsel %vm1100, %v715, 0
          %1249 = vmatprep.subr.mxu0 %v941
          %1250 = vmatpush1.msra.mxu0 %v940
          %1251 = vmatprep.subr.mxu0 %v943
          %1252 = vmatpush1.msra.mxu0 %v942
          %1253 = vmatprep.subr.mxu0 %v945
          %1254 = vmatpush1.msra.mxu0 %v944
          %1255 = vmatprep.subr.mxu0 %v947
          %1256 = vmatpush1.msra.mxu0 %v946
          %1257 = vmatprep.subr.mxu0 %v949
          %1258 = vmatpush1.msra.mxu0 %v948
          %1259 = vmatprep.subr.mxu0 %v951
          %1260 = vmatpush1.msra.mxu0 %v950
          %1261 = vmatprep.subr.mxu0 %v953
          %1262 = vmatpush1.msra.mxu0 %v952
          %1263 = vmatprep.subr.mxu0 %v955
          %1264 = vmatpush1.msra.mxu0 %v954
          %1265 = vmatprep.subr.mxu0 %v957
          %1266 = vmatpush1.msra.mxu0 %v956
          %1267 = vmatprep.subr.mxu0 %v959
          %1268 = vmatpush1.msra.mxu0 %v958
          %1269 = vmatprep.subr.mxu0 %v961
          %1270 = vmatpush1.msra.mxu0 %v960
          %1271 = vmatprep.subr.mxu0 %v963
          %1272 = vmatpush1.msra.mxu0 %v962
          %1273 = vmatprep.subr.mxu0 %v965
          %1274 = vmatpush1.msra.mxu0 %v964
          %1275 = vmatprep.subr.mxu0 %v967
          %1276 = vmatpush1.msra.mxu0 %v966
          %1277 = vmatprep.subr.mxu0 %v969
          %1278 = vmatpush1.msra.mxu0 %v968
          %1279 = vmatprep.subr.mxu0 %v971
          %1280 = vmatpush1.msra.mxu0 %v970
          %1281 = vmatprep.subr.mxu0 %v973
          %1282 = vmatpush1.msra.mxu0 %v972
          %1283 = vmatprep.subr.mxu0 %v975
          %1284 = vmatpush1.msra.mxu0 %v974
          %1285 = vmatprep.subr.mxu0 %v977
          %1286 = vmatpush1.msra.mxu0 %v976
          %1287 = vmatprep.subr.mxu0 %v979
          %1288 = vmatpush1.msra.mxu0 %v978
          %1289 = vmatprep.subr.mxu0 %v981
          %1290 = vmatpush1.msra.mxu0 %v980
          %1291 = vmatprep.subr.mxu0 %v983
          %1292 = vmatpush1.msra.mxu0 %v982
          %1293 = vmatprep.subr.mxu0 %v985
          %1294 = vmatpush1.msra.mxu0 %v984
          %1295 = vmatprep.subr.mxu0 %v987
          %1296 = vmatpush1.msra.mxu0 %v986
          %1297 = vmatprep.subr.mxu0 %v989
          %1298 = vmatpush1.msra.mxu0 %v988
          %1299 = vmatprep.subr.mxu0 %v991
          %1300 = vmatpush1.msra.mxu0 %v990
          %1301 = vmatprep.subr.mxu0 %v993
          %1302 = vmatpush1.msra.mxu0 %v992
          %1303 = vmatprep.subr.mxu0 %v995
          %1304 = vmatpush1.msra.mxu0 %v994
          %1305 = vmatprep.subr.mxu0 %v997
          %1306 = vmatpush1.msra.mxu0 %v996
          %1307 = vmatprep.subr.mxu0 %v999
          %1308 = vmatpush1.msra.mxu0 %v998
          %1309 = vmatprep.subr.mxu0 %v1001
          %1310 = vmatpush1.msra.mxu0 %v1000
          %1311 = vmatprep.subr.mxu0 %v1003
          %1312 = vmatpush1.msra.mxu0 %v1002
          %1313 = vmatprep.mubr.f32.mxu0 %v714
          %1314 = vmatmul.mubr.f32.gmra.mrb[0].mxu0 %v713
          %v1315 = vpop.f32.mrb[0].mxu0
          %v1316 = vadd.f32 %v1242, %v1315
          %v1317 = vpop.f32.mrb[0].mxu0
          %v1318 = vadd.f32 %v1244, %v1317
          %1319 = vdwg.mxu0
          %1320 = vmatprep.subr.mxu0 %v1005
          %1321 = vmatpush1.msra.mxu0 %v1004
          %1322 = vmatprep.subr.mxu0 %v1007
          %1323 = vmatpush1.msra.mxu0 %v1006
          %1324 = vmatprep.subr.mxu0 %v1009
          %1325 = vmatpush1.msra.mxu0 %v1008
          %1326 = vmatprep.subr.mxu0 %v1011
          %1327 = vmatpush1.msra.mxu0 %v1010
          %1328 = vmatprep.subr.mxu0 %v1013
          %1329 = vmatpush1.msra.mxu0 %v1012
          %1330 = vmatprep.subr.mxu0 %v1015
          %1331 = vmatpush1.msra.mxu0 %v1014
          %1332 = vmatprep.subr.mxu0 %v1017
          %1333 = vmatpush1.msra.mxu0 %v1016
          %1334 = vmatprep.subr.mxu0 %v1019
          %1335 = vmatpush1.msra.mxu0 %v1018
          %1336 = vmatprep.subr.mxu0 0.0
          %1337 = vmatpush1.msra.mxu0 0.0
          %1338 = vmatprep.subr.mxu0 0.0
          %1339 = vmatpush1.msra.mxu0 0.0
          %1340 = vmatprep.subr.mxu0 0.0
          %1341 = vmatpush1.msra.mxu0 0.0
          %1342 = vmatprep.subr.mxu0 0.0
          %1343 = vmatpush1.msra.mxu0 0.0
          %1344 = vmatprep.subr.mxu0 0.0
          %1345 = vmatpush1.msra.mxu0 0.0
          %1346 = vmatprep.subr.mxu0 0.0
          %1347 = vmatpush1.msra.mxu0 0.0
          %1348 = vmatprep.subr.mxu0 0.0
          %1349 = vmatpush1.msra.mxu0 0.0
          %1350 = vmatprep.subr.mxu0 0.0
          %1351 = vmatpush1.msra.mxu0 0.0
          %1352 = vmatprep.subr.mxu0 0.0
          %1353 = vmatpush1.msra.mxu0 0.0
          %1354 = vmatprep.subr.mxu0 0.0
          %1355 = vmatpush1.msra.mxu0 0.0
          %1356 = vmatprep.subr.mxu0 0.0
          %1357 = vmatpush1.msra.mxu0 0.0
          %1358 = vmatprep.subr.mxu0 0.0
          %1359 = vmatpush1.msra.mxu0 0.0
          %1360 = vmatprep.subr.mxu0 0.0
          %1361 = vmatpush1.msra.mxu0 0.0
          %1362 = vmatprep.subr.mxu0 0.0
          %1363 = vmatpush1.msra.mxu0 0.0
          %1364 = vmatprep.subr.mxu0 0.0
          %1365 = vmatpush1.msra.mxu0 0.0
          %1366 = vmatprep.subr.mxu0 0.0
          %1367 = vmatpush1.msra.mxu0 0.0
          %1368 = vmatprep.subr.mxu0 0.0
          %1369 = vmatpush1.msra.mxu0 0.0
          %1370 = vmatprep.subr.mxu0 0.0
          %1371 = vmatpush1.msra.mxu0 0.0
          %1372 = vmatprep.subr.mxu0 0.0
          %1373 = vmatpush1.msra.mxu0 0.0
          %1374 = vmatprep.subr.mxu0 0.0
          %1375 = vmatpush1.msra.mxu0 0.0
          %1376 = vmatprep.subr.mxu0 0.0
          %1377 = vmatpush1.msra.mxu0 0.0
          %1378 = vmatprep.subr.mxu0 0.0
          %1379 = vmatpush1.msra.mxu0 0.0
          %1380 = vmatprep.subr.mxu0 0.0
          %1381 = vmatpush1.msra.mxu0 0.0
          %1382 = vmatprep.subr.mxu0 0.0
          %1383 = vmatpush1.msra.mxu0 0.0
          %1384 = vmatprep.mubr.f32.mxu0 0.0
          %1385 = vmatmul.mubr.f32.gmra.mrb[0].mxu0 %v1247
          %v1386 = vpop.f32.mrb[0].mxu0
          %v1387 = vadd.f32 %v1316, %v1386
          %v1388 = vpop.f32.mrb[0].mxu0
          %v1389 = vadd.f32 %v1318, %v1388
          %1390 = vdwg.mxu0
          %v1391 = vld [vmem:[#allocation9 + $0x500] sm:$0xff]
          %v1392 = vld [vmem:[#allocation9 + $0x508] sm:$0xff]
          %v1393 = vld [vmem:[#allocation9 + $0x510] sm:$0xff]
          %v1394 = vld [vmem:[#allocation9 + $0x518] sm:$0xff]
          %v1395 = vld [vmem:[#allocation9 + $0x520] sm:$0xff]
          %v1396 = vld [vmem:[#allocation9 + $0x528] sm:$0xff]
          %v1397 = vld [vmem:[#allocation9 + $0x530] sm:$0xff]
          %v1398 = vld [vmem:[#allocation9 + $0x538] sm:$0xff]
          %v1399 = vld [vmem:[#allocation9 + $0x540] sm:$0xff]
          %v1400 = vld [vmem:[#allocation9 + $0x548] sm:$0xff]
          %v1401 = vld [vmem:[#allocation9 + $0x550] sm:$0xff]
          %v1402 = vld [vmem:[#allocation9 + $0x558] sm:$0xff]
          %v1403 = vld [vmem:[#allocation9 + $0x560] sm:$0xff]
          %v1404 = vld [vmem:[#allocation9 + $0x568] sm:$0xff]
          %v1405 = vld [vmem:[#allocation9 + $0x570] sm:$0xff]
          %v1406 = vld [vmem:[#allocation9 + $0x578] sm:$0xff]
          %v1407 = vld [vmem:[#allocation9 + $0x580] sm:$0xff]
          %v1408 = vld [vmem:[#allocation9 + $0x588] sm:$0xff]
          %v1409 = vld [vmem:[#allocation9 + $0x590] sm:$0xff]
          %v1410 = vld [vmem:[#allocation9 + $0x598] sm:$0xff]
          %v1411 = vld [vmem:[#allocation9 + $0x5a0] sm:$0xff]
          %v1412 = vld [vmem:[#allocation9 + $0x5a8] sm:$0xff]
          %v1413 = vld [vmem:[#allocation9 + $0x5b0] sm:$0xff]
          %v1414 = vld [vmem:[#allocation9 + $0x5b8] sm:$0xff]
          %v1415 = vld [vmem:[#allocation9 + $0x5c0] sm:$0xff]
          %v1416 = vld [vmem:[#allocation9 + $0x5c8] sm:$0xff]
          %v1417 = vld [vmem:[#allocation9 + $0x5d0] sm:$0xff]
          %v1418 = vld [vmem:[#allocation9 + $0x5d8] sm:$0xff]
          %v1419 = vld [vmem:[#allocation9 + $0x5e0] sm:$0xff]
          %v1420 = vld [vmem:[#allocation9 + $0x5e8] sm:$0xff]
          %v1421 = vld [vmem:[#allocation9 + $0x5f0] sm:$0xff]
          %v1422 = vld [vmem:[#allocation9 + $0x5f8] sm:$0xff]
          %v1423 = vld [vmem:[#allocation9 + $0x600] sm:$0xff]
          %v1424 = vld [vmem:[#allocation9 + $0x608] sm:$0xff]
          %v1425 = vld [vmem:[#allocation9 + $0x610] sm:$0xff]
          %v1426 = vld [vmem:[#allocation9 + $0x618] sm:$0xff]
          %v1427 = vld [vmem:[#allocation9 + $0x620] sm:$0xff]
          %v1428 = vld [vmem:[#allocation9 + $0x628] sm:$0xff]
          %v1429 = vld [vmem:[#allocation9 + $0x630] sm:$0xff]
          %v1430 = vld [vmem:[#allocation9 + $0x638] sm:$0xff]
          %v1431 = vld [vmem:[#allocation9 + $0x640] sm:$0xff]
          %v1432 = vld [vmem:[#allocation9 + $0x648] sm:$0xff]
          %v1433 = vld [vmem:[#allocation9 + $0x650] sm:$0xff]
          %v1434 = vld [vmem:[#allocation9 + $0x658] sm:$0xff]
          %v1435 = vld [vmem:[#allocation9 + $0x660] sm:$0xff]
          %v1436 = vld [vmem:[#allocation9 + $0x668] sm:$0xff]
          %v1437 = vld [vmem:[#allocation9 + $0x670] sm:$0xff]
          %v1438 = vld [vmem:[#allocation9 + $0x678] sm:$0xff]
          %v1439 = vld [vmem:[#allocation9 + $0x680] sm:$0xff]
          %v1440 = vld [vmem:[#allocation9 + $0x688] sm:$0xff]
          %v1441 = vld [vmem:[#allocation9 + $0x690] sm:$0xff]
          %v1442 = vld [vmem:[#allocation9 + $0x698] sm:$0xff]
          %v1443 = vld [vmem:[#allocation9 + $0x6a0] sm:$0xff]
          %v1444 = vld [vmem:[#allocation9 + $0x6a8] sm:$0xff]
          %v1445 = vld [vmem:[#allocation9 + $0x6b0] sm:$0xff]
          %v1446 = vld [vmem:[#allocation9 + $0x6b8] sm:$0xff]
          %v1447 = vld [vmem:[#allocation9 + $0x6c0] sm:$0xff]
          %v1448 = vld [vmem:[#allocation9 + $0x6c8] sm:$0xff]
          %v1449 = vld [vmem:[#allocation9 + $0x6d0] sm:$0xff]
          %v1450 = vld [vmem:[#allocation9 + $0x6d8] sm:$0xff]
          %v1451 = vld [vmem:[#allocation9 + $0x6e0] sm:$0xff]
          %v1452 = vld [vmem:[#allocation9 + $0x6e8] sm:$0xff]
          %v1453 = vld [vmem:[#allocation9 + $0x6f0] sm:$0xff]
          %v1454 = vld [vmem:[#allocation9 + $0x6f8] sm:$0xff]
          %v1455 = vld [vmem:[#allocation9 + $0x700] sm:$0xff]
          %v1456 = vld [vmem:[#allocation9 + $0x708] sm:$0xff]
          %v1457 = vld [vmem:[#allocation9 + $0x710] sm:$0xff]
          %v1458 = vld [vmem:[#allocation9 + $0x718] sm:$0xff]
          %v1459 = vld [vmem:[#allocation9 + $0x720] sm:$0xff]
          %v1460 = vld [vmem:[#allocation9 + $0x728] sm:$0xff]
          %v1461 = vld [vmem:[#allocation9 + $0x730] sm:$0xff]
          %v1462 = vld [vmem:[#allocation9 + $0x738] sm:$0xff]
          %v1463 = vld [vmem:[#allocation9 + $0x740] sm:$0xff]
          %v1464 = vld [vmem:[#allocation9 + $0x748] sm:$0xff]
          %v1465 = vld [vmem:[#allocation9 + $0x750] sm:$0xff]
          %v1466 = vld [vmem:[#allocation9 + $0x758] sm:$0xff]
          %v1467 = vld [vmem:[#allocation9 + $0x760] sm:$0xff]
          %v1468 = vld [vmem:[#allocation9 + $0x768] sm:$0xff]
          %v1469 = vld [vmem:[#allocation9 + $0x770] sm:$0xff]
          %v1470 = vld [vmem:[#allocation9 + $0x778] sm:$0xff]
          %v1473 = vrot.slane %v713, 1
          %v1474 = vrot.slane %v714, 1
          %v1475 = vrot.slane %v715, 1
          %v1478 = vsel %vm1100, %v1475, 0
          %1480 = vmatprep.subr.mxu0 %v1392
          %1481 = vmatpush1.msra.mxu0 %v1391
          %1482 = vmatprep.subr.mxu0 %v1394
          %1483 = vmatpush1.msra.mxu0 %v1393
          %1484 = vmatprep.subr.mxu0 %v1396
          %1485 = vmatpush1.msra.mxu0 %v1395
          %1486 = vmatprep.subr.mxu0 %v1398
          %1487 = vmatpush1.msra.mxu0 %v1397
          %1488 = vmatprep.subr.mxu0 %v1400
          %1489 = vmatpush1.msra.mxu0 %v1399
          %1490 = vmatprep.subr.mxu0 %v1402
          %1491 = vmatpush1.msra.mxu0 %v1401
          %1492 = vmatprep.subr.mxu0 %v1404
          %1493 = vmatpush1.msra.mxu0 %v1403
          %1494 = vmatprep.subr.mxu0 %v1406
          %1495 = vmatpush1.msra.mxu0 %v1405
          %1496 = vmatprep.subr.mxu0 %v1408
          %1497 = vmatpush1.msra.mxu0 %v1407
          %1498 = vmatprep.subr.mxu0 %v1410
          %1499 = vmatpush1.msra.mxu0 %v1409
          %1500 = vmatprep.subr.mxu0 %v1412
          %1501 = vmatpush1.msra.mxu0 %v1411
          %1502 = vmatprep.subr.mxu0 %v1414
          %1503 = vmatpush1.msra.mxu0 %v1413
          %1504 = vmatprep.subr.mxu0 %v1416
          %1505 = vmatpush1.msra.mxu0 %v1415
          %1506 = vmatprep.subr.mxu0 %v1418
          %1507 = vmatpush1.msra.mxu0 %v1417
          %1508 = vmatprep.subr.mxu0 %v1420
          %1509 = vmatpush1.msra.mxu0 %v1419
          %1510 = vmatprep.subr.mxu0 %v1422
          %1511 = vmatpush1.msra.mxu0 %v1421
          %1512 = vmatprep.subr.mxu0 %v1424
          %1513 = vmatpush1.msra.mxu0 %v1423
          %1514 = vmatprep.subr.mxu0 %v1426
          %1515 = vmatpush1.msra.mxu0 %v1425
          %1516 = vmatprep.subr.mxu0 %v1428
          %1517 = vmatpush1.msra.mxu0 %v1427
          %1518 = vmatprep.subr.mxu0 %v1430
          %1519 = vmatpush1.msra.mxu0 %v1429
          %1520 = vmatprep.subr.mxu0 %v1432
          %1521 = vmatpush1.msra.mxu0 %v1431
          %1522 = vmatprep.subr.mxu0 %v1434
          %1523 = vmatpush1.msra.mxu0 %v1433
          %1524 = vmatprep.subr.mxu0 %v1436
          %1525 = vmatpush1.msra.mxu0 %v1435
          %1526 = vmatprep.subr.mxu0 %v1438
          %1527 = vmatpush1.msra.mxu0 %v1437
          %1528 = vmatprep.subr.mxu0 %v1440
          %1529 = vmatpush1.msra.mxu0 %v1439
          %1530 = vmatprep.subr.mxu0 %v1442
          %1531 = vmatpush1.msra.mxu0 %v1441
          %1532 = vmatprep.subr.mxu0 %v1444
          %1533 = vmatpush1.msra.mxu0 %v1443
          %1534 = vmatprep.subr.mxu0 %v1446
          %1535 = vmatpush1.msra.mxu0 %v1445
          %1536 = vmatprep.subr.mxu0 %v1448
          %1537 = vmatpush1.msra.mxu0 %v1447
          %1538 = vmatprep.subr.mxu0 %v1450
          %1539 = vmatpush1.msra.mxu0 %v1449
          %1540 = vmatprep.subr.mxu0 %v1452
          %1541 = vmatpush1.msra.mxu0 %v1451
          %1542 = vmatprep.subr.mxu0 %v1454
          %1543 = vmatpush1.msra.mxu0 %v1453
          %1544 = vmatprep.mubr.f32.mxu0 %v1474
          %1545 = vmatmul.mubr.f32.gmra.mrb[0].mxu0 %v1473
          %v1546 = vpop.f32.mrb[0].mxu0
          %v1547 = vadd.f32 0.0, %v1546
          %v1548 = vpop.f32.mrb[0].mxu0
          %v1549 = vadd.f32 0.0, %v1548
          %1550 = vdwg.mxu0
          %1551 = vmatprep.subr.mxu0 %v1456
          %1552 = vmatpush1.msra.mxu0 %v1455
          %1553 = vmatprep.subr.mxu0 %v1458
          %1554 = vmatpush1.msra.mxu0 %v1457
          %1555 = vmatprep.subr.mxu0 %v1460
          %1556 = vmatpush1.msra.mxu0 %v1459
          %1557 = vmatprep.subr.mxu0 %v1462
          %1558 = vmatpush1.msra.mxu0 %v1461
          %1559 = vmatprep.subr.mxu0 %v1464
          %1560 = vmatpush1.msra.mxu0 %v1463
          %1561 = vmatprep.subr.mxu0 %v1466
          %1562 = vmatpush1.msra.mxu0 %v1465
          %1563 = vmatprep.subr.mxu0 %v1468
          %1564 = vmatpush1.msra.mxu0 %v1467
          %1565 = vmatprep.subr.mxu0 %v1470
          %1566 = vmatpush1.msra.mxu0 %v1469
          %1567 = vmatprep.subr.mxu0 0.0
          %1568 = vmatpush1.msra.mxu0 0.0
          %1569 = vmatprep.subr.mxu0 0.0
          %1570 = vmatpush1.msra.mxu0 0.0
          %1571 = vmatprep.subr.mxu0 0.0
          %1572 = vmatpush1.msra.mxu0 0.0
          %1573 = vmatprep.subr.mxu0 0.0
          %1574 = vmatpush1.msra.mxu0 0.0
          %1575 = vmatprep.subr.mxu0 0.0
          %1576 = vmatpush1.msra.mxu0 0.0
          %1577 = vmatprep.subr.mxu0 0.0
          %1578 = vmatpush1.msra.mxu0 0.0
          %1579 = vmatprep.subr.mxu0 0.0
          %1580 = vmatpush1.msra.mxu0 0.0
          %1581 = vmatprep.subr.mxu0 0.0
          %1582 = vmatpush1.msra.mxu0 0.0
          %1583 = vmatprep.subr.mxu0 0.0
          %1584 = vmatpush1.msra.mxu0 0.0
          %1585 = vmatprep.subr.mxu0 0.0
          %1586 = vmatpush1.msra.mxu0 0.0
          %1587 = vmatprep.subr.mxu0 0.0
          %1588 = vmatpush1.msra.mxu0 0.0
          %1589 = vmatprep.subr.mxu0 0.0
          %1590 = vmatpush1.msra.mxu0 0.0
          %1591 = vmatprep.subr.mxu0 0.0
          %1592 = vmatpush1.msra.mxu0 0.0
          %1593 = vmatprep.subr.mxu0 0.0
          %1594 = vmatpush1.msra.mxu0 0.0
          %1595 = vmatprep.subr.mxu0 0.0
          %1596 = vmatpush1.msra.mxu0 0.0
          %1597 = vmatprep.subr.mxu0 0.0
          %1598 = vmatpush1.msra.mxu0 0.0
          %1599 = vmatprep.subr.mxu0 0.0
          %1600 = vmatpush1.msra.mxu0 0.0
          %1601 = vmatprep.subr.mxu0 0.0
          %1602 = vmatpush1.msra.mxu0 0.0
          %1603 = vmatprep.subr.mxu0 0.0
          %1604 = vmatpush1.msra.mxu0 0.0
          %1605 = vmatprep.subr.mxu0 0.0
          %1606 = vmatpush1.msra.mxu0 0.0
          %1607 = vmatprep.subr.mxu0 0.0
          %1608 = vmatpush1.msra.mxu0 0.0
          %1609 = vmatprep.subr.mxu0 0.0
          %1610 = vmatpush1.msra.mxu0 0.0
          %1611 = vmatprep.subr.mxu0 0.0
          %1612 = vmatpush1.msra.mxu0 0.0
          %1613 = vmatprep.subr.mxu0 0.0
          %1614 = vmatpush1.msra.mxu0 0.0
          %1615 = vmatprep.mubr.f32.mxu0 0.0
          %1616 = vmatmul.mubr.f32.gmra.mrb[0].mxu0 %v1478
          %v1617 = vpop.f32.mrb[0].mxu0
          %v1618 = vadd.f32 %v1547, %v1617
          %v1619 = vpop.f32.mrb[0].mxu0
          %v1620 = vadd.f32 %v1549, %v1619
          %1621 = vdwg.mxu0
          %v1622 = vadd.f32 %v1387, %v1618
          %v1623 = vadd.f32 %v1389, %v1620
          %v1625 = vlaneseq
          %v1626 = vshrl.u32 %v1625, 7
          %v1627 = vsub.s32 0, %v1626
          %v1628 = vrot.slane %v938, %v1627
          %v1629 = vlaneseq
          %v1630 = vshrl.u32 %v1629, 7
          %v1631 = vsub.s32 1, %v1630
          %v1632 = vrot.slane %v938, %v1631
          %v1635 = vadd.f32 %v1622, %v1628
          %v1636 = vadd.f32 %v1623, %v1632
          %v1637 = vmax.f32 %v1635, 0.0
          %v1638 = vmax.f32 %v1636, 0.0
          %v1639 = vld [vmem:[%s7] sm:$0xff]
          %v1640 = vld [vmem:[%s7 + $0x8] sm:$0xff]
          %v1641 = vld [vmem:[%s7 + $0x10] sm:$0xff]
          %v1642 = vld [vmem:[%s7 + $0x18] sm:$0xff]
          %v1643 = vld [vmem:[%s7 + $0x20] sm:$0xff]
          %v1644 = vld [vmem:[%s7 + $0x28] sm:$0xff]
          %v1645 = vld [vmem:[%s7 + $0x30] sm:$0xff]
          %v1646 = vld [vmem:[%s7 + $0x38] sm:$0xff]
          %v1647 = vld [vmem:[%s7 + $0x40] sm:$0xff]
          %v1648 = vld [vmem:[%s7 + $0x48] sm:$0xff]
          %v1649 = vld [vmem:[%s7 + $0x50] sm:$0xff]
          %v1650 = vld [vmem:[%s7 + $0x58] sm:$0xff]
          %v1651 = vld [vmem:[%s7 + $0x60] sm:$0xff]
          %v1652 = vld [vmem:[%s7 + $0x68] sm:$0xff]
          %v1653 = vld [vmem:[%s7 + $0x70] sm:$0xff]
          %v1654 = vld [vmem:[%s7 + $0x78] sm:$0xff]
          %v1655 = vld [vmem:[%s7 + $0x80] sm:$0xff]
          %v1656 = vld [vmem:[%s7 + $0x88] sm:$0xff]
          %v1657 = vld [vmem:[%s7 + $0x90] sm:$0xff]
          %v1658 = vld [vmem:[%s7 + $0x98] sm:$0xff]
          %v1659 = vld [vmem:[%s7 + $0xa0] sm:$0xff]
          %v1660 = vld [vmem:[%s7 + $0xa8] sm:$0xff]
          %v1661 = vld [vmem:[%s7 + $0xb0] sm:$0xff]
          %v1662 = vld [vmem:[%s7 + $0xb8] sm:$0xff]
          %v1663 = vld [vmem:[%s7 + $0xc0] sm:$0xff]
          %v1664 = vld [vmem:[%s7 + $0xc8] sm:$0xff]
          %v1665 = vld [vmem:[%s7 + $0xd0] sm:$0xff]
          %v1666 = vld [vmem:[%s7 + $0xd8] sm:$0xff]
          %v1667 = vld [vmem:[%s7 + $0xe0] sm:$0xff]
          %v1668 = vld [vmem:[%s7 + $0xe8] sm:$0xff]
          %v1669 = vld [vmem:[%s7 + $0xf0] sm:$0xff]
          %v1670 = vld [vmem:[%s7 + $0xf8] sm:$0xff]
          %s1671 = scalar_lea.vmem [#allocation9], 1920
          %v1672 = vld [vmem:[%s1671] sm:$0xff]
          %v1673 = vld [vmem:[%s1671 + $0x8] sm:$0xff]
          %v1674 = vld [vmem:[%s1671 + $0x10] sm:$0xff]
          %v1675 = vld [vmem:[%s1671 + $0x18] sm:$0xff]
          %v1676 = vld [vmem:[%s1671 + $0x20] sm:$0xff]
          %v1677 = vld [vmem:[%s1671 + $0x28] sm:$0xff]
          %v1678 = vld [vmem:[%s1671 + $0x30] sm:$0xff]
          %v1679 = vld [vmem:[%s1671 + $0x38] sm:$0xff]
          %v1680 = vld [vmem:[%s1671 + $0x40] sm:$0xff]
          %v1681 = vld [vmem:[%s1671 + $0x48] sm:$0xff]
          %v1682 = vld [vmem:[%s1671 + $0x50] sm:$0xff]
          %v1683 = vld [vmem:[%s1671 + $0x58] sm:$0xff]
          %v1684 = vld [vmem:[%s1671 + $0x60] sm:$0xff]
          %v1685 = vld [vmem:[%s1671 + $0x68] sm:$0xff]
          %v1686 = vld [vmem:[%s1671 + $0x70] sm:$0xff]
          %v1687 = vld [vmem:[%s1671 + $0x78] sm:$0xff]
          %v1688 = vld [vmem:[%s1671 + $0x80] sm:$0xff]
          %v1689 = vld [vmem:[%s1671 + $0x88] sm:$0xff]
          %v1690 = vld [vmem:[%s1671 + $0x90] sm:$0xff]
          %v1691 = vld [vmem:[%s1671 + $0x98] sm:$0xff]
          %v1692 = vld [vmem:[%s1671 + $0xa0] sm:$0xff]
          %v1693 = vld [vmem:[%s1671 + $0xa8] sm:$0xff]
          %v1694 = vld [vmem:[%s1671 + $0xb0] sm:$0xff]
          %v1695 = vld [vmem:[%s1671 + $0xb8] sm:$0xff]
          %v1696 = vld [vmem:[%s1671 + $0xc0] sm:$0xff]
          %v1697 = vld [vmem:[%s1671 + $0xc8] sm:$0xff]
          %v1698 = vld [vmem:[%s1671 + $0xd0] sm:$0xff]
          %v1699 = vld [vmem:[%s1671 + $0xd8] sm:$0xff]
          %v1700 = vld [vmem:[%s1671 + $0xe0] sm:$0xff]
          %v1701 = vld [vmem:[%s1671 + $0xe8] sm:$0xff]
          %v1702 = vld [vmem:[%s1671 + $0xf0] sm:$0xff]
          %v1703 = vld [vmem:[%s1671 + $0xf8] sm:$0xff]
          %v1704 = vld [vmem:[%s1671 + $0x100] sm:$0xff]
          %v1705 = vld [vmem:[%s1671 + $0x108] sm:$0xff]
          %v1706 = vld [vmem:[%s1671 + $0x110] sm:$0xff]
          %v1707 = vld [vmem:[%s1671 + $0x118] sm:$0xff]
          %v1708 = vld [vmem:[%s1671 + $0x120] sm:$0xff]
          %v1709 = vld [vmem:[%s1671 + $0x128] sm:$0xff]
          %v1710 = vld [vmem:[%s1671 + $0x130] sm:$0xff]
          %v1711 = vld [vmem:[%s1671 + $0x138] sm:$0xff]
          %v1712 = vld [vmem:[%s1671 + $0x140] sm:$0xff]
          %v1713 = vld [vmem:[%s1671 + $0x148] sm:$0xff]
          %v1714 = vld [vmem:[%s1671 + $0x150] sm:$0xff]
          %v1715 = vld [vmem:[%s1671 + $0x158] sm:$0xff]
          %v1716 = vld [vmem:[%s1671 + $0x160] sm:$0xff]
          %v1717 = vld [vmem:[%s1671 + $0x168] sm:$0xff]
          %v1718 = vld [vmem:[%s1671 + $0x170] sm:$0xff]
          %v1719 = vld [vmem:[%s1671 + $0x178] sm:$0xff]
          %v1720 = vld [vmem:[%s1671 + $0x180] sm:$0xff]
          %v1721 = vld [vmem:[%s1671 + $0x188] sm:$0xff]
          %v1722 = vld [vmem:[%s1671 + $0x190] sm:$0xff]
          %v1723 = vld [vmem:[%s1671 + $0x198] sm:$0xff]
          %v1724 = vld [vmem:[%s1671 + $0x1a0] sm:$0xff]
          %v1725 = vld [vmem:[%s1671 + $0x1a8] sm:$0xff]
          %v1726 = vld [vmem:[%s1671 + $0x1b0] sm:$0xff]
          %v1727 = vld [vmem:[%s1671 + $0x1b8] sm:$0xff]
          %v1728 = vld [vmem:[%s1671 + $0x1c0] sm:$0xff]
          %v1729 = vld [vmem:[%s1671 + $0x1c8] sm:$0xff]
          %v1730 = vld [vmem:[%s1671 + $0x1d0] sm:$0xff]
          %v1731 = vld [vmem:[%s1671 + $0x1d8] sm:$0xff]
          %v1732 = vld [vmem:[%s1671 + $0x1e0] sm:$0xff]
          %v1733 = vld [vmem:[%s1671 + $0x1e8] sm:$0xff]
          %v1734 = vld [vmem:[%s1671 + $0x1f0] sm:$0xff]
          %v1735 = vld [vmem:[%s1671 + $0x1f8] sm:$0xff]
          %v1736 = vld [vmem:[%s1671 + $0x200] sm:$0xff]
          %v1737 = vld [vmem:[%s1671 + $0x208] sm:$0xff]
          %v1738 = vld [vmem:[%s1671 + $0x210] sm:$0xff]
          %v1739 = vld [vmem:[%s1671 + $0x218] sm:$0xff]
          %v1740 = vld [vmem:[%s1671 + $0x220] sm:$0xff]
          %v1741 = vld [vmem:[%s1671 + $0x228] sm:$0xff]
          %v1742 = vld [vmem:[%s1671 + $0x230] sm:$0xff]
          %v1743 = vld [vmem:[%s1671 + $0x238] sm:$0xff]
          %v1744 = vld [vmem:[%s1671 + $0x240] sm:$0xff]
          %v1745 = vld [vmem:[%s1671 + $0x248] sm:$0xff]
          %v1746 = vld [vmem:[%s1671 + $0x250] sm:$0xff]
          %v1747 = vld [vmem:[%s1671 + $0x258] sm:$0xff]
          %v1748 = vld [vmem:[%s1671 + $0x260] sm:$0xff]
          %v1749 = vld [vmem:[%s1671 + $0x268] sm:$0xff]
          %v1750 = vld [vmem:[%s1671 + $0x270] sm:$0xff]
          %v1751 = vld [vmem:[%s1671 + $0x278] sm:$0xff]
          %v1752 = vld [vmem:[%s1671 + $0x280] sm:$0xff]
          %v1753 = vld [vmem:[%s1671 + $0x288] sm:$0xff]
          %v1754 = vld [vmem:[%s1671 + $0x290] sm:$0xff]
          %v1755 = vld [vmem:[%s1671 + $0x298] sm:$0xff]
          %v1756 = vld [vmem:[%s1671 + $0x2a0] sm:$0xff]
          %v1757 = vld [vmem:[%s1671 + $0x2a8] sm:$0xff]
          %v1758 = vld [vmem:[%s1671 + $0x2b0] sm:$0xff]
          %v1759 = vld [vmem:[%s1671 + $0x2b8] sm:$0xff]
          %v1760 = vld [vmem:[%s1671 + $0x2c0] sm:$0xff]
          %v1761 = vld [vmem:[%s1671 + $0x2c8] sm:$0xff]
          %v1762 = vld [vmem:[%s1671 + $0x2d0] sm:$0xff]
          %v1763 = vld [vmem:[%s1671 + $0x2d8] sm:$0xff]
          %v1764 = vld [vmem:[%s1671 + $0x2e0] sm:$0xff]
          %v1765 = vld [vmem:[%s1671 + $0x2e8] sm:$0xff]
          %v1766 = vld [vmem:[%s1671 + $0x2f0] sm:$0xff]
          %v1767 = vld [vmem:[%s1671 + $0x2f8] sm:$0xff]
          %v1768 = vld [vmem:[%s1671 + $0x300] sm:$0xff]
          %v1769 = vld [vmem:[%s1671 + $0x308] sm:$0xff]
          %v1770 = vld [vmem:[%s1671 + $0x310] sm:$0xff]
          %v1771 = vld [vmem:[%s1671 + $0x318] sm:$0xff]
          %v1772 = vld [vmem:[%s1671 + $0x320] sm:$0xff]
          %v1773 = vld [vmem:[%s1671 + $0x328] sm:$0xff]
          %v1774 = vld [vmem:[%s1671 + $0x330] sm:$0xff]
          %v1775 = vld [vmem:[%s1671 + $0x338] sm:$0xff]
          %v1776 = vld [vmem:[%s1671 + $0x340] sm:$0xff]
          %v1777 = vld [vmem:[%s1671 + $0x348] sm:$0xff]
          %v1778 = vld [vmem:[%s1671 + $0x350] sm:$0xff]
          %v1779 = vld [vmem:[%s1671 + $0x358] sm:$0xff]
          %v1780 = vld [vmem:[%s1671 + $0x360] sm:$0xff]
          %v1781 = vld [vmem:[%s1671 + $0x368] sm:$0xff]
          %v1782 = vld [vmem:[%s1671 + $0x370] sm:$0xff]
          %v1783 = vld [vmem:[%s1671 + $0x378] sm:$0xff]
          %v1784 = vld [vmem:[%s1671 + $0x380] sm:$0xff]
          %v1785 = vld [vmem:[%s1671 + $0x388] sm:$0xff]
          %v1786 = vld [vmem:[%s1671 + $0x390] sm:$0xff]
          %v1787 = vld [vmem:[%s1671 + $0x398] sm:$0xff]
          %v1788 = vld [vmem:[%s1671 + $0x3a0] sm:$0xff]
          %v1789 = vld [vmem:[%s1671 + $0x3a8] sm:$0xff]
          %v1790 = vld [vmem:[%s1671 + $0x3b0] sm:$0xff]
          %v1791 = vld [vmem:[%s1671 + $0x3b8] sm:$0xff]
          %v1792 = vld [vmem:[%s1671 + $0x3c0] sm:$0xff]
          %v1793 = vld [vmem:[%s1671 + $0x3c8] sm:$0xff]
          %v1794 = vld [vmem:[%s1671 + $0x3d0] sm:$0xff]
          %v1795 = vld [vmem:[%s1671 + $0x3d8] sm:$0xff]
          %v1796 = vld [vmem:[%s1671 + $0x3e0] sm:$0xff]
          %v1797 = vld [vmem:[%s1671 + $0x3e8] sm:$0xff]
          %v1798 = vld [vmem:[%s1671 + $0x3f0] sm:$0xff]
          %v1799 = vld [vmem:[%s1671 + $0x3f8] sm:$0xff]
          %v1800 = vld [vmem:[%s1671 + $0x400] sm:$0xff]
          %v1801 = vld [vmem:[%s1671 + $0x408] sm:$0xff]
          %v1802 = vld [vmem:[%s1671 + $0x410] sm:$0xff]
          %v1803 = vld [vmem:[%s1671 + $0x418] sm:$0xff]
          %v1804 = vld [vmem:[%s1671 + $0x420] sm:$0xff]
          %v1805 = vld [vmem:[%s1671 + $0x428] sm:$0xff]
          %v1806 = vld [vmem:[%s1671 + $0x430] sm:$0xff]
          %v1807 = vld [vmem:[%s1671 + $0x438] sm:$0xff]
          %v1808 = vld [vmem:[%s1671 + $0x440] sm:$0xff]
          %v1809 = vld [vmem:[%s1671 + $0x448] sm:$0xff]
          %v1810 = vld [vmem:[%s1671 + $0x450] sm:$0xff]
          %v1811 = vld [vmem:[%s1671 + $0x458] sm:$0xff]
          %v1812 = vld [vmem:[%s1671 + $0x460] sm:$0xff]
          %v1813 = vld [vmem:[%s1671 + $0x468] sm:$0xff]
          %v1814 = vld [vmem:[%s1671 + $0x470] sm:$0xff]
          %v1815 = vld [vmem:[%s1671 + $0x478] sm:$0xff]
          %v1816 = vld [vmem:[%s1671 + $0x480] sm:$0xff]
          %v1817 = vld [vmem:[%s1671 + $0x488] sm:$0xff]
          %v1818 = vld [vmem:[%s1671 + $0x490] sm:$0xff]
          %v1819 = vld [vmem:[%s1671 + $0x498] sm:$0xff]
          %v1820 = vld [vmem:[%s1671 + $0x4a0] sm:$0xff]
          %v1821 = vld [vmem:[%s1671 + $0x4a8] sm:$0xff]
          %v1822 = vld [vmem:[%s1671 + $0x4b0] sm:$0xff]
          %v1823 = vld [vmem:[%s1671 + $0x4b8] sm:$0xff]
          %v1824 = vld [vmem:[%s1671 + $0x4c0] sm:$0xff]
          %v1825 = vld [vmem:[%s1671 + $0x4c8] sm:$0xff]
          %v1826 = vld [vmem:[%s1671 + $0x4d0] sm:$0xff]
          %v1827 = vld [vmem:[%s1671 + $0x4d8] sm:$0xff]
          %v1828 = vld [vmem:[%s1671 + $0x4e0] sm:$0xff]
          %v1829 = vld [vmem:[%s1671 + $0x4e8] sm:$0xff]
          %v1830 = vld [vmem:[%s1671 + $0x4f0] sm:$0xff]
          %v1831 = vld [vmem:[%s1671 + $0x4f8] sm:$0xff]
          %v1833 = vsel %vm1100, %v937, 0
          %1835 = vmatprep.subr.mxu0 %v1753
          %1836 = vmatpush1.msra.mxu0 %v1752
          %1837 = vmatprep.subr.mxu0 %v1755
          %1838 = vmatpush1.msra.mxu0 %v1754
          %1839 = vmatprep.subr.mxu0 %v1757
          %1840 = vmatpush1.msra.mxu0 %v1756
          %1841 = vmatprep.subr.mxu0 %v1759
          %1842 = vmatpush1.msra.mxu0 %v1758
          %1843 = vmatprep.subr.mxu0 %v1761
          %1844 = vmatpush1.msra.mxu0 %v1760
          %1845 = vmatprep.subr.mxu0 %v1763
          %1846 = vmatpush1.msra.mxu0 %v1762
          %1847 = vmatprep.subr.mxu0 %v1765
          %1848 = vmatpush1.msra.mxu0 %v1764
          %1849 = vmatprep.subr.mxu0 %v1767
          %1850 = vmatpush1.msra.mxu0 %v1766
          %1851 = vmatprep.subr.mxu0 %v1769
          %1852 = vmatpush1.msra.mxu0 %v1768
          %1853 = vmatprep.subr.mxu0 %v1771
          %1854 = vmatpush1.msra.mxu0 %v1770
          %1855 = vmatprep.subr.mxu0 %v1773
          %1856 = vmatpush1.msra.mxu0 %v1772
          %1857 = vmatprep.subr.mxu0 %v1775
          %1858 = vmatpush1.msra.mxu0 %v1774
          %1859 = vmatprep.subr.mxu0 %v1777
          %1860 = vmatpush1.msra.mxu0 %v1776
          %1861 = vmatprep.subr.mxu0 %v1779
          %1862 = vmatpush1.msra.mxu0 %v1778
          %1863 = vmatprep.subr.mxu0 %v1781
          %1864 = vmatpush1.msra.mxu0 %v1780
          %1865 = vmatprep.subr.mxu0 %v1783
          %1866 = vmatpush1.msra.mxu0 %v1782
          %1867 = vmatprep.subr.mxu0 %v1785
          %1868 = vmatpush1.msra.mxu0 %v1784
          %1869 = vmatprep.subr.mxu0 %v1787
          %1870 = vmatpush1.msra.mxu0 %v1786
          %1871 = vmatprep.subr.mxu0 %v1789
          %1872 = vmatpush1.msra.mxu0 %v1788
          %1873 = vmatprep.subr.mxu0 %v1791
          %1874 = vmatpush1.msra.mxu0 %v1790
          %1875 = vmatprep.subr.mxu0 %v1793
          %1876 = vmatpush1.msra.mxu0 %v1792
          %1877 = vmatprep.subr.mxu0 %v1795
          %1878 = vmatpush1.msra.mxu0 %v1794
          %1879 = vmatprep.subr.mxu0 %v1797
          %1880 = vmatpush1.msra.mxu0 %v1796
          %1881 = vmatprep.subr.mxu0 %v1799
          %1882 = vmatpush1.msra.mxu0 %v1798
          %1883 = vmatprep.subr.mxu0 %v1801
          %1884 = vmatpush1.msra.mxu0 %v1800
          %1885 = vmatprep.subr.mxu0 %v1803
          %1886 = vmatpush1.msra.mxu0 %v1802
          %1887 = vmatprep.subr.mxu0 %v1805
          %1888 = vmatpush1.msra.mxu0 %v1804
          %1889 = vmatprep.subr.mxu0 %v1807
          %1890 = vmatpush1.msra.mxu0 %v1806
          %1891 = vmatprep.subr.mxu0 %v1809
          %1892 = vmatpush1.msra.mxu0 %v1808
          %1893 = vmatprep.subr.mxu0 %v1811
          %1894 = vmatpush1.msra.mxu0 %v1810
          %1895 = vmatprep.subr.mxu0 %v1813
          %1896 = vmatpush1.msra.mxu0 %v1812
          %1897 = vmatprep.subr.mxu0 %v1815
          %1898 = vmatpush1.msra.mxu0 %v1814
          %1899 = vmatprep.mubr.f32.mxu0 %v936
          %1900 = vmatmul.mubr.f32.gmra.mrb[0].mxu0 %v935
          %v1901 = vpop.f32.mrb[0].mxu0
          %v1902 = vadd.f32 0.0, %v1901
          %v1903 = vpop.f32.mrb[0].mxu0
          %v1904 = vadd.f32 0.0, %v1903
          %1905 = vdwg.mxu0
          %1906 = vmatprep.subr.mxu0 %v1817
          %1907 = vmatpush1.msra.mxu0 %v1816
          %1908 = vmatprep.subr.mxu0 %v1819
          %1909 = vmatpush1.msra.mxu0 %v1818
          %1910 = vmatprep.subr.mxu0 %v1821
          %1911 = vmatpush1.msra.mxu0 %v1820
          %1912 = vmatprep.subr.mxu0 %v1823
          %1913 = vmatpush1.msra.mxu0 %v1822
          %1914 = vmatprep.subr.mxu0 %v1825
          %1915 = vmatpush1.msra.mxu0 %v1824
          %1916 = vmatprep.subr.mxu0 %v1827
          %1917 = vmatpush1.msra.mxu0 %v1826
          %1918 = vmatprep.subr.mxu0 %v1829
          %1919 = vmatpush1.msra.mxu0 %v1828
          %1920 = vmatprep.subr.mxu0 %v1831
          %1921 = vmatpush1.msra.mxu0 %v1830
          %1922 = vmatprep.subr.mxu0 0.0
          %1923 = vmatpush1.msra.mxu0 0.0
          %1924 = vmatprep.subr.mxu0 0.0
          %1925 = vmatpush1.msra.mxu0 0.0
          %1926 = vmatprep.subr.mxu0 0.0
          %1927 = vmatpush1.msra.mxu0 0.0
          %1928 = vmatprep.subr.mxu0 0.0
          %1929 = vmatpush1.msra.mxu0 0.0
          %1930 = vmatprep.subr.mxu0 0.0
          %1931 = vmatpush1.msra.mxu0 0.0
          %1932 = vmatprep.subr.mxu0 0.0
          %1933 = vmatpush1.msra.mxu0 0.0
          %1934 = vmatprep.subr.mxu0 0.0
          %1935 = vmatpush1.msra.mxu0 0.0
          %1936 = vmatprep.subr.mxu0 0.0
          %1937 = vmatpush1.msra.mxu0 0.0
          %1938 = vmatprep.subr.mxu0 0.0
          %1939 = vmatpush1.msra.mxu0 0.0
          %1940 = vmatprep.subr.mxu0 0.0
          %1941 = vmatpush1.msra.mxu0 0.0
          %1942 = vmatprep.subr.mxu0 0.0
          %1943 = vmatpush1.msra.mxu0 0.0
          %1944 = vmatprep.subr.mxu0 0.0
          %1945 = vmatpush1.msra.mxu0 0.0
          %1946 = vmatprep.subr.mxu0 0.0
          %1947 = vmatpush1.msra.mxu0 0.0
          %1948 = vmatprep.subr.mxu0 0.0
          %1949 = vmatpush1.msra.mxu0 0.0
          %1950 = vmatprep.subr.mxu0 0.0
          %1951 = vmatpush1.msra.mxu0 0.0
          %1952 = vmatprep.subr.mxu0 0.0
          %1953 = vmatpush1.msra.mxu0 0.0
          %1954 = vmatprep.subr.mxu0 0.0
          %1955 = vmatpush1.msra.mxu0 0.0
          %1956 = vmatprep.subr.mxu0 0.0
          %1957 = vmatpush1.msra.mxu0 0.0
          %1958 = vmatprep.subr.mxu0 0.0
          %1959 = vmatpush1.msra.mxu0 0.0
          %1960 = vmatprep.subr.mxu0 0.0
          %1961 = vmatpush1.msra.mxu0 0.0
          %1962 = vmatprep.subr.mxu0 0.0
          %1963 = vmatpush1.msra.mxu0 0.0
          %1964 = vmatprep.subr.mxu0 0.0
          %1965 = vmatpush1.msra.mxu0 0.0
          %1966 = vmatprep.subr.mxu0 0.0
          %1967 = vmatpush1.msra.mxu0 0.0
          %1968 = vmatprep.subr.mxu0 0.0
          %1969 = vmatpush1.msra.mxu0 0.0
          %1970 = vmatprep.mubr.f32.mxu0 0.0
          %1971 = vmatmul.mubr.f32.gmra.mrb[0].mxu0 %v1833
          %v1972 = vpop.f32.mrb[0].mxu0
          %v1973 = vadd.f32 %v1902, %v1972
          %v1974 = vpop.f32.mrb[0].mxu0
          %v1975 = vadd.f32 %v1904, %v1974
          %1976 = vdwg.mxu0
          %v1978 = vsel %vm1100, %v717, 0
          %1980 = vmatprep.subr.mxu0 %v1673
          %1981 = vmatpush1.msra.mxu0 %v1672
          %1982 = vmatprep.subr.mxu0 %v1675
          %1983 = vmatpush1.msra.mxu0 %v1674
          %1984 = vmatprep.subr.mxu0 %v1677
          %1985 = vmatpush1.msra.mxu0 %v1676
          %1986 = vmatprep.subr.mxu0 %v1679
          %1987 = vmatpush1.msra.mxu0 %v1678
          %1988 = vmatprep.subr.mxu0 %v1681
          %1989 = vmatpush1.msra.mxu0 %v1680
          %1990 = vmatprep.subr.mxu0 %v1683
          %1991 = vmatpush1.msra.mxu0 %v1682
          %1992 = vmatprep.subr.mxu0 %v1685
          %1993 = vmatpush1.msra.mxu0 %v1684
          %1994 = vmatprep.subr.mxu0 %v1687
          %1995 = vmatpush1.msra.mxu0 %v1686
          %1996 = vmatprep.subr.mxu0 %v1689
          %1997 = vmatpush1.msra.mxu0 %v1688
          %1998 = vmatprep.subr.mxu0 %v1691
          %1999 = vmatpush1.msra.mxu0 %v1690
          %2000 = vmatprep.subr.mxu0 %v1693
          %2001 = vmatpush1.msra.mxu0 %v1692
          %2002 = vmatprep.subr.mxu0 %v1695
          %2003 = vmatpush1.msra.mxu0 %v1694
          %2004 = vmatprep.subr.mxu0 %v1697
          %2005 = vmatpush1.msra.mxu0 %v1696
          %2006 = vmatprep.subr.mxu0 %v1699
          %2007 = vmatpush1.msra.mxu0 %v1698
          %2008 = vmatprep.subr.mxu0 %v1701
          %2009 = vmatpush1.msra.mxu0 %v1700
          %2010 = vmatprep.subr.mxu0 %v1703
          %2011 = vmatpush1.msra.mxu0 %v1702
          %2012 = vmatprep.subr.mxu0 %v1705
          %2013 = vmatpush1.msra.mxu0 %v1704
          %2014 = vmatprep.subr.mxu0 %v1707
          %2015 = vmatpush1.msra.mxu0 %v1706
          %2016 = vmatprep.subr.mxu0 %v1709
          %2017 = vmatpush1.msra.mxu0 %v1708
          %2018 = vmatprep.subr.mxu0 %v1711
          %2019 = vmatpush1.msra.mxu0 %v1710
          %2020 = vmatprep.subr.mxu0 %v1713
          %2021 = vmatpush1.msra.mxu0 %v1712
          %2022 = vmatprep.subr.mxu0 %v1715
          %2023 = vmatpush1.msra.mxu0 %v1714
          %2024 = vmatprep.subr.mxu0 %v1717
          %2025 = vmatpush1.msra.mxu0 %v1716
          %2026 = vmatprep.subr.mxu0 %v1719
          %2027 = vmatpush1.msra.mxu0 %v1718
          %2028 = vmatprep.subr.mxu0 %v1721
          %2029 = vmatpush1.msra.mxu0 %v1720
          %2030 = vmatprep.subr.mxu0 %v1723
          %2031 = vmatpush1.msra.mxu0 %v1722
          %2032 = vmatprep.subr.mxu0 %v1725
          %2033 = vmatpush1.msra.mxu0 %v1724
          %2034 = vmatprep.subr.mxu0 %v1727
          %2035 = vmatpush1.msra.mxu0 %v1726
          %2036 = vmatprep.subr.mxu0 %v1729
          %2037 = vmatpush1.msra.mxu0 %v1728
          %2038 = vmatprep.subr.mxu0 %v1731
          %2039 = vmatpush1.msra.mxu0 %v1730
          %2040 = vmatprep.subr.mxu0 %v1733
          %2041 = vmatpush1.msra.mxu0 %v1732
          %2042 = vmatprep.subr.mxu0 %v1735
          %2043 = vmatpush1.msra.mxu0 %v1734
          %2044 = vmatprep.mubr.f32.mxu0 %v716
          %2045 = vmatmul.mubr.f32.gmra.mrb[0].mxu0 %v715
          %v2046 = vpop.f32.mrb[0].mxu0
          %v2047 = vadd.f32 %v1973, %v2046
          %v2048 = vpop.f32.mrb[0].mxu0
          %v2049 = vadd.f32 %v1975, %v2048
          %2050 = vdwg.mxu0
          %2051 = vmatprep.subr.mxu0 %v1737
          %2052 = vmatpush1.msra.mxu0 %v1736
          %2053 = vmatprep.subr.mxu0 %v1739
          %2054 = vmatpush1.msra.mxu0 %v1738
          %2055 = vmatprep.subr.mxu0 %v1741
          %2056 = vmatpush1.msra.mxu0 %v1740
          %2057 = vmatprep.subr.mxu0 %v1743
          %2058 = vmatpush1.msra.mxu0 %v1742
          %2059 = vmatprep.subr.mxu0 %v1745
          %2060 = vmatpush1.msra.mxu0 %v1744
          %2061 = vmatprep.subr.mxu0 %v1747
          %2062 = vmatpush1.msra.mxu0 %v1746
          %2063 = vmatprep.subr.mxu0 %v1749
          %2064 = vmatpush1.msra.mxu0 %v1748
          %2065 = vmatprep.subr.mxu0 %v1751
          %2066 = vmatpush1.msra.mxu0 %v1750
          %2067 = vmatprep.subr.mxu0 0.0
          %2068 = vmatpush1.msra.mxu0 0.0
          %2069 = vmatprep.subr.mxu0 0.0
          %2070 = vmatpush1.msra.mxu0 0.0
          %2071 = vmatprep.subr.mxu0 0.0
          %2072 = vmatpush1.msra.mxu0 0.0
          %2073 = vmatprep.subr.mxu0 0.0
          %2074 = vmatpush1.msra.mxu0 0.0
          %2075 = vmatprep.subr.mxu0 0.0
          %2076 = vmatpush1.msra.mxu0 0.0
          %2077 = vmatprep.subr.mxu0 0.0
          %2078 = vmatpush1.msra.mxu0 0.0
          %2079 = vmatprep.subr.mxu0 0.0
          %2080 = vmatpush1.msra.mxu0 0.0
          %2081 = vmatprep.subr.mxu0 0.0
          %2082 = vmatpush1.msra.mxu0 0.0
          %2083 = vmatprep.subr.mxu0 0.0
          %2084 = vmatpush1.msra.mxu0 0.0
          %2085 = vmatprep.subr.mxu0 0.0
          %2086 = vmatpush1.msra.mxu0 0.0
          %2087 = vmatprep.subr.mxu0 0.0
          %2088 = vmatpush1.msra.mxu0 0.0
          %2089 = vmatprep.subr.mxu0 0.0
          %2090 = vmatpush1.msra.mxu0 0.0
          %2091 = vmatprep.subr.mxu0 0.0
          %2092 = vmatpush1.msra.mxu0 0.0
          %2093 = vmatprep.subr.mxu0 0.0
          %2094 = vmatpush1.msra.mxu0 0.0
          %2095 = vmatprep.subr.mxu0 0.0
          %2096 = vmatpush1.msra.mxu0 0.0
          %2097 = vmatprep.subr.mxu0 0.0
          %2098 = vmatpush1.msra.mxu0 0.0
          %2099 = vmatprep.subr.mxu0 0.0
          %2100 = vmatpush1.msra.mxu0 0.0
          %2101 = vmatprep.subr.mxu0 0.0
          %2102 = vmatpush1.msra.mxu0 0.0
          %2103 = vmatprep.subr.mxu0 0.0
          %2104 = vmatpush1.msra.mxu0 0.0
          %2105 = vmatprep.subr.mxu0 0.0
          %2106 = vmatpush1.msra.mxu0 0.0
          %2107 = vmatprep.subr.mxu0 0.0
          %2108 = vmatpush1.msra.mxu0 0.0
          %2109 = vmatprep.subr.mxu0 0.0
          %2110 = vmatpush1.msra.mxu0 0.0
          %2111 = vmatprep.subr.mxu0 0.0
          %2112 = vmatpush1.msra.mxu0 0.0
          %2113 = vmatprep.subr.mxu0 0.0
          %2114 = vmatpush1.msra.mxu0 0.0
          %2115 = vmatprep.mubr.f32.mxu0 0.0
          %2116 = vmatmul.mubr.f32.gmra.mrb[0].mxu0 %v1978
          %v2117 = vpop.f32.mrb[0].mxu0
          %v2118 = vadd.f32 %v2047, %v2117
          %v2119 = vpop.f32.mrb[0].mxu0
          %v2120 = vadd.f32 %v2049, %v2119
          %2121 = vdwg.mxu0
          %v2122 = vld [vmem:[%s1671 + $0x500] sm:$0xff]
          %v2123 = vld [vmem:[%s1671 + $0x508] sm:$0xff]
          %v2124 = vld [vmem:[%s1671 + $0x510] sm:$0xff]
          %v2125 = vld [vmem:[%s1671 + $0x518] sm:$0xff]
          %v2126 = vld [vmem:[%s1671 + $0x520] sm:$0xff]
          %v2127 = vld [vmem:[%s1671 + $0x528] sm:$0xff]
          %v2128 = vld [vmem:[%s1671 + $0x530] sm:$0xff]
          %v2129 = vld [vmem:[%s1671 + $0x538] sm:$0xff]
          %v2130 = vld [vmem:[%s1671 + $0x540] sm:$0xff]
          %v2131 = vld [vmem:[%s1671 + $0x548] sm:$0xff]
          %v2132 = vld [vmem:[%s1671 + $0x550] sm:$0xff]
          %v2133 = vld [vmem:[%s1671 + $0x558] sm:$0xff]
          %v2134 = vld [vmem:[%s1671 + $0x560] sm:$0xff]
          %v2135 = vld [vmem:[%s1671 + $0x568] sm:$0xff]
          %v2136 = vld [vmem:[%s1671 + $0x570] sm:$0xff]
          %v2137 = vld [vmem:[%s1671 + $0x578] sm:$0xff]
          %v2138 = vld [vmem:[%s1671 + $0x580] sm:$0xff]
          %v2139 = vld [vmem:[%s1671 + $0x588] sm:$0xff]
          %v2140 = vld [vmem:[%s1671 + $0x590] sm:$0xff]
          %v2141 = vld [vmem:[%s1671 + $0x598] sm:$0xff]
          %v2142 = vld [vmem:[%s1671 + $0x5a0] sm:$0xff]
          %v2143 = vld [vmem:[%s1671 + $0x5a8] sm:$0xff]
          %v2144 = vld [vmem:[%s1671 + $0x5b0] sm:$0xff]
          %v2145 = vld [vmem:[%s1671 + $0x5b8] sm:$0xff]
          %v2146 = vld [vmem:[%s1671 + $0x5c0] sm:$0xff]
          %v2147 = vld [vmem:[%s1671 + $0x5c8] sm:$0xff]
          %v2148 = vld [vmem:[%s1671 + $0x5d0] sm:$0xff]
          %v2149 = vld [vmem:[%s1671 + $0x5d8] sm:$0xff]
          %v2150 = vld [vmem:[%s1671 + $0x5e0] sm:$0xff]
          %v2151 = vld [vmem:[%s1671 + $0x5e8] sm:$0xff]
          %v2152 = vld [vmem:[%s1671 + $0x5f0] sm:$0xff]
          %v2153 = vld [vmem:[%s1671 + $0x5f8] sm:$0xff]
          %v2154 = vld [vmem:[%s1671 + $0x600] sm:$0xff]
          %v2155 = vld [vmem:[%s1671 + $0x608] sm:$0xff]
          %v2156 = vld [vmem:[%s1671 + $0x610] sm:$0xff]
          %v2157 = vld [vmem:[%s1671 + $0x618] sm:$0xff]
          %v2158 = vld [vmem:[%s1671 + $0x620] sm:$0xff]
          %v2159 = vld [vmem:[%s1671 + $0x628] sm:$0xff]
          %v2160 = vld [vmem:[%s1671 + $0x630] sm:$0xff]
          %v2161 = vld [vmem:[%s1671 + $0x638] sm:$0xff]
          %v2162 = vld [vmem:[%s1671 + $0x640] sm:$0xff]
          %v2163 = vld [vmem:[%s1671 + $0x648] sm:$0xff]
          %v2164 = vld [vmem:[%s1671 + $0x650] sm:$0xff]
          %v2165 = vld [vmem:[%s1671 + $0x658] sm:$0xff]
          %v2166 = vld [vmem:[%s1671 + $0x660] sm:$0xff]
          %v2167 = vld [vmem:[%s1671 + $0x668] sm:$0xff]
          %v2168 = vld [vmem:[%s1671 + $0x670] sm:$0xff]
          %v2169 = vld [vmem:[%s1671 + $0x678] sm:$0xff]
          %v2170 = vld [vmem:[%s1671 + $0x680] sm:$0xff]
          %v2171 = vld [vmem:[%s1671 + $0x688] sm:$0xff]
          %v2172 = vld [vmem:[%s1671 + $0x690] sm:$0xff]
          %v2173 = vld [vmem:[%s1671 + $0x698] sm:$0xff]
          %v2174 = vld [vmem:[%s1671 + $0x6a0] sm:$0xff]
          %v2175 = vld [vmem:[%s1671 + $0x6a8] sm:$0xff]
          %v2176 = vld [vmem:[%s1671 + $0x6b0] sm:$0xff]
          %v2177 = vld [vmem:[%s1671 + $0x6b8] sm:$0xff]
          %v2178 = vld [vmem:[%s1671 + $0x6c0] sm:$0xff]
          %v2179 = vld [vmem:[%s1671 + $0x6c8] sm:$0xff]
          %v2180 = vld [vmem:[%s1671 + $0x6d0] sm:$0xff]
          %v2181 = vld [vmem:[%s1671 + $0x6d8] sm:$0xff]
          %v2182 = vld [vmem:[%s1671 + $0x6e0] sm:$0xff]
          %v2183 = vld [vmem:[%s1671 + $0x6e8] sm:$0xff]
          %v2184 = vld [vmem:[%s1671 + $0x6f0] sm:$0xff]
          %v2185 = vld [vmem:[%s1671 + $0x6f8] sm:$0xff]
          %v2186 = vld [vmem:[%s1671 + $0x700] sm:$0xff]
          %v2187 = vld [vmem:[%s1671 + $0x708] sm:$0xff]
          %v2188 = vld [vmem:[%s1671 + $0x710] sm:$0xff]
          %v2189 = vld [vmem:[%s1671 + $0x718] sm:$0xff]
          %v2190 = vld [vmem:[%s1671 + $0x720] sm:$0xff]
          %v2191 = vld [vmem:[%s1671 + $0x728] sm:$0xff]
          %v2192 = vld [vmem:[%s1671 + $0x730] sm:$0xff]
          %v2193 = vld [vmem:[%s1671 + $0x738] sm:$0xff]
          %v2194 = vld [vmem:[%s1671 + $0x740] sm:$0xff]
          %v2195 = vld [vmem:[%s1671 + $0x748] sm:$0xff]
          %v2196 = vld [vmem:[%s1671 + $0x750] sm:$0xff]
          %v2197 = vld [vmem:[%s1671 + $0x758] sm:$0xff]
          %v2198 = vld [vmem:[%s1671 + $0x760] sm:$0xff]
          %v2199 = vld [vmem:[%s1671 + $0x768] sm:$0xff]
          %v2200 = vld [vmem:[%s1671 + $0x770] sm:$0xff]
          %v2201 = vld [vmem:[%s1671 + $0x778] sm:$0xff]
          %v2203 = vrot.slane %v716, 1
          %v2204 = vrot.slane %v717, 1
          %v2207 = vsel %vm1100, %v2204, 0
          %2209 = vmatprep.subr.mxu0 %v2123
          %2210 = vmatpush1.msra.mxu0 %v2122
          %2211 = vmatprep.subr.mxu0 %v2125
          %2212 = vmatpush1.msra.mxu0 %v2124
          %2213 = vmatprep.subr.mxu0 %v2127
          %2214 = vmatpush1.msra.mxu0 %v2126
          %2215 = vmatprep.subr.mxu0 %v2129
          %2216 = vmatpush1.msra.mxu0 %v2128
          %2217 = vmatprep.subr.mxu0 %v2131
          %2218 = vmatpush1.msra.mxu0 %v2130
          %2219 = vmatprep.subr.mxu0 %v2133
          %2220 = vmatpush1.msra.mxu0 %v2132
          %2221 = vmatprep.subr.mxu0 %v2135
          %2222 = vmatpush1.msra.mxu0 %v2134
          %2223 = vmatprep.subr.mxu0 %v2137
          %2224 = vmatpush1.msra.mxu0 %v2136
          %2225 = vmatprep.subr.mxu0 %v2139
          %2226 = vmatpush1.msra.mxu0 %v2138
          %2227 = vmatprep.subr.mxu0 %v2141
          %2228 = vmatpush1.msra.mxu0 %v2140
          %2229 = vmatprep.subr.mxu0 %v2143
          %2230 = vmatpush1.msra.mxu0 %v2142
          %2231 = vmatprep.subr.mxu0 %v2145
          %2232 = vmatpush1.msra.mxu0 %v2144
          %2233 = vmatprep.subr.mxu0 %v2147
          %2234 = vmatpush1.msra.mxu0 %v2146
          %2235 = vmatprep.subr.mxu0 %v2149
          %2236 = vmatpush1.msra.mxu0 %v2148
          %2237 = vmatprep.subr.mxu0 %v2151
          %2238 = vmatpush1.msra.mxu0 %v2150
          %2239 = vmatprep.subr.mxu0 %v2153
          %2240 = vmatpush1.msra.mxu0 %v2152
          %2241 = vmatprep.subr.mxu0 %v2155
          %2242 = vmatpush1.msra.mxu0 %v2154
          %2243 = vmatprep.subr.mxu0 %v2157
          %2244 = vmatpush1.msra.mxu0 %v2156
          %2245 = vmatprep.subr.mxu0 %v2159
          %2246 = vmatpush1.msra.mxu0 %v2158
          %2247 = vmatprep.subr.mxu0 %v2161
          %2248 = vmatpush1.msra.mxu0 %v2160
          %2249 = vmatprep.subr.mxu0 %v2163
          %2250 = vmatpush1.msra.mxu0 %v2162
          %2251 = vmatprep.subr.mxu0 %v2165
          %2252 = vmatpush1.msra.mxu0 %v2164
          %2253 = vmatprep.subr.mxu0 %v2167
          %2254 = vmatpush1.msra.mxu0 %v2166
          %2255 = vmatprep.subr.mxu0 %v2169
          %2256 = vmatpush1.msra.mxu0 %v2168
          %2257 = vmatprep.subr.mxu0 %v2171
          %2258 = vmatpush1.msra.mxu0 %v2170
          %2259 = vmatprep.subr.mxu0 %v2173
          %2260 = vmatpush1.msra.mxu0 %v2172
          %2261 = vmatprep.subr.mxu0 %v2175
          %2262 = vmatpush1.msra.mxu0 %v2174
          %2263 = vmatprep.subr.mxu0 %v2177
          %2264 = vmatpush1.msra.mxu0 %v2176
          %2265 = vmatprep.subr.mxu0 %v2179
          %2266 = vmatpush1.msra.mxu0 %v2178
          %2267 = vmatprep.subr.mxu0 %v2181
          %2268 = vmatpush1.msra.mxu0 %v2180
          %2269 = vmatprep.subr.mxu0 %v2183
          %2270 = vmatpush1.msra.mxu0 %v2182
          %2271 = vmatprep.subr.mxu0 %v2185
          %2272 = vmatpush1.msra.mxu0 %v2184
          %2273 = vmatprep.mubr.f32.mxu0 %v2203
          %2274 = vmatmul.mubr.f32.gmra.mrb[0].mxu0 %v1475
          %v2275 = vpop.f32.mrb[0].mxu0
          %v2276 = vadd.f32 0.0, %v2275
          %v2277 = vpop.f32.mrb[0].mxu0
          %v2278 = vadd.f32 0.0, %v2277
          %2279 = vdwg.mxu0
          %2280 = vmatprep.subr.mxu0 %v2187
          %2281 = vmatpush1.msra.mxu0 %v2186
          %2282 = vmatprep.subr.mxu0 %v2189
          %2283 = vmatpush1.msra.mxu0 %v2188
          %2284 = vmatprep.subr.mxu0 %v2191
          %2285 = vmatpush1.msra.mxu0 %v2190
          %2286 = vmatprep.subr.mxu0 %v2193
          %2287 = vmatpush1.msra.mxu0 %v2192
          %2288 = vmatprep.subr.mxu0 %v2195
          %2289 = vmatpush1.msra.mxu0 %v2194
          %2290 = vmatprep.subr.mxu0 %v2197
          %2291 = vmatpush1.msra.mxu0 %v2196
          %2292 = vmatprep.subr.mxu0 %v2199
          %2293 = vmatpush1.msra.mxu0 %v2198
          %2294 = vmatprep.subr.mxu0 %v2201
          %2295 = vmatpush1.msra.mxu0 %v2200
          %2296 = vmatprep.subr.mxu0 0.0
          %2297 = vmatpush1.msra.mxu0 0.0
          %2298 = vmatprep.subr.mxu0 0.0
          %2299 = vmatpush1.msra.mxu0 0.0
          %2300 = vmatprep.subr.mxu0 0.0
          %2301 = vmatpush1.msra.mxu0 0.0
          %2302 = vmatprep.subr.mxu0 0.0
          %2303 = vmatpush1.msra.mxu0 0.0
          %2304 = vmatprep.subr.mxu0 0.0
          %2305 = vmatpush1.msra.mxu0 0.0
          %2306 = vmatprep.subr.mxu0 0.0
          %2307 = vmatpush1.msra.mxu0 0.0
          %2308 = vmatprep.subr.mxu0 0.0
          %2309 = vmatpush1.msra.mxu0 0.0
          %2310 = vmatprep.subr.mxu0 0.0
          %2311 = vmatpush1.msra.mxu0 0.0
          %2312 = vmatprep.subr.mxu0 0.0
          %2313 = vmatpush1.msra.mxu0 0.0
          %2314 = vmatprep.subr.mxu0 0.0
          %2315 = vmatpush1.msra.mxu0 0.0
          %2316 = vmatprep.subr.mxu0 0.0
          %2317 = vmatpush1.msra.mxu0 0.0
          %2318 = vmatprep.subr.mxu0 0.0
          %2319 = vmatpush1.msra.mxu0 0.0
          %2320 = vmatprep.subr.mxu0 0.0
          %2321 = vmatpush1.msra.mxu0 0.0
          %2322 = vmatprep.subr.mxu0 0.0
          %2323 = vmatpush1.msra.mxu0 0.0
          %2324 = vmatprep.subr.mxu0 0.0
          %2325 = vmatpush1.msra.mxu0 0.0
          %2326 = vmatprep.subr.mxu0 0.0
          %2327 = vmatpush1.msra.mxu0 0.0
          %2328 = vmatprep.subr.mxu0 0.0
          %2329 = vmatpush1.msra.mxu0 0.0
          %2330 = vmatprep.subr.mxu0 0.0
          %2331 = vmatpush1.msra.mxu0 0.0
          %2332 = vmatprep.subr.mxu0 0.0
          %2333 = vmatpush1.msra.mxu0 0.0
          %2334 = vmatprep.subr.mxu0 0.0
          %2335 = vmatpush1.msra.mxu0 0.0
          %2336 = vmatprep.subr.mxu0 0.0
          %2337 = vmatpush1.msra.mxu0 0.0
          %2338 = vmatprep.subr.mxu0 0.0
          %2339 = vmatpush1.msra.mxu0 0.0
          %2340 = vmatprep.subr.mxu0 0.0
          %2341 = vmatpush1.msra.mxu0 0.0
          %2342 = vmatprep.subr.mxu0 0.0
          %2343 = vmatpush1.msra.mxu0 0.0
          %2344 = vmatprep.mubr.f32.mxu0 0.0
          %2345 = vmatmul.mubr.f32.gmra.mrb[0].mxu0 %v2207
          %v2346 = vpop.f32.mrb[0].mxu0
          %v2347 = vadd.f32 %v2276, %v2346
          %v2348 = vpop.f32.mrb[0].mxu0
          %v2349 = vadd.f32 %v2278, %v2348
          %2350 = vdwg.mxu0
          %v2351 = vadd.f32 %v2118, %v2347
          %v2352 = vadd.f32 %v2120, %v2349
          %v2353 = vadd.f32 %v2351, %v1628
          %v2354 = vadd.f32 %v2352, %v1632
          %v2355 = vmax.f32 %v2353, 0.0
          %v2356 = vmax.f32 %v2354, 0.0
          %v2357 = vld [vmem:[%s7 + $0x100] sm:$0xff]
          %v2358 = vld [vmem:[%s7 + $0x108] sm:$0xff]
          %v2359 = vld [vmem:[%s7 + $0x110] sm:$0xff]
          %v2360 = vld [vmem:[%s7 + $0x118] sm:$0xff]
          %v2361 = vld [vmem:[%s7 + $0x120] sm:$0xff]
          %v2362 = vld [vmem:[%s7 + $0x128] sm:$0xff]
          %v2363 = vld [vmem:[%s7 + $0x130] sm:$0xff]
          %v2364 = vld [vmem:[%s7 + $0x138] sm:$0xff]
          %v2365 = vld [vmem:[%s7 + $0x140] sm:$0xff]
          %v2366 = vld [vmem:[%s7 + $0x148] sm:$0xff]
          %v2367 = vld [vmem:[%s7 + $0x150] sm:$0xff]
          %v2368 = vld [vmem:[%s7 + $0x158] sm:$0xff]
          %v2369 = vld [vmem:[%s7 + $0x160] sm:$0xff]
          %v2370 = vld [vmem:[%s7 + $0x168] sm:$0xff]
          %v2371 = vld [vmem:[%s7 + $0x170] sm:$0xff]
          %v2372 = vld [vmem:[%s7 + $0x178] sm:$0xff]
          %v2373 = vld [vmem:[%s7 + $0x180] sm:$0xff]
          %v2374 = vld [vmem:[%s7 + $0x188] sm:$0xff]
          %v2375 = vld [vmem:[%s7 + $0x190] sm:$0xff]
          %v2376 = vld [vmem:[%s7 + $0x198] sm:$0xff]
          %v2377 = vld [vmem:[%s7 + $0x1a0] sm:$0xff]
          %v2378 = vld [vmem:[%s7 + $0x1a8] sm:$0xff]
          %v2379 = vld [vmem:[%s7 + $0x1b0] sm:$0xff]
          %v2380 = vld [vmem:[%s7 + $0x1b8] sm:$0xff]
          %v2381 = vld [vmem:[%s7 + $0x1c0] sm:$0xff]
          %v2382 = vld [vmem:[%s7 + $0x1c8] sm:$0xff]
          %v2383 = vld [vmem:[%s7 + $0x1d0] sm:$0xff]
          %v2384 = vld [vmem:[%s7 + $0x1d8] sm:$0xff]
          %v2385 = vld [vmem:[%s7 + $0x1e0] sm:$0xff]
          %v2386 = vld [vmem:[%s7 + $0x1e8] sm:$0xff]
          %v2387 = vld [vmem:[%s7 + $0x1f0] sm:$0xff]
          %v2388 = vld [vmem:[%s7 + $0x1f8] sm:$0xff]
          %2389 = vmatprep.subr.mxu0 0.0
          %2390 = vmatpush1.msra.mxu0 %v2357
          %2391 = vmatprep.subr.mxu0 0.0
          %2392 = vmatpush1.msra.mxu0 %v2358
          %2393 = vmatprep.subr.mxu0 0.0
          %2394 = vmatpush1.msra.mxu0 %v2359
          %2395 = vmatprep.subr.mxu0 0.0
          %2396 = vmatpush1.msra.mxu0 %v2360
          %2397 = vmatprep.subr.mxu0 0.0
          %2398 = vmatpush1.msra.mxu0 %v2361
          %2399 = vmatprep.subr.mxu0 0.0
          %2400 = vmatpush1.msra.mxu0 %v2362
          %2401 = vmatprep.subr.mxu0 0.0
          %2402 = vmatpush1.msra.mxu0 %v2363
          %2403 = vmatprep.subr.mxu0 0.0
          %2404 = vmatpush1.msra.mxu0 %v2364
          %2405 = vmatprep.subr.mxu0 0.0
          %2406 = vmatpush1.msra.mxu0 %v2365
          %2407 = vmatprep.subr.mxu0 0.0
          %2408 = vmatpush1.msra.mxu0 %v2366
          %2409 = vmatprep.subr.mxu0 0.0
          %2410 = vmatpush1.msra.mxu0 %v2367
          %2411 = vmatprep.subr.mxu0 0.0
          %2412 = vmatpush1.msra.mxu0 %v2368
          %2413 = vmatprep.subr.mxu0 0.0
          %2414 = vmatpush1.msra.mxu0 %v2369
          %2415 = vmatprep.subr.mxu0 0.0
          %2416 = vmatpush1.msra.mxu0 %v2370
          %2417 = vmatprep.subr.mxu0 0.0
          %2418 = vmatpush1.msra.mxu0 %v2371
          %2419 = vmatprep.subr.mxu0 0.0
          %2420 = vmatpush1.msra.mxu0 %v2372
          %2421 = vmatprep.subr.mxu0 0.0
          %2422 = vmatpush1.msra.mxu0 %v2373
          %2423 = vmatprep.subr.mxu0 0.0
          %2424 = vmatpush1.msra.mxu0 %v2374
          %2425 = vmatprep.subr.mxu0 0.0
          %2426 = vmatpush1.msra.mxu0 %v2375
          %2427 = vmatprep.subr.mxu0 0.0
          %2428 = vmatpush1.msra.mxu0 %v2376
          %2429 = vmatprep.subr.mxu0 0.0
          %2430 = vmatpush1.msra.mxu0 %v2377
          %2431 = vmatprep.subr.mxu0 0.0
          %2432 = vmatpush1.msra.mxu0 %v2378
          %2433 = vmatprep.subr.mxu0 0.0
          %2434 = vmatpush1.msra.mxu0 %v2379
          %2435 = vmatprep.subr.mxu0 0.0
          %2436 = vmatpush1.msra.mxu0 %v2380
          %2437 = vmatprep.subr.mxu0 0.0
          %2438 = vmatpush1.msra.mxu0 %v2381
          %2439 = vmatprep.subr.mxu0 0.0
          %2440 = vmatpush1.msra.mxu0 %v2382
          %2441 = vmatprep.subr.mxu0 0.0
          %2442 = vmatpush1.msra.mxu0 %v2383
          %2443 = vmatprep.subr.mxu0 0.0
          %2444 = vmatpush1.msra.mxu0 %v2384
          %2445 = vmatprep.subr.mxu0 0.0
          %2446 = vmatpush1.msra.mxu0 %v2385
          %2447 = vmatprep.subr.mxu0 0.0
          %2448 = vmatpush1.msra.mxu0 %v2386
          %2449 = vmatprep.subr.mxu0 0.0
          %2450 = vmatpush1.msra.mxu0 %v2387
          %2451 = vmatprep.subr.mxu0 0.0
          %2452 = vmatpush1.msra.mxu0 %v2388
          %2453 = vmatprep.mubr.f32.mxu0 %v2356
          %2454 = vmatmul.mubr.f32.gmra.mrb[0].mxu0 %v2355
          %v2455 = vpop.f32.mrb[0].mxu0
          %v2456 = vadd.f32 0.0, %v2455
          %v2457 = vpop.f32.mrb[0].mxu0
          %2458 = vdwg.mxu0
          %2459 = vmatprep.subr.mxu0 0.0
          %2460 = vmatpush1.msra.mxu0 %v1639
          %2461 = vmatprep.subr.mxu0 0.0
          %2462 = vmatpush1.msra.mxu0 %v1640
          %2463 = vmatprep.subr.mxu0 0.0
          %2464 = vmatpush1.msra.mxu0 %v1641
          %2465 = vmatprep.subr.mxu0 0.0
          %2466 = vmatpush1.msra.mxu0 %v1642
          %2467 = vmatprep.subr.mxu0 0.0
          %2468 = vmatpush1.msra.mxu0 %v1643
          %2469 = vmatprep.subr.mxu0 0.0
          %2470 = vmatpush1.msra.mxu0 %v1644
          %2471 = vmatprep.subr.mxu0 0.0
          %2472 = vmatpush1.msra.mxu0 %v1645
          %2473 = vmatprep.subr.mxu0 0.0
          %2474 = vmatpush1.msra.mxu0 %v1646
          %2475 = vmatprep.subr.mxu0 0.0
          %2476 = vmatpush1.msra.mxu0 %v1647
          %2477 = vmatprep.subr.mxu0 0.0
          %2478 = vmatpush1.msra.mxu0 %v1648
          %2479 = vmatprep.subr.mxu0 0.0
          %2480 = vmatpush1.msra.mxu0 %v1649
          %2481 = vmatprep.subr.mxu0 0.0
          %2482 = vmatpush1.msra.mxu0 %v1650
          %2483 = vmatprep.subr.mxu0 0.0
          %2484 = vmatpush1.msra.mxu0 %v1651
          %2485 = vmatprep.subr.mxu0 0.0
          %2486 = vmatpush1.msra.mxu0 %v1652
          %2487 = vmatprep.subr.mxu0 0.0
          %2488 = vmatpush1.msra.mxu0 %v1653
          %2489 = vmatprep.subr.mxu0 0.0
          %2490 = vmatpush1.msra.mxu0 %v1654
          %2491 = vmatprep.subr.mxu0 0.0
          %2492 = vmatpush1.msra.mxu0 %v1655
          %2493 = vmatprep.subr.mxu0 0.0
          %2494 = vmatpush1.msra.mxu0 %v1656
          %2495 = vmatprep.subr.mxu0 0.0
          %2496 = vmatpush1.msra.mxu0 %v1657
          %2497 = vmatprep.subr.mxu0 0.0
          %2498 = vmatpush1.msra.mxu0 %v1658
          %2499 = vmatprep.subr.mxu0 0.0
          %2500 = vmatpush1.msra.mxu0 %v1659
          %2501 = vmatprep.subr.mxu0 0.0
          %2502 = vmatpush1.msra.mxu0 %v1660
          %2503 = vmatprep.subr.mxu0 0.0
          %2504 = vmatpush1.msra.mxu0 %v1661
          %2505 = vmatprep.subr.mxu0 0.0
          %2506 = vmatpush1.msra.mxu0 %v1662
          %2507 = vmatprep.subr.mxu0 0.0
          %2508 = vmatpush1.msra.mxu0 %v1663
          %2509 = vmatprep.subr.mxu0 0.0
          %2510 = vmatpush1.msra.mxu0 %v1664
          %2511 = vmatprep.subr.mxu0 0.0
          %2512 = vmatpush1.msra.mxu0 %v1665
          %2513 = vmatprep.subr.mxu0 0.0
          %2514 = vmatpush1.msra.mxu0 %v1666
          %2515 = vmatprep.subr.mxu0 0.0
          %2516 = vmatpush1.msra.mxu0 %v1667
          %2517 = vmatprep.subr.mxu0 0.0
          %2518 = vmatpush1.msra.mxu0 %v1668
          %2519 = vmatprep.subr.mxu0 0.0
          %2520 = vmatpush1.msra.mxu0 %v1669
          %2521 = vmatprep.subr.mxu0 0.0
          %2522 = vmatpush1.msra.mxu0 %v1670
          %2523 = vmatprep.mubr.f32.mxu0 %v1638
          %2524 = vmatmul.mubr.f32.gmra.mrb[0].mxu0 %v1637
          %v2525 = vpop.f32.mrb[0].mxu0
          %v2526 = vadd.f32 %v2456, %v2525
          %v2527 = vpop.f32.mrb[0].mxu0
          %2528 = vdwg.mxu0
          %v2530 = vlaneseq
          %v2531 = vshrl.u32 %v2530, 7
          %v2532 = vsub.s32 0, %v2531
          %v2533 = vrot.slane %v939, %v2532
          %v2535 = vadd.f32 %v2526, %v2533
          %vm2536 = vcmask 256000
          %2537 = vst.msk [vmem:[%s429] sm:$0x7] %vm2536, %v2535
        $region80: #{tpu_custom_call.1} parent=51 // pred_fallthru
          _
        %s2538 = sld [smem:[#allocation3 + %s34]]
        %p2539 = scmp.ge.s32.totalorder %s430, %s2538
        // Predicated region
        $region81: #{tpu_custom_call.1} parent=51 // pred_check
          %p2540 = pneg %p2539
        $region82: #{tpu_custom_call.1} parent=51 // pred_check_branch
          %2542 = sbr.rel (%p2540) target = $region84
        $region83: #{tpu_custom_call.1} parent=51 // pred_region
          %vm2543 = vcmask 256000
          %2544 = vst.msk [vmem:[%s429] sm:$0x7] %vm2543, 0.0
        $region84: #{tpu_custom_call.1} parent=51 // pred_fallthru
          _
        %p2545 = scmp.lt.s32.totalorder %s34, 1
        %s2546 = scalar_select %p2545, %s34, 1
        %p2547 = scmp.lt.s32.totalorder %s35, 0
        %s2548 = scalar_select %p2547, %s35, 0
        %s2549 = sadd.s32 %s2548, %s2546
        %s2550 = smul.addr %s2549, 4
        %s2551 = scalar_lea.vmem %s9, %s2550
        // Predicated region
        $region85: #{tpu_custom_call.1} parent=51 // pred_check
          %p2552 = pneg %p240
        $region86: #{tpu_custom_call.1} parent=51 // pred_check_branch
          %2554 = sbr.rel (%p2552) target = $region88
        $region87: #{tpu_custom_call.1} parent=51 // pred_region
          _
        $region88: #{tpu_custom_call.1} parent=51 // pred_fallthru
          _
      $region52: #{tpu_custom_call.1} parent=5 // pred_fallthru
        _
      %p2555 = scmp.le.s32.totalorder 2, %s25
      // Predicated region
      $region89: #{tpu_custom_call.1} parent=5 // pred_check
        %p2556 = pneg %p2555
      $region90: #{tpu_custom_call.1} parent=5 // pred_check_branch
        %2558 = sbr.rel (%p2556) target = $region92
      $region91: #{tpu_custom_call.1} parent=5 // pred_region
        %s2559 = ssub.s32 %s25, 2
        // Predicated region
        $region93: #{tpu_custom_call.1} parent=91 // pred_check
          %p2560 = pneg %p246
        $region94: #{tpu_custom_call.1} parent=91 // pred_check_branch
          %2562 = sbr.rel (%p2560) target = $region96
        $region95: #{tpu_custom_call.1} parent=91 // pred_region
          %p2563 = scmp.lt.s32.totalorder %s36, 1
          %s2564 = scalar_select %p2563, %s36, 1
          %p2565 = scmp.lt.s32.totalorder %s37, 0
          %s2566 = scalar_select %p2565, %s37, 0
          %s2567 = sadd.s32 %s2566, %s2564
          %s2568 = smul.addr %s2567, 4
          %s2569 = scalar_lea.vmem %s9, %s2568
        $region96: #{tpu_custom_call.1} parent=91 // pred_fallthru
          _
      $region92: #{tpu_custom_call.1} parent=5 // pred_fallthru
        _
    $region6: #{tpu_custom_call.1} parent=1 // loop_footer
      %s29 = sadd.s32 1, %s25
    $region7: #{tpu_custom_call.1} parent=1 // loop_footer_branch
      %24 = sbr.rel target = $region3
    $region8: #{tpu_custom_call.1} parent=1 // loop_exit
      _
    %2570 = vsyncpa [#allocation5], 1
    %s2571 = scalar_lea.sflag [#allocation5], 1
    %2572 = vsyncpa %s2571, 1
    %2573 = vsyncpa [#allocation7], 1
    %2574 = vsyncpa [#allocation10], 1
    %2575 = vsyncpa [#allocation13], 1

</llo_original>
